<compile_context>
chip_gen: v5e
topology: v5e:2x2
jax: 0.10.0
libtpu: 0.0.40
codegen_flags: <defaults>
</compile_context>

<pallas_src>
import functools

import numpy as np
import jax
import jax.numpy as jnp
from jax.experimental import pallas as pl
from jax.experimental.pallas import tpu as pltpu

_LOG10 = float(np.log(10.0))
_AMIN = 1e-10        # librosa.power_to_db amin
_TOP_DB = 80.0       # librosa.power_to_db default top_db
_F32_BIG = 3.0e38


# --------------------------- host-side constants ---------------------------

def _hann_window(win_length: int, n_fft: int) -> np.ndarray:
    """Periodic Hann window (scipy fftbins=True), centre-padded to n_fft."""
    n = np.arange(win_length, dtype=np.float64)
    w = 0.5 - 0.5 * np.cos(2.0 * np.pi * n / win_length)
    lpad = (n_fft - win_length) // 2
    out = np.zeros(n_fft, dtype=np.float64)
    out[lpad:lpad + win_length] = w
    return out


def _hz_to_mel(f):
    f = np.asarray(f, dtype=np.float64)
    f_sp = 200.0 / 3.0
    min_log_hz = 1000.0
    min_log_mel = min_log_hz / f_sp
    logstep = np.log(6.4) / 27.0
    lin = f / f_sp
    log = min_log_mel + np.log(np.maximum(f, 1e-20) / min_log_hz) / logstep
    return np.where(f >= min_log_hz, log, lin)


def _mel_to_hz(m):
    m = np.asarray(m, dtype=np.float64)
    f_sp = 200.0 / 3.0
    min_log_hz = 1000.0
    min_log_mel = min_log_hz / f_sp
    logstep = np.log(6.4) / 27.0
    lin = f_sp * m
    log = min_log_hz * np.exp(logstep * (m - min_log_mel))
    return np.where(m >= min_log_mel, log, lin)


def _mel_filterbank(sr, n_fft, n_mels):
    """librosa.filters.mel (Slaney scale, slaney norm): (n_mels, 1+n_fft//2)."""
    n_freq = 1 + n_fft // 2
    fftfreqs = np.linspace(0.0, sr / 2.0, n_freq)
    mel_pts = _mel_to_hz(np.linspace(_hz_to_mel(0.0), _hz_to_mel(sr / 2.0),
                                     n_mels + 2))
    fdiff = np.diff(mel_pts)
    ramps = mel_pts[:, None] - fftfreqs[None, :]
    lower = -ramps[:-2] / fdiff[:-1, None]
    upper = ramps[2:] / fdiff[1:, None]
    weights = np.maximum(0.0, np.minimum(lower, upper))
    enorm = 2.0 / (mel_pts[2:n_mels + 2] - mel_pts[:n_mels])
    return (weights * enorm[:, None]).astype(np.float64)


def _trig_matrix(n_fft, window, n_freq_pad):
    """Windowed real-DFT matrix [cos | -sin]: (n_fft, 2*n_freq_pad), pad cols 0."""
    n_freq = 1 + n_fft // 2
    n = np.arange(n_fft, dtype=np.float64)[:, None]
    k = np.arange(n_freq, dtype=np.float64)[None, :]
    ang = 2.0 * np.pi * n * k / n_fft
    w = np.zeros((n_fft, 2 * n_freq_pad), dtype=np.float64)
    w[:, :n_freq] = window[:, None] * np.cos(ang)
    w[:, n_freq_pad:n_freq_pad + n_freq] = -window[:, None] * np.sin(ang)
    return w


def _frame_signal(y, n_fft, hop):
    """Centered framing: (B, N) -> (B, T, n_fft), T = 1 + N//hop."""
    # TODO(synk): librosa>=0.10 defaults stft pad_mode='constant'; older
    # releases use 'reflect'. 'reflect' used here (only edge frames differ).
    pad = n_fft // 2
    ypad = jnp.pad(y, ((0, 0), (pad, pad)), mode="reflect")
    t = 1 + (y.shape[1] // hop)
    idx = jnp.arange(t)[:, None] * hop + jnp.arange(n_fft)[None, :]
    # Gather on the (tiny) audio; spectral compute happens in the kernel.
    return ypad[:, idx], t


# -------------------------------- kernels -----------------------------------

def _mel_db_kernel(frames_ref, wtrig_ref, melt_ref,
                   sdb_ref, pmin_ref, pmax_ref, *, tile_t, n_frames, n_freq_pad):
    """Windowed DFT -> power -> mel -> power_to_db, plus per-tile min/max."""
    j = pl.program_id(1)
    x = frames_ref[0]                                              # (tile_t, n_fft)
    # One MXU matmul computes both real (cos) and imag (-sin) halves.
    ri = jnp.dot(x, wtrig_ref[...], preferred_element_type=jnp.float32)
    re = ri[:, :n_freq_pad]
    im = ri[:, n_freq_pad:]
    power = re * re + im * im                                      # (tile_t, n_freq_pad)
    mel = jnp.dot(power, melt_ref[...], preferred_element_type=jnp.float32)
    db = (10.0 / _LOG10) * jnp.log(jnp.maximum(mel, _AMIN))        # power_to_db (ref=1)

    # Per-tile min/max over *valid* frames only (tail padding masked out),
    # reduced over the sublane (frame) axis; final scalar reduce happens on a
    # tiny (B, n_tiles, 1, n_mels) array in the wrapper.
    row = j * tile_t + jax.lax.broadcasted_iota(jnp.int32, db.shape, 0)
    valid = row < n_frames
    pmin_ref[0, 0] = jnp.min(jnp.where(valid, db, _F32_BIG), axis=0, keepdims=True)
    pmax_ref[0, 0] = jnp.max(jnp.where(valid, db, -_F32_BIG), axis=0, keepdims=True)

    # Store in mel-major layout so the normalisation pass is purely
    # element-wise; the small XLU transpose hides under the MXU-bound tile.
    sdb_ref[0] = jnp.transpose(db)                                  # (n_mels, tile_t)


def _normalize_kernel(lo_ref, inv_ref, sdb_ref, out_ref):
    """top_db clamp + min-max normalisation (pure element-wise)."""
    lo = lo_ref[0, 0]
    inv = inv_ref[0, 0]
    out_ref[...] = (jnp.maximum(sdb_ref[...], lo) - lo) * inv


def _mel_db_pass(frames, wtrig, melt, tile_t, n_frames):
    b, t_pad, n_fft = frames.shape
    nfp2 = wtrig.shape[1]
    nfp = nfp2 // 2
    n_mels = melt.shape[1]
    nt = t_pad // tile_t
    kern = functools.partial(_mel_db_kernel, tile_t=tile_t, n_frames=n_frames,
                             n_freq_pad=nfp)
    return pl.pallas_call(
        kern,
        out_shape=(
            jax.ShapeDtypeStruct((b, n_mels, t_pad), jnp.float32),
            jax.ShapeDtypeStruct((b, nt, 1, n_mels), jnp.float32),
            jax.ShapeDtypeStruct((b, nt, 1, n_mels), jnp.float32),
        ),
        grid=(b, nt),
        in_specs=[
            pl.BlockSpec((1, tile_t, n_fft), lambda i, j: (i, j, 0)),
            # Constant block indices: weights DMA'd once and reused each step.
            pl.BlockSpec((n_fft, nfp2), lambda i, j: (0, 0)),
            pl.BlockSpec((nfp, n_mels), lambda i, j: (0, 0)),
        ],
        out_specs=(
            pl.BlockSpec((1, n_mels, tile_t), lambda i, j: (i, 0, j)),
            pl.BlockSpec((1, 1, 1, n_mels), lambda i, j: (i, j, 0, 0)),
            pl.BlockSpec((1, 1, 1, n_mels), lambda i, j: (i, j, 0, 0)),
        ),
        compiler_params=pltpu.CompilerParams(
            dimension_semantics=("parallel", "parallel"),
            vmem_limit_bytes=32 * 1024 * 1024,
        ),
    )(frames, wtrig, melt)


def _normalize_pass(sdb, lo, inv, tile_t):
    b, n_mels, t_pad = sdb.shape
    nt = t_pad // tile_t
    return pl.pallas_call(
        _normalize_kernel,
        out_shape=jax.ShapeDtypeStruct((b, n_mels, t_pad), jnp.float32),
        grid=(b, nt),
        in_specs=[
            pl.BlockSpec(memory_space=pltpu.MemorySpace.SMEM),   # lo scalar
            pl.BlockSpec(memory_space=pltpu.MemorySpace.SMEM),   # 1/(max-lo)
            pl.BlockSpec((1, n_mels, tile_t), lambda i, j: (i, 0, j)),
        ],
        out_specs=pl.BlockSpec((1, n_mels, tile_t), lambda i, j: (i, 0, j)),
        compiler_params=pltpu.CompilerParams(
            dimension_semantics=("parallel", "parallel"),
            vmem_limit_bytes=32 * 1024 * 1024,
        ),
    )(lo, inv, sdb)


# ------------------------------ module wrapper ------------------------------

class LibrosaSpecTPU:
    """Pallas/TPU equivalent of LibrosaSpec.forward (mel=True branch)."""

    def __init__(self, mel: bool, sr: float = 32000, win_length: int = 800,
                 hopsize: int = 320, n_fft: int = 1024, n_mels: int = 128):
        if not mel:
            # TODO(synk): linear |STFT| + amplitude_to_db(ref=max) branch.
            raise NotImplementedError("mel=False branch not implemented")
        assert n_mels % 128 == 0, "n_mels must be a multiple of the 128-lane width"
        self.sr, self.win_length, self.hop = sr, win_length, hopsize
        self.n_fft, self.n_mels = n_fft, n_mels
        self.n_freq = 1 + n_fft // 2
        self.n_freq_pad = ((self.n_freq + 127) // 128) * 128

        self.win = _hann_window(win_length, n_fft)
        self.melfb = _mel_filterbank(sr, n_fft, n_mels)            # (n_mels, n_freq)
        wtrig = _trig_matrix(n_fft, self.win, self.n_freq_pad)     # (n_fft, 2*nfp)
        melt = np.zeros((self.n_freq_pad, n_mels), dtype=np.float64)
        melt[: self.n_freq, :] = self.melfb.T                      # zero rows kill pad bins
        self.wtrig = jnp.asarray(wtrig, dtype=jnp.float32)
        self.melt = jnp.asarray(melt, dtype=jnp.float32)

    def __call__(self, y):
        return self.forward(y)

    def forward(self, y):
        y = jnp.asarray(y, dtype=jnp.float32)
        squeeze = y.ndim == 1
        if squeeze:
            y = y[None]

        frames, t = _frame_signal(y, self.n_fft, self.hop)         # (B, T, n_fft)
        # Frame tile: single tile (mult of 8) for short clips, else 512 frames
        # (mult of 128 so mel-major output blocks stay legally/lane-dense tiled).
        if t <= 512:
            tile_t = ((t + 7) // 8) * 8
        else:
            tile_t = 512
        t_pad = ((t + tile_t - 1) // tile_t) * tile_t
        if t_pad != t:
            frames = jnp.pad(frames, ((0, 0), (0, t_pad - t), (0, 0)))

        sdb, pmin, pmax = _mel_db_pass(frames, self.wtrig, self.melt, tile_t, t)
        mx = jnp.max(pmax)                                          # global dB max
        mn = jnp.min(pmin)                                          # global dB min
        lo = jnp.maximum(mn, mx - _TOP_DB)                          # post-clip min
        inv = 1.0 / (mx - lo)
        out = _normalize_pass(sdb,
                              jnp.reshape(lo, (1, 1)).astype(jnp.float32),
                              jnp.reshape(inv, (1, 1)).astype(jnp.float32),
                              tile_t)                               # (B, n_mels, t_pad)
        out = out[:, :, :t]
        return out[0] if squeeze else out


# ------------------------------- reference ----------------------------------

def _reference_numpy(y, spec: LibrosaSpecTPU):
    """float64 numpy reference mirroring librosa mel-spec + power_to_db + norm."""
    y = np.asarray(y, dtype=np.float64)
    pad = spec.n_fft // 2
    ypad = np.pad(y, ((0, 0), (pad, pad)), mode="reflect")
    t = 1 + y.shape[1] // spec.hop
    idx = np.arange(t)[:, None] * spec.hop + np.arange(spec.n_fft)[None, :]
    frames = ypad[:, idx] * spec.win[None, None, :]
    stft = np.fft.rfft(frames, n=spec.n_fft, axis=-1)               # (B, T, n_freq)
    power = np.abs(stft) ** 2
    mel = np.einsum("btf,mf->bmt", power, spec.melfb)               # (B, n_mels, T)
    db = 10.0 * np.log10(np.maximum(mel, _AMIN))
    db = np.maximum(db, db.max() - _TOP_DB)
    return (db - db.min()) / (db.max() - db.min())


if __name__ == "__main__":
    key = jax.random.PRNGKey(0)
    B = 2
    hop = 320
    n_samples = hop * 15                       # -> 16 STFT frames
    y = jax.random.normal(key, (B, n_samples), dtype=jnp.float32)

    spec = LibrosaSpecTPU(mel=True)
    out = spec(y)
    out = jax.block_until_ready(out)

    ref = _reference_numpy(np.asarray(y), spec)
    assert out.shape == (B, spec.n_mels, 16), out.shape
    err = float(np.max(np.abs(np.asarray(out) - ref)))
    # Tolerance covers MXU bf16-pass rounding of the f32 DFT/mel matmuls.
    assert err < 2e-2, f"max abs err {err}"
    print("KERNEL_OK")
</pallas_src>

<mosaic_0001>
module attributes {stable_mosaic.version = 11 : i64} {
  func.func @_mel_db_kernel(%arg0: i32, %arg1: i32, %arg2: memref<1x16x1024xf32, #tpu.memory_space<vmem>>, %arg3: memref<1024x1280xf32, #tpu.memory_space<vmem>>, %arg4: memref<640x128xf32, #tpu.memory_space<vmem>>, %arg5: memref<1x128x16xf32, #tpu.memory_space<vmem>>, %arg6: memref<1x1x1x128xf32, #tpu.memory_space<vmem>>, %arg7: memref<1x1x1x128xf32, #tpu.memory_space<vmem>>) attributes {dimension_semantics = [#tpu.dimension_semantics<parallel>, #tpu.dimension_semantics<parallel>], iteration_bounds = array<i64: 2, 1>, scalar_prefetch = 0 : i64, scratch_operands = 0 : i64, tpu.core_type = #tpu.core_type<tc>, window_params = [{transform_indices = @transform_0, window_bounds = array<i64: 1, 16, 1024>}, {pipeline_mode = #tpu.pipeline_mode<synchronous>, transform_indices = @transform_1, window_bounds = array<i64: 1024, 1280>}, {pipeline_mode = #tpu.pipeline_mode<synchronous>, transform_indices = @transform_2, window_bounds = array<i64: 640, 128>}, {transform_indices = @transform_3, window_bounds = array<i64: 1, 128, 16>}, {transform_indices = @transform_4, window_bounds = array<i64: 1, 1, 1, 128>}, {transform_indices = @transform_5, window_bounds = array<i64: 1, 1, 1, 128>}]} {
    %c0 = arith.constant 0 : index
    %c0_0 = arith.constant 0 : index
    %c0_1 = arith.constant 0 : index
    %0 = vector.load %arg2[%c0, %c0_0, %c0_1] : memref<1x16x1024xf32, #tpu.memory_space<vmem>>, vector<1x16x1024xf32>
    %1 = vector.shape_cast %0 : vector<1x16x1024xf32> to vector<16x1024xf32>
    %c0_2 = arith.constant 0 : index
    %c0_3 = arith.constant 0 : index
    %2 = vector.load %arg3[%c0_2, %c0_3] : memref<1024x1280xf32, #tpu.memory_space<vmem>>, vector<1024x1280xf32>
    %cst = arith.constant dense<0.000000e+00> : vector<16x1280xf32>
    %3 = tpu.matmul %1, %2, %cst {dimension_numbers = #tpu.dot_dimension_numbers<[1], [0], [0], [1], [0, 0, 1, 1], [], []>} : vector<16x1024xf32>, vector<1024x1280xf32>, vector<16x1280xf32> -> vector<16x1280xf32>
    %4 = vector.extract_strided_slice %3 {offsets = [0, 0], sizes = [16, 640], strides = [1, 1]} : vector<16x1280xf32> to vector<16x640xf32>
    %5 = vector.extract_strided_slice %3 {offsets = [0, 640], sizes = [16, 640], strides = [1, 1]} : vector<16x1280xf32> to vector<16x640xf32>
    %6 = arith.mulf %4, %4 : vector<16x640xf32>
    %7 = arith.mulf %5, %5 : vector<16x640xf32>
    %8 = arith.addf %6, %7 : vector<16x640xf32>
    %c0_4 = arith.constant 0 : index
    %c0_5 = arith.constant 0 : index
    %9 = vector.load %arg4[%c0_4, %c0_5] : memref<640x128xf32, #tpu.memory_space<vmem>>, vector<640x128xf32>
    %cst_6 = arith.constant dense<0.000000e+00> : vector<16x128xf32>
    %10 = tpu.matmul %8, %9, %cst_6 {dimension_numbers = #tpu.dot_dimension_numbers<[1], [0], [0], [1], [0, 0, 1, 1], [], []>} : vector<16x640xf32>, vector<640x128xf32>, vector<16x128xf32> -> vector<16x128xf32>
    %cst_7 = arith.constant 1.000000e-10 : f32
    %11 = vector.broadcast %cst_7 : f32 to vector<16x128xf32>
    %12 = arith.maximumf %10, %11 : vector<16x128xf32>
    %13 = math.log %12 : vector<16x128xf32>
    %cst_8 = arith.constant 4.34294462 : f32
    %14 = vector.broadcast %cst_8 : f32 to vector<16x128xf32>
    %15 = arith.mulf %14, %13 : vector<16x128xf32>
    %c16_i32 = arith.constant 16 : i32
    %16 = arith.muli %arg1, %c16_i32 : i32
    %17 = tpu.iota {dimensions = array<i32: 0>} : vector<16x128xi32>
    %18 = vector.broadcast %16 : i32 to vector<16x128xi32>
    %19 = arith.addi %18, %17 : vector<16x128xi32>
    %c16_i32_9 = arith.constant 16 : i32
    %20 = vector.broadcast %c16_i32_9 : i32 to vector<16x128xi32>
    %21 = arith.cmpi slt, %19, %20 : vector<16x128xi32>
    %cst_10 = arith.constant 3.000000e+38 : f32
    %22 = vector.broadcast %cst_10 : f32 to vector<16x128xf32>
    %23 = arith.select %21, %15, %22 : vector<16x128xi1>, vector<16x128xf32>
    %cst_11 = arith.constant dense<0x7F800000> : vector<128xf32>
    %24 = vector.multi_reduction <minimumf>, %23, %cst_11 [0] : vector<16x128xf32> to vector<128xf32>
    %25 = vector.shape_cast %24 : vector<128xf32> to vector<1x128xf32>
    %c0_12 = arith.constant 0 : index
    %c0_13 = arith.constant 0 : index
    %c0_14 = arith.constant 0 : index
    %c0_15 = arith.constant 0 : index
    %26 = vector.load %arg6[%c0_12, %c0_13, %c0_14, %c0_15] : memref<1x1x1x128xf32, #tpu.memory_space<vmem>>, vector<1x1x1x128xf32>
    %27 = vector.shape_cast %26 : vector<1x1x1x128xf32> to vector<1x128xf32>
    %28 = vector.shape_cast %25 : vector<1x128xf32> to vector<1x1x1x128xf32>
    tpu.vector_store %arg6[%c0_12, %c0_13, %c0_14, %c0_15], %28 {strides = array<i32>} : memref<1x1x1x128xf32, #tpu.memory_space<vmem>>, vector<1x1x1x128xf32>,
    %cst_16 = arith.constant -3.000000e+38 : f32
    %29 = vector.broadcast %cst_16 : f32 to vector<16x128xf32>
    %30 = arith.select %21, %15, %29 : vector<16x128xi1>, vector<16x128xf32>
    %cst_17 = arith.constant dense<0xFF800000> : vector<128xf32>
    %31 = vector.multi_reduction <maximumf>, %30, %cst_17 [0] : vector<16x128xf32> to vector<128xf32>
    %32 = vector.shape_cast %31 : vector<128xf32> to vector<1x128xf32>
    %c0_18 = arith.constant 0 : index
    %c0_19 = arith.constant 0 : index
    %c0_20 = arith.constant 0 : index
    %c0_21 = arith.constant 0 : index
    %33 = vector.load %arg7[%c0_18, %c0_19, %c0_20, %c0_21] : memref<1x1x1x128xf32, #tpu.memory_space<vmem>>, vector<1x1x1x128xf32>
    %34 = vector.shape_cast %33 : vector<1x1x1x128xf32> to vector<1x128xf32>
    %35 = vector.shape_cast %32 : vector<1x128xf32> to vector<1x1x1x128xf32>
    tpu.vector_store %arg7[%c0_18, %c0_19, %c0_20, %c0_21], %35 {strides = array<i32>} : memref<1x1x1x128xf32, #tpu.memory_space<vmem>>, vector<1x1x1x128xf32>,
    %36 = tpu.transpose %15, [1, 0] : vector<16x128xf32> -> vector<128x16xf32>
    %c0_22 = arith.constant 0 : index
    %c0_23 = arith.constant 0 : index
    %c0_24 = arith.constant 0 : index
    %37 = vector.load %arg5[%c0_22, %c0_23, %c0_24] : memref<1x128x16xf32, #tpu.memory_space<vmem>>, vector<1x128x16xf32>
    %38 = vector.shape_cast %37 : vector<1x128x16xf32> to vector<128x16xf32>
    %39 = vector.shape_cast %36 : vector<128x16xf32> to vector<1x128x16xf32>
    tpu.vector_store %arg5[%c0_22, %c0_23, %c0_24], %39 {strides = array<i32>} : memref<1x128x16xf32, #tpu.memory_space<vmem>>, vector<1x128x16xf32>,
    return
  }
  func.func @transform_0(%arg0: i32, %arg1: i32) -> (i32, i32, i32) {
    %c0_i32 = arith.constant 0 : i32
    %c0_i32_0 = arith.constant 0 : i32
    return %arg0, %arg1, %c0_i32 : i32, i32, i32
  }
  func.func @transform_1(%arg0: i32, %arg1: i32) -> (i32, i32) {
    %c0_i32 = arith.constant 0 : i32
    %c0_i32_0 = arith.constant 0 : i32
    %c0_i32_1 = arith.constant 0 : i32
    return %c0_i32, %c0_i32_0 : i32, i32
  }
  func.func @transform_2(%arg0: i32, %arg1: i32) -> (i32, i32) {
    %c0_i32 = arith.constant 0 : i32
    %c0_i32_0 = arith.constant 0 : i32
    %c0_i32_1 = arith.constant 0 : i32
    return %c0_i32, %c0_i32_0 : i32, i32
  }
  func.func @transform_3(%arg0: i32, %arg1: i32) -> (i32, i32, i32) {
    %c0_i32 = arith.constant 0 : i32
    %c0_i32_0 = arith.constant 0 : i32
    return %arg0, %c0_i32, %arg1 : i32, i32, i32
  }
  func.func @transform_4(%arg0: i32, %arg1: i32) -> (i32, i32, i32, i32) {
    %c0_i32 = arith.constant 0 : i32
    %c0_i32_0 = arith.constant 0 : i32
    %c0_i32_1 = arith.constant 0 : i32
    return %arg0, %arg1, %c0_i32, %c0_i32_0 : i32, i32, i32, i32
  }
  func.func @transform_5(%arg0: i32, %arg1: i32) -> (i32, i32, i32, i32) {
    %c0_i32 = arith.constant 0 : i32
    %c0_i32_0 = arith.constant 0 : i32
    %c0_i32_1 = arith.constant 0 : i32
    return %arg0, %arg1, %c0_i32, %c0_i32_0 : i32, i32, i32, i32
  }
}

</mosaic_0001>

<llo_original>
// kernel: tpu_custom_call.1
$region0: #{tpu_custom_call.1}
  #allocation0 [shape = 'u32[]', space=smem, size = 0x4, offset = 0x4, fixed_abs, tag = 'smem constant byte address 0x4 - core index']
  #allocation1 [shape = 'u32[72,128]{1,0:T(1,128)}', space=vmem, size = 0x9000, scoped, tag = 'internal scratch']
  %s0 = inlined_call_operand.hbm [shape: f32[2,16,1024], index: 0, kind: input, shape index: {}]
  %s1 = inlined_call_operand.hbm [shape: f32[1024,1280], index: 1, kind: input, shape index: {}]
  %s2 = inlined_call_operand.hbm [shape: f32[640,128], index: 2, kind: input, shape index: {}]
  %s3 = inlined_call_operand.vmem [shape: f32[2,128,16], index: 3, kind: output, shape index: {0}]
  %s4 = inlined_call_operand.hbm [shape: f32[2,1,1,128], index: 4, kind: output, shape index: {1}]
  %s5 = inlined_call_operand.hbm [shape: f32[2,1,1,128], index: 5, kind: output, shape index: {2}]
  %6 = xla_tuple %s3, %s4, %s5
  %s7 = sld [smem:[#allocation0]]
  $region73: #{tpu_custom_call.1} parent=0
    _
  %s9 = ssub.s32 1, %s7
  %s10 = scalar_select 0, %s9, %s7
  $region1: #{tpu_custom_call.1} parent=0
    #allocation2 [shape = 'u8[131072]{0}', space=vmem, size = 0x20000, scoped, tag = 'input window, operand 0']
    #allocation3 [shape = 's32[2]{0}', space=sflag, size = 0x8, scoped, tag = 'scoped memory for tpu_custom_call.1']
    #allocation4 [shape = 's32[2]{0}', space=sflag, size = 0x8, scoped, tag = 'scoped memory for tpu_custom_call.1']
    #allocation5 [shape = 'u8[5242880]{0}', space=vmem, size = 0x500000, scoped, tag = 'input window, operand 1, single buffered']
    #allocation6 [shape = 's32[1]{0}', space=sflag, size = 0x4, scoped, tag = 'scoped memory for tpu_custom_call.1']
    #allocation7 [shape = 'u8[327680]{0}', space=vmem, size = 0x50000, scoped, tag = 'input window, operand 2, single buffered']
    #allocation8 [shape = 'u8[1024]{0}', space=vmem, size = 0x400, scoped, tag = 'output window, operand 1']
    #allocation9 [shape = 'u8[1024]{0}', space=vmem, size = 0x400, scoped, tag = 'output window, operand 2']
    #allocation10 [shape = 's32[2]{0}', space=sflag, size = 0x8, scoped, tag = 'scoped memory for tpu_custom_call.1']
    %11 = vsyncpa [#allocation3], 0
    %s12 = scalar_lea.sflag [#allocation3], 1
    %13 = vsyncpa %s12, 0
    %14 = vsyncpa [#allocation6], 0
    %15 = vsyncpa [#allocation4], 0
    %s16 = scalar_lea.sflag [#allocation4], 1
    %17 = vsyncpa %s16, 0
    %18 = vsyncpa [#allocation10], 0
    %s19 = scalar_lea.sflag [#allocation10], 1
    %20 = vsyncpa %s19, 0
    loop: start=0, step=1, limit=4
    $region2: #{tpu_custom_call.1} parent=1 // loop_pre_header
      _
    $region3: #{tpu_custom_call.1} parent=1 // loop_header
      %s22 = sphi 0, %s26
      %p23 = scmp.ge.s32.totalorder %s22, 4
      %s29 = sphi 0, %s41
      %s30 = sphi 0, %s37
      %s31 = sphi 0, %s29
      %s32 = sphi 0, %s30
      %s33 = sphi 0, %s31
      %s34 = sphi 0, %s32
      %s46 = sphi 0, %s48
      %s49 = sphi 0, %s46
      %s50 = sphi 0, %s49
      %s66 = sphi 0, %s50
      %s70 = sphi 0, %s70
      %s72 = sphi 0, %s70
      %s73 = sphi 0, %s72
      %s87 = sphi 0, %s73
      %s91 = sphi 0, %s91
      %s93 = sphi 0, %s91
      %s94 = sphi 0, %s93
      %s108 = sphi 0, %s94
      %s116 = sphi 0, %s118
      %s119 = sphi 0, %s116
      %s120 = sphi 0, %s119
      %s136 = sphi 0, %s120
      %s144 = sphi 0, %s146
      %s147 = sphi 0, %s144
      %s148 = sphi 0, %s147
      %s164 = sphi 0, %s148
      %s172 = sphi 0, %s174
      %s175 = sphi 0, %s172
      %s176 = sphi 0, %s175
      %s192 = sphi 0, %s176
    $region4: #{tpu_custom_call.1} parent=1 // loop_header_branch
      %25 = sbr.rel (%p23) target = $region8
    $region5: #{tpu_custom_call.1} parent=1 // loop_body
      %s27 = ssub.s32 %s22, 1
      %s28 = ssub.s32 %s22, 2
      %s35 = sadd.s32 1, %s30
      %p36 = scmp.ge.s32.totalorder %s35, 1
      %s37 = scalar_select %p36, 0, %s35
      %s38 = sadd.s32 1, %s29
      %s39 = scalar_select %p36, %s38, %s29
      %p40 = scmp.ge.s32.totalorder %s39, 2
      %s41 = scalar_select %p40, 0, %s39
      %s42 = ssub.s32 %s29, %s41
      %s43 = ssub.s32 %s30, %s37
      %s44 = sor.u32 %s42, %s43
      %p45 = scmp.eq.s32.totalorder %s44, 0
      %s47 = sadd.s32 %s46, 1
      %s48 = scalar_select %p45, %s46, %s47
      %p51 = pneg %p45
      %p52 = scmp.eq.s32.totalorder %s22, 1
      %p53 = por %p51, %p52
      %p54 = scmp.ne.s32.totalorder %s46, %s49
      %p55 = scmp.eq.s32.totalorder %s22, 0
      %p56 = por %p54, %p55
      %p57 = scmp.ne.s32.totalorder %s46, %s49
      %p58 = scmp.eq.s32.totalorder %s27, 1
      %p59 = por %p57, %p58
      %p60 = scmp.ne.s32.totalorder %s49, %s50
      %p61 = scmp.eq.s32.totalorder %s27, 0
      %p62 = por %p60, %p61
      %p63 = scmp.ne.s32.totalorder %s49, %s50
      %p64 = scmp.eq.s32.totalorder %s28, 1
      %p65 = por %p63, %p64
      %p67 = scmp.ne.s32.totalorder %s50, %s66
      %p68 = scmp.eq.s32.totalorder %s28, 0
      %p69 = por %p67, %p68
      %s71 = sadd.s32 %s70, 1
      %p74 = scmp.eq.s32.totalorder %s22, 1
      %p75 = scmp.ne.s32.totalorder %s70, %s72
      %p76 = scmp.eq.s32.totalorder %s22, 0
      %p77 = por %p75, %p76
      %p78 = scmp.ne.s32.totalorder %s70, %s72
      %p79 = scmp.eq.s32.totalorder %s27, 1
      %p80 = por %p78, %p79
      %p81 = scmp.ne.s32.totalorder %s72, %s73
      %p82 = scmp.eq.s32.totalorder %s27, 0
      %p83 = por %p81, %p82
      %p84 = scmp.ne.s32.totalorder %s72, %s73
      %p85 = scmp.eq.s32.totalorder %s28, 1
      %p86 = por %p84, %p85
      %p88 = scmp.ne.s32.totalorder %s73, %s87
      %p89 = scmp.eq.s32.totalorder %s28, 0
      %p90 = por %p88, %p89
      %s92 = sadd.s32 %s91, 1
      %p95 = scmp.eq.s32.totalorder %s22, 1
      %p96 = scmp.ne.s32.totalorder %s91, %s93
      %p97 = scmp.eq.s32.totalorder %s22, 0
      %p98 = por %p96, %p97
      %p99 = scmp.ne.s32.totalorder %s91, %s93
      %p100 = scmp.eq.s32.totalorder %s27, 1
      %p101 = por %p99, %p100
      %p102 = scmp.ne.s32.totalorder %s93, %s94
      %p103 = scmp.eq.s32.totalorder %s27, 0
      %p104 = por %p102, %p103
      %p105 = scmp.ne.s32.totalorder %s93, %s94
      %p106 = scmp.eq.s32.totalorder %s28, 1
      %p107 = por %p105, %p106
      %p109 = scmp.ne.s32.totalorder %s94, %s108
      %p110 = scmp.eq.s32.totalorder %s28, 0
      %p111 = por %p109, %p110
      %s112 = ssub.s32 %s29, %s41
      %s113 = ssub.s32 %s30, %s37
      %s114 = sor.u32 %s112, %s113
      %p115 = scmp.eq.s32.totalorder %s114, 0
      %s117 = sadd.s32 %s116, 1
      %s118 = scalar_select %p115, %s116, %s117
      %p121 = pneg %p115
      %p122 = scmp.eq.s32.totalorder %s22, 1
      %p123 = por %p121, %p122
      %p124 = scmp.ne.s32.totalorder %s116, %s119
      %p125 = scmp.eq.s32.totalorder %s22, 0
      %p126 = por %p124, %p125
      %p127 = scmp.ne.s32.totalorder %s116, %s119
      %p128 = scmp.eq.s32.totalorder %s27, 1
      %p129 = por %p127, %p128
      %p130 = scmp.ne.s32.totalorder %s119, %s120
      %p131 = scmp.eq.s32.totalorder %s27, 0
      %p132 = por %p130, %p131
      %p133 = scmp.ne.s32.totalorder %s119, %s120
      %p134 = scmp.eq.s32.totalorder %s28, 1
      %p135 = por %p133, %p134
      %p137 = scmp.ne.s32.totalorder %s120, %s136
      %p138 = scmp.eq.s32.totalorder %s28, 0
      %p139 = por %p137, %p138
      %s140 = ssub.s32 %s29, %s41
      %s141 = ssub.s32 %s30, %s37
      %s142 = sor.u32 %s140, %s141
      %p143 = scmp.eq.s32.totalorder %s142, 0
      %s145 = sadd.s32 %s144, 1
      %s146 = scalar_select %p143, %s144, %s145
      %p149 = pneg %p143
      %p150 = scmp.eq.s32.totalorder %s22, 1
      %p151 = por %p149, %p150
      %p152 = scmp.ne.s32.totalorder %s144, %s147
      %p153 = scmp.eq.s32.totalorder %s22, 0
      %p154 = por %p152, %p153
      %p155 = scmp.ne.s32.totalorder %s144, %s147
      %p156 = scmp.eq.s32.totalorder %s27, 1
      %p157 = por %p155, %p156
      %p158 = scmp.ne.s32.totalorder %s147, %s148
      %p159 = scmp.eq.s32.totalorder %s27, 0
      %p160 = por %p158, %p159
      %p161 = scmp.ne.s32.totalorder %s147, %s148
      %p162 = scmp.eq.s32.totalorder %s28, 1
      %p163 = por %p161, %p162
      %p165 = scmp.ne.s32.totalorder %s148, %s164
      %p166 = scmp.eq.s32.totalorder %s28, 0
      %p167 = por %p165, %p166
      %s168 = ssub.s32 %s29, %s41
      %s169 = ssub.s32 %s30, %s37
      %s170 = sor.u32 %s168, %s169
      %p171 = scmp.eq.s32.totalorder %s170, 0
      %s173 = sadd.s32 %s172, 1
      %s174 = scalar_select %p171, %s172, %s173
      %p177 = pneg %p171
      %p178 = scmp.eq.s32.totalorder %s22, 1
      %p179 = por %p177, %p178
      %p180 = scmp.ne.s32.totalorder %s172, %s175
      %p181 = scmp.eq.s32.totalorder %s22, 0
      %p182 = por %p180, %p181
      %p183 = scmp.ne.s32.totalorder %s172, %s175
      %p184 = scmp.eq.s32.totalorder %s27, 1
      %p185 = por %p183, %p184
      %p186 = scmp.ne.s32.totalorder %s175, %s176
      %p187 = scmp.eq.s32.totalorder %s27, 0
      %p188 = por %p186, %p187
      %p189 = scmp.ne.s32.totalorder %s175, %s176
      %p190 = scmp.eq.s32.totalorder %s28, 1
      %p191 = por %p189, %p190
      %p193 = scmp.ne.s32.totalorder %s176, %s192
      %p194 = scmp.eq.s32.totalorder %s28, 0
      %p195 = por %p193, %p194
      %p196 = scmp.le.s32.totalorder 1, %s22
      %p197 = scmp.lt.s32.totalorder %s22, 3
      %p198 = pnand %p196, %p197
      %p199 = pneg %p198
      // Predicated region
      $region9: #{tpu_custom_call.1} parent=5 // pred_check
        _
      $region10: #{tpu_custom_call.1} parent=5 // pred_check_branch
        %201 = sbr.rel (%p198) target = $region12
      $region11: #{tpu_custom_call.1} parent=5 // pred_region
        %s202 = ssub.s32 %s22, 1
        // Predicated region
        $region13: #{tpu_custom_call.1} parent=11 // pred_check
          %p203 = pneg %p83
        $region14: #{tpu_custom_call.1} parent=11 // pred_check_branch
          %205 = sbr.rel (%p203) target = $region16
        $region15: #{tpu_custom_call.1} parent=11 // pred_region
          %207 = vsyncadd [#allocation6], 0
          %s208 = sshll.u32 %s1, 4
          %s209 = int_to_ptr.hbm [resolvable:$true] %s208
          %s210 = sshll.u32 [#allocation5], 4
          %s211 = int_to_ptr.vmem [resolvable:$true] %s210
          %216 = dma.hbm_to_vmem [thread:$0]  %s209, 163840, %s211, [#allocation6], 1280, 1280, 80
        $region16: #{tpu_custom_call.1} parent=11 // pred_fallthru
          _
        // Predicated region
        $region17: #{tpu_custom_call.1} parent=11 // pred_check
          %p217 = pneg %p104
        $region18: #{tpu_custom_call.1} parent=11 // pred_check_branch
          %219 = sbr.rel (%p217) target = $region20
        $region19: #{tpu_custom_call.1} parent=11 // pred_region
          %221 = vsyncadd [#allocation6], 0
          %s222 = sshll.u32 %s2, 4
          %s223 = int_to_ptr.hbm [resolvable:$true] %s222
          %s224 = sshll.u32 [#allocation7], 4
          %s225 = int_to_ptr.vmem [resolvable:$true] %s224
          %230 = dma.hbm_to_vmem [thread:$0]  %s223, 10240, %s225, [#allocation6], 128, 128, 8
        $region20: #{tpu_custom_call.1} parent=11 // pred_fallthru
          _
      $region12: #{tpu_custom_call.1} parent=5 // pred_fallthru
        _
      %p231 = scmp.lt.s32.totalorder %s22, 2
      // Predicated region
      $region21: #{tpu_custom_call.1} parent=5 // pred_check
        %p232 = pneg %p231
      $region22: #{tpu_custom_call.1} parent=5 // pred_check_branch
        %234 = sbr.rel (%p232) target = $region24
      $region23: #{tpu_custom_call.1} parent=5 // pred_region
        // Predicated region
        $region25: #{tpu_custom_call.1} parent=23 // pred_check
          %p235 = pneg %p56
        $region26: #{tpu_custom_call.1} parent=23 // pred_check_branch
          %237 = sbr.rel (%p235) target = $region28
        $region27: #{tpu_custom_call.1} parent=23 // pred_region
          %s238 = sand.u32 %s46, 1
          %s239 = scalar_lea.sflag [#allocation3], %s238
          %s240 = sand.u32 %s46, 1
          %s241 = smul.addr %s240, 128
          %s242 = scalar_lea.vmem [#allocation2], %s241
          %s243 = smul.u32 2, %s30
          %245 = vsyncadd %s239, 0
          %s246 = smul.addr %s243, 8
          %s247 = smul.addr %s29, 16
          %s248 = sadd.s32 %s246, %s247
          %s249 = smul.addr %s248, 8
          %s250 = scalar_lea.hbm %s0, %s249
          %s251 = sshll.u32 %s250, 4
          %s252 = int_to_ptr.hbm [resolvable:$true] %s251
          %s253 = sshll.u32 %s242, 4
          %s254 = int_to_ptr.vmem [resolvable:$true] %s253
          %259 = dma.hbm_to_vmem [thread:$0]  %s252, 2048, %s254, %s239, 1024, 1024, 64
        $region28: #{tpu_custom_call.1} parent=23 // pred_fallthru
          _
      $region24: #{tpu_custom_call.1} parent=5 // pred_fallthru
        _
      %p260 = scmp.le.s32.totalorder 1, %s22
      %p261 = scmp.lt.s32.totalorder %s22, 3
      %p262 = pnand %p260, %p261
      %p263 = pneg %p262
      // Predicated region
      $region29: #{tpu_custom_call.1} parent=5 // pred_check
        _
      $region30: #{tpu_custom_call.1} parent=5 // pred_check_branch
        %265 = sbr.rel (%p262) target = $region32
      $region31: #{tpu_custom_call.1} parent=5 // pred_region
        %s266 = ssub.s32 %s22, 1
        %s267 = sand.u32 %s49, 1
        %s268 = scalar_lea.sflag [#allocation3], %s267
        %s269 = sand.u32 %s49, 1
        %s270 = smul.addr %s269, 128
        %s271 = scalar_lea.vmem [#allocation2], %s270
        // Predicated region
        $region33: #{tpu_custom_call.1} parent=31 // pred_check
          %p272 = pneg %p62
        $region34: #{tpu_custom_call.1} parent=31 // pred_check_branch
          %274 = sbr.rel (%p272) target = $region36
        $region35: #{tpu_custom_call.1} parent=31 // pred_region
          %276 = dma.done %s268, 2048
        $region36: #{tpu_custom_call.1} parent=31 // pred_fallthru
          _
        // Predicated region
        $region37: #{tpu_custom_call.1} parent=31 // pred_check
          %p277 = pneg %p83
        $region38: #{tpu_custom_call.1} parent=31 // pred_check_branch
          %279 = sbr.rel (%p277) target = $region40
        $region39: #{tpu_custom_call.1} parent=31 // pred_region
          %281 = dma.done [#allocation6], 163840
        $region40: #{tpu_custom_call.1} parent=31 // pred_fallthru
          _
        // Predicated region
        $region41: #{tpu_custom_call.1} parent=31 // pred_check
          %p282 = pneg %p104
        $region42: #{tpu_custom_call.1} parent=31 // pred_check_branch
          %284 = sbr.rel (%p282) target = $region44
        $region43: #{tpu_custom_call.1} parent=31 // pred_region
          %286 = dma.done [#allocation6], 10240
        $region44: #{tpu_custom_call.1} parent=31 // pred_fallthru
          _
        %s287 = sand.u32 %s49, 1
        %s288 = scalar_lea.sflag [#allocation3], %s287
        %s289 = sand.u32 %s49, 1
        %s290 = smul.addr %s289, 128
        %s291 = scalar_lea.vmem [#allocation2], %s290
        %p292 = pneg %p62
        %p293 = pneg %p59
        %p294 = pneg %p83
        %p295 = pneg %p80
        %p296 = pneg %p104
        %p297 = pneg %p101
        %p298 = pneg %p132
        %p299 = pneg %p129
        %p300 = scmp.lt.s32.totalorder %s31, 1
        %s301 = scalar_select %p300, %s31, 1
        %p302 = scmp.lt.s32.totalorder %s32, 0
        %s303 = scalar_select %p302, %s32, 0
        %s304 = smul.addr %s301, 16
        %s305 = sadd.s32 %s303, %s304
        %s306 = smul.addr %s305, 8
        %s307 = scalar_lea.vmem %s3, %s306
        %p308 = pneg %p160
        %p309 = pneg %p157
        %s310 = sand.u32 %s147, 1
        %s311 = scalar_lea.sflag [#allocation4], %s310
        %s312 = sand.u32 %s147, 1
        %s313 = scalar_lea.vmem [#allocation8], %s312
        %p314 = pneg %p188
        %p315 = pneg %p185
        %s316 = sand.u32 %s175, 1
        %s317 = scalar_lea.sflag [#allocation10], %s316
        %s318 = sand.u32 %s175, 1
        %s319 = scalar_lea.vmem [#allocation9], %s318
        %s320 = smul.u32 2, %s32
        %p321 = scmp.lt.s32.totalorder %s31, 1
        %s322 = scalar_select %p321, %s31, 1
        %p323 = scmp.lt.s32.totalorder %s32, 0
        %s324 = scalar_select %p323, %s32, 0
        %s325 = smul.addr %s322, 16
        %s326 = sadd.s32 %s324, %s325
        %s327 = smul.addr %s326, 8
        %s328 = scalar_lea.vmem %s3, %s327
        %v329 = vld [vmem:[%s271] sm:$0xff]
        %v330 = vld [vmem:[%s271 + $0x8] sm:$0xff]
        %v331 = vld [vmem:[%s271 + $0x10] sm:$0xff]
        %v332 = vld [vmem:[%s271 + $0x18] sm:$0xff]
        %v333 = vld [vmem:[%s271 + $0x20] sm:$0xff]
        %v334 = vld [vmem:[%s271 + $0x28] sm:$0xff]
        %v335 = vld [vmem:[%s271 + $0x30] sm:$0xff]
        %v336 = vld [vmem:[%s271 + $0x38] sm:$0xff]
        %v337 = vld [vmem:[%s271 + $0x40] sm:$0xff]
        %v338 = vld [vmem:[%s271 + $0x48] sm:$0xff]
        %v339 = vld [vmem:[%s271 + $0x50] sm:$0xff]
        %v340 = vld [vmem:[%s271 + $0x58] sm:$0xff]
        %v341 = vld [vmem:[%s271 + $0x60] sm:$0xff]
        %v342 = vld [vmem:[%s271 + $0x68] sm:$0xff]
        %v343 = vld [vmem:[%s271 + $0x70] sm:$0xff]
        %v344 = vld [vmem:[%s271 + $0x78] sm:$0xff]
        %v345 = vld [vmem:[#allocation5] sm:$0xff]
        %v346 = vld [vmem:[#allocation5 + $0x8] sm:$0xff]
        %v347 = vld [vmem:[#allocation5 + $0x10] sm:$0xff]
        %v348 = vld [vmem:[#allocation5 + $0x18] sm:$0xff]
        %v349 = vld [vmem:[#allocation5 + $0x20] sm:$0xff]
        %v350 = vld [vmem:[#allocation5 + $0x28] sm:$0xff]
        %v351 = vld [vmem:[#allocation5 + $0x30] sm:$0xff]
        %v352 = vld [vmem:[#allocation5 + $0x38] sm:$0xff]
        %v353 = vld [vmem:[#allocation5 + $0x40] sm:$0xff]
        %v354 = vld [vmem:[#allocation5 + $0x48] sm:$0xff]
        %v355 = vld [vmem:[#allocation5 + $0x50] sm:$0xff]
        %v356 = vld [vmem:[#allocation5 + $0x58] sm:$0xff]
        %v357 = vld [vmem:[#allocation5 + $0x60] sm:$0xff]
        %v358 = vld [vmem:[#allocation5 + $0x68] sm:$0xff]
        %v359 = vld [vmem:[#allocation5 + $0x70] sm:$0xff]
        %v360 = vld [vmem:[#allocation5 + $0x78] sm:$0xff]
        %v361 = vld [vmem:[#allocation5 + $0x80] sm:$0xff]
        %v362 = vld [vmem:[#allocation5 + $0x88] sm:$0xff]
        %v363 = vld [vmem:[#allocation5 + $0x90] sm:$0xff]
        %v364 = vld [vmem:[#allocation5 + $0x98] sm:$0xff]
        %v365 = vld [vmem:[#allocation5 + $0xa0] sm:$0xff]
        %v366 = vld [vmem:[#allocation5 + $0xa8] sm:$0xff]
        %v367 = vld [vmem:[#allocation5 + $0xb0] sm:$0xff]
        %v368 = vld [vmem:[#allocation5 + $0xb8] sm:$0xff]
        %v369 = vld [vmem:[#allocation5 + $0xc0] sm:$0xff]
        %v370 = vld [vmem:[#allocation5 + $0xc8] sm:$0xff]
        %v371 = vld [vmem:[#allocation5 + $0xd0] sm:$0xff]
        %v372 = vld [vmem:[#allocation5 + $0xd8] sm:$0xff]
        %v373 = vld [vmem:[#allocation5 + $0xe0] sm:$0xff]
        %v374 = vld [vmem:[#allocation5 + $0xe8] sm:$0xff]
        %v375 = vld [vmem:[#allocation5 + $0xf0] sm:$0xff]
        %v376 = vld [vmem:[#allocation5 + $0xf8] sm:$0xff]
        %v377 = vld [vmem:[#allocation5 + $0x100] sm:$0xff]
        %v378 = vld [vmem:[#allocation5 + $0x108] sm:$0xff]
        %v379 = vld [vmem:[#allocation5 + $0x110] sm:$0xff]
        %v380 = vld [vmem:[#allocation5 + $0x118] sm:$0xff]
        %v381 = vld [vmem:[#allocation5 + $0x120] sm:$0xff]
        %v382 = vld [vmem:[#allocation5 + $0x128] sm:$0xff]
        %v383 = vld [vmem:[#allocation5 + $0x130] sm:$0xff]
        %v384 = vld [vmem:[#allocation5 + $0x138] sm:$0xff]
        %v385 = vld [vmem:[#allocation5 + $0x140] sm:$0xff]
        %v386 = vld [vmem:[#allocation5 + $0x148] sm:$0xff]
        %v387 = vld [vmem:[#allocation5 + $0x150] sm:$0xff]
        %v388 = vld [vmem:[#allocation5 + $0x158] sm:$0xff]
        %v389 = vld [vmem:[#allocation5 + $0x160] sm:$0xff]
        %v390 = vld [vmem:[#allocation5 + $0x168] sm:$0xff]
        %v391 = vld [vmem:[#allocation5 + $0x170] sm:$0xff]
        %v392 = vld [vmem:[#allocation5 + $0x178] sm:$0xff]
        %v393 = vld [vmem:[#allocation5 + $0x180] sm:$0xff]
        %v394 = vld [vmem:[#allocation5 + $0x188] sm:$0xff]
        %v395 = vld [vmem:[#allocation5 + $0x190] sm:$0xff]
        %v396 = vld [vmem:[#allocation5 + $0x198] sm:$0xff]
        %v397 = vld [vmem:[#allocation5 + $0x1a0] sm:$0xff]
        %v398 = vld [vmem:[#allocation5 + $0x1a8] sm:$0xff]
        %v399 = vld [vmem:[#allocation5 + $0x1b0] sm:$0xff]
        %v400 = vld [vmem:[#allocation5 + $0x1b8] sm:$0xff]
        %v401 = vld [vmem:[#allocation5 + $0x1c0] sm:$0xff]
        %v402 = vld [vmem:[#allocation5 + $0x1c8] sm:$0xff]
        %v403 = vld [vmem:[#allocation5 + $0x1d0] sm:$0xff]
        %v404 = vld [vmem:[#allocation5 + $0x1d8] sm:$0xff]
        %v405 = vld [vmem:[#allocation5 + $0x1e0] sm:$0xff]
        %v406 = vld [vmem:[#allocation5 + $0x1e8] sm:$0xff]
        %v407 = vld [vmem:[#allocation5 + $0x1f0] sm:$0xff]
        %v408 = vld [vmem:[#allocation5 + $0x1f8] sm:$0xff]
        %v409 = vld [vmem:[#allocation5 + $0x200] sm:$0xff]
        %v410 = vld [vmem:[#allocation5 + $0x208] sm:$0xff]
        %v411 = vld [vmem:[#allocation5 + $0x210] sm:$0xff]
        %v412 = vld [vmem:[#allocation5 + $0x218] sm:$0xff]
        %v413 = vld [vmem:[#allocation5 + $0x220] sm:$0xff]
        %v414 = vld [vmem:[#allocation5 + $0x228] sm:$0xff]
        %v415 = vld [vmem:[#allocation5 + $0x230] sm:$0xff]
        %v416 = vld [vmem:[#allocation5 + $0x238] sm:$0xff]
        %v417 = vld [vmem:[#allocation5 + $0x240] sm:$0xff]
        %v418 = vld [vmem:[#allocation5 + $0x248] sm:$0xff]
        %v419 = vld [vmem:[#allocation5 + $0x250] sm:$0xff]
        %v420 = vld [vmem:[#allocation5 + $0x258] sm:$0xff]
        %v421 = vld [vmem:[#allocation5 + $0x260] sm:$0xff]
        %v422 = vld [vmem:[#allocation5 + $0x268] sm:$0xff]
        %v423 = vld [vmem:[#allocation5 + $0x270] sm:$0xff]
        %v424 = vld [vmem:[#allocation5 + $0x278] sm:$0xff]
        %v425 = vld [vmem:[#allocation5 + $0x280] sm:$0xff]
        %v426 = vld [vmem:[#allocation5 + $0x288] sm:$0xff]
        %v427 = vld [vmem:[#allocation5 + $0x290] sm:$0xff]
        %v428 = vld [vmem:[#allocation5 + $0x298] sm:$0xff]
        %v429 = vld [vmem:[#allocation5 + $0x2a0] sm:$0xff]
        %v430 = vld [vmem:[#allocation5 + $0x2a8] sm:$0xff]
        %v431 = vld [vmem:[#allocation5 + $0x2b0] sm:$0xff]
        %v432 = vld [vmem:[#allocation5 + $0x2b8] sm:$0xff]
        %v433 = vld [vmem:[#allocation5 + $0x2c0] sm:$0xff]
        %v434 = vld [vmem:[#allocation5 + $0x2c8] sm:$0xff]
        %v435 = vld [vmem:[#allocation5 + $0x2d0] sm:$0xff]
        %v436 = vld [vmem:[#allocation5 + $0x2d8] sm:$0xff]
        %v437 = vld [vmem:[#allocation5 + $0x2e0] sm:$0xff]
        %v438 = vld [vmem:[#allocation5 + $0x2e8] sm:$0xff]
        %v439 = vld [vmem:[#allocation5 + $0x2f0] sm:$0xff]
        %v440 = vld [vmem:[#allocation5 + $0x2f8] sm:$0xff]
        %v441 = vld [vmem:[#allocation5 + $0x300] sm:$0xff]
        %v442 = vld [vmem:[#allocation5 + $0x308] sm:$0xff]
        %v443 = vld [vmem:[#allocation5 + $0x310] sm:$0xff]
        %v444 = vld [vmem:[#allocation5 + $0x318] sm:$0xff]
        %v445 = vld [vmem:[#allocation5 + $0x320] sm:$0xff]
        %v446 = vld [vmem:[#allocation5 + $0x328] sm:$0xff]
        %v447 = vld [vmem:[#allocation5 + $0x330] sm:$0xff]
        %v448 = vld [vmem:[#allocation5 + $0x338] sm:$0xff]
        %v449 = vld [vmem:[#allocation5 + $0x340] sm:$0xff]
        %v450 = vld [vmem:[#allocation5 + $0x348] sm:$0xff]
        %v451 = vld [vmem:[#allocation5 + $0x350] sm:$0xff]
        %v452 = vld [vmem:[#allocation5 + $0x358] sm:$0xff]
        %v453 = vld [vmem:[#allocation5 + $0x360] sm:$0xff]
        %v454 = vld [vmem:[#allocation5 + $0x368] sm:$0xff]
        %v455 = vld [vmem:[#allocation5 + $0x370] sm:$0xff]
        %v456 = vld [vmem:[#allocation5 + $0x378] sm:$0xff]
        %v457 = vld [vmem:[#allocation5 + $0x380] sm:$0xff]
        %v458 = vld [vmem:[#allocation5 + $0x388] sm:$0xff]
        %v459 = vld [vmem:[#allocation5 + $0x390] sm:$0xff]
        %v460 = vld [vmem:[#allocation5 + $0x398] sm:$0xff]
        %v461 = vld [vmem:[#allocation5 + $0x3a0] sm:$0xff]
        %v462 = vld [vmem:[#allocation5 + $0x3a8] sm:$0xff]
        %v463 = vld [vmem:[#allocation5 + $0x3b0] sm:$0xff]
        %v464 = vld [vmem:[#allocation5 + $0x3b8] sm:$0xff]
        %v465 = vld [vmem:[#allocation5 + $0x3c0] sm:$0xff]
        %v466 = vld [vmem:[#allocation5 + $0x3c8] sm:$0xff]
        %v467 = vld [vmem:[#allocation5 + $0x3d0] sm:$0xff]
        %v468 = vld [vmem:[#allocation5 + $0x3d8] sm:$0xff]
        %v469 = vld [vmem:[#allocation5 + $0x3e0] sm:$0xff]
        %v470 = vld [vmem:[#allocation5 + $0x3e8] sm:$0xff]
        %v471 = vld [vmem:[#allocation5 + $0x3f0] sm:$0xff]
        %v472 = vld [vmem:[#allocation5 + $0x3f8] sm:$0xff]
        %v473 = vld [vmem:[#allocation5 + $0x400] sm:$0xff]
        %v474 = vld [vmem:[#allocation5 + $0x408] sm:$0xff]
        %v475 = vld [vmem:[#allocation5 + $0x410] sm:$0xff]
        %v476 = vld [vmem:[#allocation5 + $0x418] sm:$0xff]
        %v477 = vld [vmem:[#allocation5 + $0x420] sm:$0xff]
        %v478 = vld [vmem:[#allocation5 + $0x428] sm:$0xff]
        %v479 = vld [vmem:[#allocation5 + $0x430] sm:$0xff]
        %v480 = vld [vmem:[#allocation5 + $0x438] sm:$0xff]
        %v481 = vld [vmem:[#allocation5 + $0x440] sm:$0xff]
        %v482 = vld [vmem:[#allocation5 + $0x448] sm:$0xff]
        %v483 = vld [vmem:[#allocation5 + $0x450] sm:$0xff]
        %v484 = vld [vmem:[#allocation5 + $0x458] sm:$0xff]
        %v485 = vld [vmem:[#allocation5 + $0x460] sm:$0xff]
        %v486 = vld [vmem:[#allocation5 + $0x468] sm:$0xff]
        %v487 = vld [vmem:[#allocation5 + $0x470] sm:$0xff]
        %v488 = vld [vmem:[#allocation5 + $0x478] sm:$0xff]
        %v489 = vld [vmem:[#allocation5 + $0x480] sm:$0xff]
        %v490 = vld [vmem:[#allocation5 + $0x488] sm:$0xff]
        %v491 = vld [vmem:[#allocation5 + $0x490] sm:$0xff]
        %v492 = vld [vmem:[#allocation5 + $0x498] sm:$0xff]
        %v493 = vld [vmem:[#allocation5 + $0x4a0] sm:$0xff]
        %v494 = vld [vmem:[#allocation5 + $0x4a8] sm:$0xff]
        %v495 = vld [vmem:[#allocation5 + $0x4b0] sm:$0xff]
        %v496 = vld [vmem:[#allocation5 + $0x4b8] sm:$0xff]
        %v497 = vld [vmem:[#allocation5 + $0x4c0] sm:$0xff]
        %v498 = vld [vmem:[#allocation5 + $0x4c8] sm:$0xff]
        %v499 = vld [vmem:[#allocation5 + $0x4d0] sm:$0xff]
        %v500 = vld [vmem:[#allocation5 + $0x4d8] sm:$0xff]
        %v501 = vld [vmem:[#allocation5 + $0x4e0] sm:$0xff]
        %v502 = vld [vmem:[#allocation5 + $0x4e8] sm:$0xff]
        %v503 = vld [vmem:[#allocation5 + $0x4f0] sm:$0xff]
        %v504 = vld [vmem:[#allocation5 + $0x4f8] sm:$0xff]
        %v505 = vld [vmem:[#allocation5 + $0x500] sm:$0xff]
        %v506 = vld [vmem:[#allocation5 + $0x508] sm:$0xff]
        %v507 = vld [vmem:[#allocation5 + $0x510] sm:$0xff]
        %v508 = vld [vmem:[#allocation5 + $0x518] sm:$0xff]
        %v509 = vld [vmem:[#allocation5 + $0x520] sm:$0xff]
        %v510 = vld [vmem:[#allocation5 + $0x528] sm:$0xff]
        %v511 = vld [vmem:[#allocation5 + $0x530] sm:$0xff]
        %v512 = vld [vmem:[#allocation5 + $0x538] sm:$0xff]
        %v513 = vld [vmem:[#allocation5 + $0x540] sm:$0xff]
        %v514 = vld [vmem:[#allocation5 + $0x548] sm:$0xff]
        %v515 = vld [vmem:[#allocation5 + $0x550] sm:$0xff]
        %v516 = vld [vmem:[#allocation5 + $0x558] sm:$0xff]
        %v517 = vld [vmem:[#allocation5 + $0x560] sm:$0xff]
        %v518 = vld [vmem:[#allocation5 + $0x568] sm:$0xff]
        %v519 = vld [vmem:[#allocation5 + $0x570] sm:$0xff]
        %v520 = vld [vmem:[#allocation5 + $0x578] sm:$0xff]
        %v521 = vld [vmem:[#allocation5 + $0x580] sm:$0xff]
        %v522 = vld [vmem:[#allocation5 + $0x588] sm:$0xff]
        %v523 = vld [vmem:[#allocation5 + $0x590] sm:$0xff]
        %v524 = vld [vmem:[#allocation5 + $0x598] sm:$0xff]
        %v525 = vld [vmem:[#allocation5 + $0x5a0] sm:$0xff]
        %v526 = vld [vmem:[#allocation5 + $0x5a8] sm:$0xff]
        %v527 = vld [vmem:[#allocation5 + $0x5b0] sm:$0xff]
        %v528 = vld [vmem:[#allocation5 + $0x5b8] sm:$0xff]
        %v529 = vld [vmem:[#allocation5 + $0x5c0] sm:$0xff]
        %v530 = vld [vmem:[#allocation5 + $0x5c8] sm:$0xff]
        %v531 = vld [vmem:[#allocation5 + $0x5d0] sm:$0xff]
        %v532 = vld [vmem:[#allocation5 + $0x5d8] sm:$0xff]
        %v533 = vld [vmem:[#allocation5 + $0x5e0] sm:$0xff]
        %v534 = vld [vmem:[#allocation5 + $0x5e8] sm:$0xff]
        %v535 = vld [vmem:[#allocation5 + $0x5f0] sm:$0xff]
        %v536 = vld [vmem:[#allocation5 + $0x5f8] sm:$0xff]
        %v537 = vld [vmem:[#allocation5 + $0x600] sm:$0xff]
        %v538 = vld [vmem:[#allocation5 + $0x608] sm:$0xff]
        %v539 = vld [vmem:[#allocation5 + $0x610] sm:$0xff]
        %v540 = vld [vmem:[#allocation5 + $0x618] sm:$0xff]
        %v541 = vld [vmem:[#allocation5 + $0x620] sm:$0xff]
        %v542 = vld [vmem:[#allocation5 + $0x628] sm:$0xff]
        %v543 = vld [vmem:[#allocation5 + $0x630] sm:$0xff]
        %v544 = vld [vmem:[#allocation5 + $0x638] sm:$0xff]
        %v545 = vld [vmem:[#allocation5 + $0x640] sm:$0xff]
        %v546 = vld [vmem:[#allocation5 + $0x648] sm:$0xff]
        %v547 = vld [vmem:[#allocation5 + $0x650] sm:$0xff]
        %v548 = vld [vmem:[#allocation5 + $0x658] sm:$0xff]
        %v549 = vld [vmem:[#allocation5 + $0x660] sm:$0xff]
        %v550 = vld [vmem:[#allocation5 + $0x668] sm:$0xff]
        %v551 = vld [vmem:[#allocation5 + $0x670] sm:$0xff]
        %v552 = vld [vmem:[#allocation5 + $0x678] sm:$0xff]
        %v553 = vld [vmem:[#allocation5 + $0x680] sm:$0xff]
        %v554 = vld [vmem:[#allocation5 + $0x688] sm:$0xff]
        %v555 = vld [vmem:[#allocation5 + $0x690] sm:$0xff]
        %v556 = vld [vmem:[#allocation5 + $0x698] sm:$0xff]
        %v557 = vld [vmem:[#allocation5 + $0x6a0] sm:$0xff]
        %v558 = vld [vmem:[#allocation5 + $0x6a8] sm:$0xff]
        %v559 = vld [vmem:[#allocation5 + $0x6b0] sm:$0xff]
        %v560 = vld [vmem:[#allocation5 + $0x6b8] sm:$0xff]
        %v561 = vld [vmem:[#allocation5 + $0x6c0] sm:$0xff]
        %v562 = vld [vmem:[#allocation5 + $0x6c8] sm:$0xff]
        %v563 = vld [vmem:[#allocation5 + $0x6d0] sm:$0xff]
        %v564 = vld [vmem:[#allocation5 + $0x6d8] sm:$0xff]
        %v565 = vld [vmem:[#allocation5 + $0x6e0] sm:$0xff]
        %v566 = vld [vmem:[#allocation5 + $0x6e8] sm:$0xff]
        %v567 = vld [vmem:[#allocation5 + $0x6f0] sm:$0xff]
        %v568 = vld [vmem:[#allocation5 + $0x6f8] sm:$0xff]
        %v569 = vld [vmem:[#allocation5 + $0x700] sm:$0xff]
        %v570 = vld [vmem:[#allocation5 + $0x708] sm:$0xff]
        %v571 = vld [vmem:[#allocation5 + $0x710] sm:$0xff]
        %v572 = vld [vmem:[#allocation5 + $0x718] sm:$0xff]
        %v573 = vld [vmem:[#allocation5 + $0x720] sm:$0xff]
        %v574 = vld [vmem:[#allocation5 + $0x728] sm:$0xff]
        %v575 = vld [vmem:[#allocation5 + $0x730] sm:$0xff]
        %v576 = vld [vmem:[#allocation5 + $0x738] sm:$0xff]
        %v577 = vld [vmem:[#allocation5 + $0x740] sm:$0xff]
        %v578 = vld [vmem:[#allocation5 + $0x748] sm:$0xff]
        %v579 = vld [vmem:[#allocation5 + $0x750] sm:$0xff]
        %v580 = vld [vmem:[#allocation5 + $0x758] sm:$0xff]
        %v581 = vld [vmem:[#allocation5 + $0x760] sm:$0xff]
        %v582 = vld [vmem:[#allocation5 + $0x768] sm:$0xff]
        %v583 = vld [vmem:[#allocation5 + $0x770] sm:$0xff]
        %v584 = vld [vmem:[#allocation5 + $0x778] sm:$0xff]
        %v585 = vld [vmem:[#allocation5 + $0x780] sm:$0xff]
        %v586 = vld [vmem:[#allocation5 + $0x788] sm:$0xff]
        %v587 = vld [vmem:[#allocation5 + $0x790] sm:$0xff]
        %v588 = vld [vmem:[#allocation5 + $0x798] sm:$0xff]
        %v589 = vld [vmem:[#allocation5 + $0x7a0] sm:$0xff]
        %v590 = vld [vmem:[#allocation5 + $0x7a8] sm:$0xff]
        %v591 = vld [vmem:[#allocation5 + $0x7b0] sm:$0xff]
        %v592 = vld [vmem:[#allocation5 + $0x7b8] sm:$0xff]
        %v593 = vld [vmem:[#allocation5 + $0x7c0] sm:$0xff]
        %v594 = vld [vmem:[#allocation5 + $0x7c8] sm:$0xff]
        %v595 = vld [vmem:[#allocation5 + $0x7d0] sm:$0xff]
        %v596 = vld [vmem:[#allocation5 + $0x7d8] sm:$0xff]
        %v597 = vld [vmem:[#allocation5 + $0x7e0] sm:$0xff]
        %v598 = vld [vmem:[#allocation5 + $0x7e8] sm:$0xff]
        %v599 = vld [vmem:[#allocation5 + $0x7f0] sm:$0xff]
        %v600 = vld [vmem:[#allocation5 + $0x7f8] sm:$0xff]
        %v601 = vld [vmem:[#allocation5 + $0x800] sm:$0xff]
        %v602 = vld [vmem:[#allocation5 + $0x808] sm:$0xff]
        %v603 = vld [vmem:[#allocation5 + $0x810] sm:$0xff]
        %v604 = vld [vmem:[#allocation5 + $0x818] sm:$0xff]
        %v605 = vld [vmem:[#allocation5 + $0x820] sm:$0xff]
        %v606 = vld [vmem:[#allocation5 + $0x828] sm:$0xff]
        %v607 = vld [vmem:[#allocation5 + $0x830] sm:$0xff]
        %v608 = vld [vmem:[#allocation5 + $0x838] sm:$0xff]
        %v609 = vld [vmem:[#allocation5 + $0x840] sm:$0xff]
        %v610 = vld [vmem:[#allocation5 + $0x848] sm:$0xff]
        %v611 = vld [vmem:[#allocation5 + $0x850] sm:$0xff]
        %v612 = vld [vmem:[#allocation5 + $0x858] sm:$0xff]
        %v613 = vld [vmem:[#allocation5 + $0x860] sm:$0xff]
        %v614 = vld [vmem:[#allocation5 + $0x868] sm:$0xff]
        %v615 = vld [vmem:[#allocation5 + $0x870] sm:$0xff]
        %v616 = vld [vmem:[#allocation5 + $0x878] sm:$0xff]
        %v617 = vld [vmem:[#allocation5 + $0x880] sm:$0xff]
        %v618 = vld [vmem:[#allocation5 + $0x888] sm:$0xff]
        %v619 = vld [vmem:[#allocation5 + $0x890] sm:$0xff]
        %v620 = vld [vmem:[#allocation5 + $0x898] sm:$0xff]
        %v621 = vld [vmem:[#allocation5 + $0x8a0] sm:$0xff]
        %v622 = vld [vmem:[#allocation5 + $0x8a8] sm:$0xff]
        %v623 = vld [vmem:[#allocation5 + $0x8b0] sm:$0xff]
        %v624 = vld [vmem:[#allocation5 + $0x8b8] sm:$0xff]
        %v625 = vld [vmem:[#allocation5 + $0x8c0] sm:$0xff]
        %v626 = vld [vmem:[#allocation5 + $0x8c8] sm:$0xff]
        %v627 = vld [vmem:[#allocation5 + $0x8d0] sm:$0xff]
        %v628 = vld [vmem:[#allocation5 + $0x8d8] sm:$0xff]
        %v629 = vld [vmem:[#allocation5 + $0x8e0] sm:$0xff]
        %v630 = vld [vmem:[#allocation5 + $0x8e8] sm:$0xff]
        %v631 = vld [vmem:[#allocation5 + $0x8f0] sm:$0xff]
        %v632 = vld [vmem:[#allocation5 + $0x8f8] sm:$0xff]
        %v633 = vld [vmem:[#allocation5 + $0x900] sm:$0xff]
        %v634 = vld [vmem:[#allocation5 + $0x908] sm:$0xff]
        %v635 = vld [vmem:[#allocation5 + $0x910] sm:$0xff]
        %v636 = vld [vmem:[#allocation5 + $0x918] sm:$0xff]
        %v637 = vld [vmem:[#allocation5 + $0x920] sm:$0xff]
        %v638 = vld [vmem:[#allocation5 + $0x928] sm:$0xff]
        %v639 = vld [vmem:[#allocation5 + $0x930] sm:$0xff]
        %v640 = vld [vmem:[#allocation5 + $0x938] sm:$0xff]
        %v641 = vld [vmem:[#allocation5 + $0x940] sm:$0xff]
        %v642 = vld [vmem:[#allocation5 + $0x948] sm:$0xff]
        %v643 = vld [vmem:[#allocation5 + $0x950] sm:$0xff]
        %v644 = vld [vmem:[#allocation5 + $0x958] sm:$0xff]
        %v645 = vld [vmem:[#allocation5 + $0x960] sm:$0xff]
        %v646 = vld [vmem:[#allocation5 + $0x968] sm:$0xff]
        %v647 = vld [vmem:[#allocation5 + $0x970] sm:$0xff]
        %v648 = vld [vmem:[#allocation5 + $0x978] sm:$0xff]
        %v649 = vld [vmem:[#allocation5 + $0x980] sm:$0xff]
        %v650 = vld [vmem:[#allocation5 + $0x988] sm:$0xff]
        %v651 = vld [vmem:[#allocation5 + $0x990] sm:$0xff]
        %v652 = vld [vmem:[#allocation5 + $0x998] sm:$0xff]
        %v653 = vld [vmem:[#allocation5 + $0x9a0] sm:$0xff]
        %v654 = vld [vmem:[#allocation5 + $0x9a8] sm:$0xff]
        %v655 = vld [vmem:[#allocation5 + $0x9b0] sm:$0xff]
        %v656 = vld [vmem:[#allocation5 + $0x9b8] sm:$0xff]
        %v657 = vld [vmem:[#allocation5 + $0x9c0] sm:$0xff]
        %v658 = vld [vmem:[#allocation5 + $0x9c8] sm:$0xff]
        %v659 = vld [vmem:[#allocation5 + $0x9d0] sm:$0xff]
        %v660 = vld [vmem:[#allocation5 + $0x9d8] sm:$0xff]
        %v661 = vld [vmem:[#allocation5 + $0x9e0] sm:$0xff]
        %v662 = vld [vmem:[#allocation5 + $0x9e8] sm:$0xff]
        %v663 = vld [vmem:[#allocation5 + $0x9f0] sm:$0xff]
        %v664 = vld [vmem:[#allocation5 + $0x9f8] sm:$0xff]
        %v665 = vld [vmem:[#allocation5 + $0xa00] sm:$0xff]
        %v666 = vld [vmem:[#allocation5 + $0xa08] sm:$0xff]
        %v667 = vld [vmem:[#allocation5 + $0xa10] sm:$0xff]
        %v668 = vld [vmem:[#allocation5 + $0xa18] sm:$0xff]
        %v669 = vld [vmem:[#allocation5 + $0xa20] sm:$0xff]
        %v670 = vld [vmem:[#allocation5 + $0xa28] sm:$0xff]
        %v671 = vld [vmem:[#allocation5 + $0xa30] sm:$0xff]
        %v672 = vld [vmem:[#allocation5 + $0xa38] sm:$0xff]
        %v673 = vld [vmem:[#allocation5 + $0xa40] sm:$0xff]
        %v674 = vld [vmem:[#allocation5 + $0xa48] sm:$0xff]
        %v675 = vld [vmem:[#allocation5 + $0xa50] sm:$0xff]
        %v676 = vld [vmem:[#allocation5 + $0xa58] sm:$0xff]
        %v677 = vld [vmem:[#allocation5 + $0xa60] sm:$0xff]
        %v678 = vld [vmem:[#allocation5 + $0xa68] sm:$0xff]
        %v679 = vld [vmem:[#allocation5 + $0xa70] sm:$0xff]
        %v680 = vld [vmem:[#allocation5 + $0xa78] sm:$0xff]
        %v681 = vld [vmem:[#allocation5 + $0xa80] sm:$0xff]
        %v682 = vld [vmem:[#allocation5 + $0xa88] sm:$0xff]
        %v683 = vld [vmem:[#allocation5 + $0xa90] sm:$0xff]
        %v684 = vld [vmem:[#allocation5 + $0xa98] sm:$0xff]
        %v685 = vld [vmem:[#allocation5 + $0xaa0] sm:$0xff]
        %v686 = vld [vmem:[#allocation5 + $0xaa8] sm:$0xff]
        %v687 = vld [vmem:[#allocation5 + $0xab0] sm:$0xff]
        %v688 = vld [vmem:[#allocation5 + $0xab8] sm:$0xff]
        %v689 = vld [vmem:[#allocation5 + $0xac0] sm:$0xff]
        %v690 = vld [vmem:[#allocation5 + $0xac8] sm:$0xff]
        %v691 = vld [vmem:[#allocation5 + $0xad0] sm:$0xff]
        %v692 = vld [vmem:[#allocation5 + $0xad8] sm:$0xff]
        %v693 = vld [vmem:[#allocation5 + $0xae0] sm:$0xff]
        %v694 = vld [vmem:[#allocation5 + $0xae8] sm:$0xff]
        %v695 = vld [vmem:[#allocation5 + $0xaf0] sm:$0xff]
        %v696 = vld [vmem:[#allocation5 + $0xaf8] sm:$0xff]
        %v697 = vld [vmem:[#allocation5 + $0xb00] sm:$0xff]
        %v698 = vld [vmem:[#allocation5 + $0xb08] sm:$0xff]
        %v699 = vld [vmem:[#allocation5 + $0xb10] sm:$0xff]
        %v700 = vld [vmem:[#allocation5 + $0xb18] sm:$0xff]
        %v701 = vld [vmem:[#allocation5 + $0xb20] sm:$0xff]
        %v702 = vld [vmem:[#allocation5 + $0xb28] sm:$0xff]
        %v703 = vld [vmem:[#allocation5 + $0xb30] sm:$0xff]
        %v704 = vld [vmem:[#allocation5 + $0xb38] sm:$0xff]
        %v705 = vld [vmem:[#allocation5 + $0xb40] sm:$0xff]
        %v706 = vld [vmem:[#allocation5 + $0xb48] sm:$0xff]
        %v707 = vld [vmem:[#allocation5 + $0xb50] sm:$0xff]
        %v708 = vld [vmem:[#allocation5 + $0xb58] sm:$0xff]
        %v709 = vld [vmem:[#allocation5 + $0xb60] sm:$0xff]
        %v710 = vld [vmem:[#allocation5 + $0xb68] sm:$0xff]
        %v711 = vld [vmem:[#allocation5 + $0xb70] sm:$0xff]
        %v712 = vld [vmem:[#allocation5 + $0xb78] sm:$0xff]
        %v713 = vld [vmem:[#allocation5 + $0xb80] sm:$0xff]
        %v714 = vld [vmem:[#allocation5 + $0xb88] sm:$0xff]
        %v715 = vld [vmem:[#allocation5 + $0xb90] sm:$0xff]
        %v716 = vld [vmem:[#allocation5 + $0xb98] sm:$0xff]
        %v717 = vld [vmem:[#allocation5 + $0xba0] sm:$0xff]
        %v718 = vld [vmem:[#allocation5 + $0xba8] sm:$0xff]
        %v719 = vld [vmem:[#allocation5 + $0xbb0] sm:$0xff]
        %v720 = vld [vmem:[#allocation5 + $0xbb8] sm:$0xff]
        %v721 = vld [vmem:[#allocation5 + $0xbc0] sm:$0xff]
        %v722 = vld [vmem:[#allocation5 + $0xbc8] sm:$0xff]
        %v723 = vld [vmem:[#allocation5 + $0xbd0] sm:$0xff]
        %v724 = vld [vmem:[#allocation5 + $0xbd8] sm:$0xff]
        %v725 = vld [vmem:[#allocation5 + $0xbe0] sm:$0xff]
        %v726 = vld [vmem:[#allocation5 + $0xbe8] sm:$0xff]
        %v727 = vld [vmem:[#allocation5 + $0xbf0] sm:$0xff]
        %v728 = vld [vmem:[#allocation5 + $0xbf8] sm:$0xff]
        %v729 = vld [vmem:[#allocation5 + $0xc00] sm:$0xff]
        %v730 = vld [vmem:[#allocation5 + $0xc08] sm:$0xff]
        %v731 = vld [vmem:[#allocation5 + $0xc10] sm:$0xff]
        %v732 = vld [vmem:[#allocation5 + $0xc18] sm:$0xff]
        %v733 = vld [vmem:[#allocation5 + $0xc20] sm:$0xff]
        %v734 = vld [vmem:[#allocation5 + $0xc28] sm:$0xff]
        %v735 = vld [vmem:[#allocation5 + $0xc30] sm:$0xff]
        %v736 = vld [vmem:[#allocation5 + $0xc38] sm:$0xff]
        %v737 = vld [vmem:[#allocation5 + $0xc40] sm:$0xff]
        %v738 = vld [vmem:[#allocation5 + $0xc48] sm:$0xff]
        %v739 = vld [vmem:[#allocation5 + $0xc50] sm:$0xff]
        %v740 = vld [vmem:[#allocation5 + $0xc58] sm:$0xff]
        %v741 = vld [vmem:[#allocation5 + $0xc60] sm:$0xff]
        %v742 = vld [vmem:[#allocation5 + $0xc68] sm:$0xff]
        %v743 = vld [vmem:[#allocation5 + $0xc70] sm:$0xff]
        %v744 = vld [vmem:[#allocation5 + $0xc78] sm:$0xff]
        %v745 = vld [vmem:[#allocation5 + $0xc80] sm:$0xff]
        %v746 = vld [vmem:[#allocation5 + $0xc88] sm:$0xff]
        %v747 = vld [vmem:[#allocation5 + $0xc90] sm:$0xff]
        %v748 = vld [vmem:[#allocation5 + $0xc98] sm:$0xff]
        %v749 = vld [vmem:[#allocation5 + $0xca0] sm:$0xff]
        %v750 = vld [vmem:[#allocation5 + $0xca8] sm:$0xff]
        %v751 = vld [vmem:[#allocation5 + $0xcb0] sm:$0xff]
        %v752 = vld [vmem:[#allocation5 + $0xcb8] sm:$0xff]
        %v753 = vld [vmem:[#allocation5 + $0xcc0] sm:$0xff]
        %v754 = vld [vmem:[#allocation5 + $0xcc8] sm:$0xff]
        %v755 = vld [vmem:[#allocation5 + $0xcd0] sm:$0xff]
        %v756 = vld [vmem:[#allocation5 + $0xcd8] sm:$0xff]
        %v757 = vld [vmem:[#allocation5 + $0xce0] sm:$0xff]
        %v758 = vld [vmem:[#allocation5 + $0xce8] sm:$0xff]
        %v759 = vld [vmem:[#allocation5 + $0xcf0] sm:$0xff]
        %v760 = vld [vmem:[#allocation5 + $0xcf8] sm:$0xff]
        %v761 = vld [vmem:[#allocation5 + $0xd00] sm:$0xff]
        %v762 = vld [vmem:[#allocation5 + $0xd08] sm:$0xff]
        %v763 = vld [vmem:[#allocation5 + $0xd10] sm:$0xff]
        %v764 = vld [vmem:[#allocation5 + $0xd18] sm:$0xff]
        %v765 = vld [vmem:[#allocation5 + $0xd20] sm:$0xff]
        %v766 = vld [vmem:[#allocation5 + $0xd28] sm:$0xff]
        %v767 = vld [vmem:[#allocation5 + $0xd30] sm:$0xff]
        %v768 = vld [vmem:[#allocation5 + $0xd38] sm:$0xff]
        %v769 = vld [vmem:[#allocation5 + $0xd40] sm:$0xff]
        %v770 = vld [vmem:[#allocation5 + $0xd48] sm:$0xff]
        %v771 = vld [vmem:[#allocation5 + $0xd50] sm:$0xff]
        %v772 = vld [vmem:[#allocation5 + $0xd58] sm:$0xff]
        %v773 = vld [vmem:[#allocation5 + $0xd60] sm:$0xff]
        %v774 = vld [vmem:[#allocation5 + $0xd68] sm:$0xff]
        %v775 = vld [vmem:[#allocation5 + $0xd70] sm:$0xff]
        %v776 = vld [vmem:[#allocation5 + $0xd78] sm:$0xff]
        %v777 = vld [vmem:[#allocation5 + $0xd80] sm:$0xff]
        %v778 = vld [vmem:[#allocation5 + $0xd88] sm:$0xff]
        %v779 = vld [vmem:[#allocation5 + $0xd90] sm:$0xff]
        %v780 = vld [vmem:[#allocation5 + $0xd98] sm:$0xff]
        %v781 = vld [vmem:[#allocation5 + $0xda0] sm:$0xff]
        %v782 = vld [vmem:[#allocation5 + $0xda8] sm:$0xff]
        %v783 = vld [vmem:[#allocation5 + $0xdb0] sm:$0xff]
        %v784 = vld [vmem:[#allocation5 + $0xdb8] sm:$0xff]
        %v785 = vld [vmem:[#allocation5 + $0xdc0] sm:$0xff]
        %v786 = vld [vmem:[#allocation5 + $0xdc8] sm:$0xff]
        %v787 = vld [vmem:[#allocation5 + $0xdd0] sm:$0xff]
        %v788 = vld [vmem:[#allocation5 + $0xdd8] sm:$0xff]
        %v789 = vld [vmem:[#allocation5 + $0xde0] sm:$0xff]
        %v790 = vld [vmem:[#allocation5 + $0xde8] sm:$0xff]
        %v791 = vld [vmem:[#allocation5 + $0xdf0] sm:$0xff]
        %v792 = vld [vmem:[#allocation5 + $0xdf8] sm:$0xff]
        %v793 = vld [vmem:[#allocation5 + $0xe00] sm:$0xff]
        %v794 = vld [vmem:[#allocation5 + $0xe08] sm:$0xff]
        %v795 = vld [vmem:[#allocation5 + $0xe10] sm:$0xff]
        %v796 = vld [vmem:[#allocation5 + $0xe18] sm:$0xff]
        %v797 = vld [vmem:[#allocation5 + $0xe20] sm:$0xff]
        %v798 = vld [vmem:[#allocation5 + $0xe28] sm:$0xff]
        %v799 = vld [vmem:[#allocation5 + $0xe30] sm:$0xff]
        %v800 = vld [vmem:[#allocation5 + $0xe38] sm:$0xff]
        %v801 = vld [vmem:[#allocation5 + $0xe40] sm:$0xff]
        %v802 = vld [vmem:[#allocation5 + $0xe48] sm:$0xff]
        %v803 = vld [vmem:[#allocation5 + $0xe50] sm:$0xff]
        %v804 = vld [vmem:[#allocation5 + $0xe58] sm:$0xff]
        %v805 = vld [vmem:[#allocation5 + $0xe60] sm:$0xff]
        %v806 = vld [vmem:[#allocation5 + $0xe68] sm:$0xff]
        %v807 = vld [vmem:[#allocation5 + $0xe70] sm:$0xff]
        %v808 = vld [vmem:[#allocation5 + $0xe78] sm:$0xff]
        %v809 = vld [vmem:[#allocation5 + $0xe80] sm:$0xff]
        %v810 = vld [vmem:[#allocation5 + $0xe88] sm:$0xff]
        %v811 = vld [vmem:[#allocation5 + $0xe90] sm:$0xff]
        %v812 = vld [vmem:[#allocation5 + $0xe98] sm:$0xff]
        %v813 = vld [vmem:[#allocation5 + $0xea0] sm:$0xff]
        %v814 = vld [vmem:[#allocation5 + $0xea8] sm:$0xff]
        %v815 = vld [vmem:[#allocation5 + $0xeb0] sm:$0xff]
        %v816 = vld [vmem:[#allocation5 + $0xeb8] sm:$0xff]
        %v817 = vld [vmem:[#allocation5 + $0xec0] sm:$0xff]
        %v818 = vld [vmem:[#allocation5 + $0xec8] sm:$0xff]
        %v819 = vld [vmem:[#allocation5 + $0xed0] sm:$0xff]
        %v820 = vld [vmem:[#allocation5 + $0xed8] sm:$0xff]
        %v821 = vld [vmem:[#allocation5 + $0xee0] sm:$0xff]
        %v822 = vld [vmem:[#allocation5 + $0xee8] sm:$0xff]
        %v823 = vld [vmem:[#allocation5 + $0xef0] sm:$0xff]
        %v824 = vld [vmem:[#allocation5 + $0xef8] sm:$0xff]
        %v825 = vld [vmem:[#allocation5 + $0xf00] sm:$0xff]
        %v826 = vld [vmem:[#allocation5 + $0xf08] sm:$0xff]
        %v827 = vld [vmem:[#allocation5 + $0xf10] sm:$0xff]
        %v828 = vld [vmem:[#allocation5 + $0xf18] sm:$0xff]
        %v829 = vld [vmem:[#allocation5 + $0xf20] sm:$0xff]
        %v830 = vld [vmem:[#allocation5 + $0xf28] sm:$0xff]
        %v831 = vld [vmem:[#allocation5 + $0xf30] sm:$0xff]
        %v832 = vld [vmem:[#allocation5 + $0xf38] sm:$0xff]
        %v833 = vld [vmem:[#allocation5 + $0xf40] sm:$0xff]
        %v834 = vld [vmem:[#allocation5 + $0xf48] sm:$0xff]
        %v835 = vld [vmem:[#allocation5 + $0xf50] sm:$0xff]
        %v836 = vld [vmem:[#allocation5 + $0xf58] sm:$0xff]
        %v837 = vld [vmem:[#allocation5 + $0xf60] sm:$0xff]
        %v838 = vld [vmem:[#allocation5 + $0xf68] sm:$0xff]
        %v839 = vld [vmem:[#allocation5 + $0xf70] sm:$0xff]
        %v840 = vld [vmem:[#allocation5 + $0xf78] sm:$0xff]
        %v841 = vld [vmem:[#allocation5 + $0xf80] sm:$0xff]
        %v842 = vld [vmem:[#allocation5 + $0xf88] sm:$0xff]
        %v843 = vld [vmem:[#allocation5 + $0xf90] sm:$0xff]
        %v844 = vld [vmem:[#allocation5 + $0xf98] sm:$0xff]
        %v845 = vld [vmem:[#allocation5 + $0xfa0] sm:$0xff]
        %v846 = vld [vmem:[#allocation5 + $0xfa8] sm:$0xff]
        %v847 = vld [vmem:[#allocation5 + $0xfb0] sm:$0xff]
        %v848 = vld [vmem:[#allocation5 + $0xfb8] sm:$0xff]
        %v849 = vld [vmem:[#allocation5 + $0xfc0] sm:$0xff]
        %v850 = vld [vmem:[#allocation5 + $0xfc8] sm:$0xff]
        %v851 = vld [vmem:[#allocation5 + $0xfd0] sm:$0xff]
        %v852 = vld [vmem:[#allocation5 + $0xfd8] sm:$0xff]
        %v853 = vld [vmem:[#allocation5 + $0xfe0] sm:$0xff]
        %v854 = vld [vmem:[#allocation5 + $0xfe8] sm:$0xff]
        %v855 = vld [vmem:[#allocation5 + $0xff0] sm:$0xff]
        %v856 = vld [vmem:[#allocation5 + $0xff8] sm:$0xff]
        %v857 = vld [vmem:[#allocation5 + $0x1000] sm:$0xff]
        %v858 = vld [vmem:[#allocation5 + $0x1008] sm:$0xff]
        %v859 = vld [vmem:[#allocation5 + $0x1010] sm:$0xff]
        %v860 = vld [vmem:[#allocation5 + $0x1018] sm:$0xff]
        %v861 = vld [vmem:[#allocation5 + $0x1020] sm:$0xff]
        %v862 = vld [vmem:[#allocation5 + $0x1028] sm:$0xff]
        %v863 = vld [vmem:[#allocation5 + $0x1030] sm:$0xff]
        %v864 = vld [vmem:[#allocation5 + $0x1038] sm:$0xff]
        %v865 = vld [vmem:[#allocation5 + $0x1040] sm:$0xff]
        %v866 = vld [vmem:[#allocation5 + $0x1048] sm:$0xff]
        %v867 = vld [vmem:[#allocation5 + $0x1050] sm:$0xff]
        %v868 = vld [vmem:[#allocation5 + $0x1058] sm:$0xff]
        %v869 = vld [vmem:[#allocation5 + $0x1060] sm:$0xff]
        %v870 = vld [vmem:[#allocation5 + $0x1068] sm:$0xff]
        %v871 = vld [vmem:[#allocation5 + $0x1070] sm:$0xff]
        %v872 = vld [vmem:[#allocation5 + $0x1078] sm:$0xff]
        %v873 = vld [vmem:[#allocation5 + $0x1080] sm:$0xff]
        %v874 = vld [vmem:[#allocation5 + $0x1088] sm:$0xff]
        %v875 = vld [vmem:[#allocation5 + $0x1090] sm:$0xff]
        %v876 = vld [vmem:[#allocation5 + $0x1098] sm:$0xff]
        %v877 = vld [vmem:[#allocation5 + $0x10a0] sm:$0xff]
        %v878 = vld [vmem:[#allocation5 + $0x10a8] sm:$0xff]
        %v879 = vld [vmem:[#allocation5 + $0x10b0] sm:$0xff]
        %v880 = vld [vmem:[#allocation5 + $0x10b8] sm:$0xff]
        %v881 = vld [vmem:[#allocation5 + $0x10c0] sm:$0xff]
        %v882 = vld [vmem:[#allocation5 + $0x10c8] sm:$0xff]
        %v883 = vld [vmem:[#allocation5 + $0x10d0] sm:$0xff]
        %v884 = vld [vmem:[#allocation5 + $0x10d8] sm:$0xff]
        %v885 = vld [vmem:[#allocation5 + $0x10e0] sm:$0xff]
        %v886 = vld [vmem:[#allocation5 + $0x10e8] sm:$0xff]
        %v887 = vld [vmem:[#allocation5 + $0x10f0] sm:$0xff]
        %v888 = vld [vmem:[#allocation5 + $0x10f8] sm:$0xff]
        %v889 = vld [vmem:[#allocation5 + $0x1100] sm:$0xff]
        %v890 = vld [vmem:[#allocation5 + $0x1108] sm:$0xff]
        %v891 = vld [vmem:[#allocation5 + $0x1110] sm:$0xff]
        %v892 = vld [vmem:[#allocation5 + $0x1118] sm:$0xff]
        %v893 = vld [vmem:[#allocation5 + $0x1120] sm:$0xff]
        %v894 = vld [vmem:[#allocation5 + $0x1128] sm:$0xff]
        %v895 = vld [vmem:[#allocation5 + $0x1130] sm:$0xff]
        %v896 = vld [vmem:[#allocation5 + $0x1138] sm:$0xff]
        %v897 = vld [vmem:[#allocation5 + $0x1140] sm:$0xff]
        %v898 = vld [vmem:[#allocation5 + $0x1148] sm:$0xff]
        %v899 = vld [vmem:[#allocation5 + $0x1150] sm:$0xff]
        %v900 = vld [vmem:[#allocation5 + $0x1158] sm:$0xff]
        %v901 = vld [vmem:[#allocation5 + $0x1160] sm:$0xff]
        %v902 = vld [vmem:[#allocation5 + $0x1168] sm:$0xff]
        %v903 = vld [vmem:[#allocation5 + $0x1170] sm:$0xff]
        %v904 = vld [vmem:[#allocation5 + $0x1178] sm:$0xff]
        %v905 = vld [vmem:[#allocation5 + $0x1180] sm:$0xff]
        %v906 = vld [vmem:[#allocation5 + $0x1188] sm:$0xff]
        %v907 = vld [vmem:[#allocation5 + $0x1190] sm:$0xff]
        %v908 = vld [vmem:[#allocation5 + $0x1198] sm:$0xff]
        %v909 = vld [vmem:[#allocation5 + $0x11a0] sm:$0xff]
        %v910 = vld [vmem:[#allocation5 + $0x11a8] sm:$0xff]
        %v911 = vld [vmem:[#allocation5 + $0x11b0] sm:$0xff]
        %v912 = vld [vmem:[#allocation5 + $0x11b8] sm:$0xff]
        %v913 = vld [vmem:[#allocation5 + $0x11c0] sm:$0xff]
        %v914 = vld [vmem:[#allocation5 + $0x11c8] sm:$0xff]
        %v915 = vld [vmem:[#allocation5 + $0x11d0] sm:$0xff]
        %v916 = vld [vmem:[#allocation5 + $0x11d8] sm:$0xff]
        %v917 = vld [vmem:[#allocation5 + $0x11e0] sm:$0xff]
        %v918 = vld [vmem:[#allocation5 + $0x11e8] sm:$0xff]
        %v919 = vld [vmem:[#allocation5 + $0x11f0] sm:$0xff]
        %v920 = vld [vmem:[#allocation5 + $0x11f8] sm:$0xff]
        %v921 = vld [vmem:[#allocation5 + $0x1200] sm:$0xff]
        %v922 = vld [vmem:[#allocation5 + $0x1208] sm:$0xff]
        %v923 = vld [vmem:[#allocation5 + $0x1210] sm:$0xff]
        %v924 = vld [vmem:[#allocation5 + $0x1218] sm:$0xff]
        %v925 = vld [vmem:[#allocation5 + $0x1220] sm:$0xff]
        %v926 = vld [vmem:[#allocation5 + $0x1228] sm:$0xff]
        %v927 = vld [vmem:[#allocation5 + $0x1230] sm:$0xff]
        %v928 = vld [vmem:[#allocation5 + $0x1238] sm:$0xff]
        %v929 = vld [vmem:[#allocation5 + $0x1240] sm:$0xff]
        %v930 = vld [vmem:[#allocation5 + $0x1248] sm:$0xff]
        %v931 = vld [vmem:[#allocation5 + $0x1250] sm:$0xff]
        %v932 = vld [vmem:[#allocation5 + $0x1258] sm:$0xff]
        %v933 = vld [vmem:[#allocation5 + $0x1260] sm:$0xff]
        %v934 = vld [vmem:[#allocation5 + $0x1268] sm:$0xff]
        %v935 = vld [vmem:[#allocation5 + $0x1270] sm:$0xff]
        %v936 = vld [vmem:[#allocation5 + $0x1278] sm:$0xff]
        %v937 = vld [vmem:[#allocation5 + $0x1280] sm:$0xff]
        %v938 = vld [vmem:[#allocation5 + $0x1288] sm:$0xff]
        %v939 = vld [vmem:[#allocation5 + $0x1290] sm:$0xff]
        %v940 = vld [vmem:[#allocation5 + $0x1298] sm:$0xff]
        %v941 = vld [vmem:[#allocation5 + $0x12a0] sm:$0xff]
        %v942 = vld [vmem:[#allocation5 + $0x12a8] sm:$0xff]
        %v943 = vld [vmem:[#allocation5 + $0x12b0] sm:$0xff]
        %v944 = vld [vmem:[#allocation5 + $0x12b8] sm:$0xff]
        %v945 = vld [vmem:[#allocation5 + $0x12c0] sm:$0xff]
        %v946 = vld [vmem:[#allocation5 + $0x12c8] sm:$0xff]
        %v947 = vld [vmem:[#allocation5 + $0x12d0] sm:$0xff]
        %v948 = vld [vmem:[#allocation5 + $0x12d8] sm:$0xff]
        %v949 = vld [vmem:[#allocation5 + $0x12e0] sm:$0xff]
        %v950 = vld [vmem:[#allocation5 + $0x12e8] sm:$0xff]
        %v951 = vld [vmem:[#allocation5 + $0x12f0] sm:$0xff]
        %v952 = vld [vmem:[#allocation5 + $0x12f8] sm:$0xff]
        %v953 = vld [vmem:[#allocation5 + $0x1300] sm:$0xff]
        %v954 = vld [vmem:[#allocation5 + $0x1308] sm:$0xff]
        %v955 = vld [vmem:[#allocation5 + $0x1310] sm:$0xff]
        %v956 = vld [vmem:[#allocation5 + $0x1318] sm:$0xff]
        %v957 = vld [vmem:[#allocation5 + $0x1320] sm:$0xff]
        %v958 = vld [vmem:[#allocation5 + $0x1328] sm:$0xff]
        %v959 = vld [vmem:[#allocation5 + $0x1330] sm:$0xff]
        %v960 = vld [vmem:[#allocation5 + $0x1338] sm:$0xff]
        %v961 = vld [vmem:[#allocation5 + $0x1340] sm:$0xff]
        %v962 = vld [vmem:[#allocation5 + $0x1348] sm:$0xff]
        %v963 = vld [vmem:[#allocation5 + $0x1350] sm:$0xff]
        %v964 = vld [vmem:[#allocation5 + $0x1358] sm:$0xff]
        %v965 = vld [vmem:[#allocation5 + $0x1360] sm:$0xff]
        %v966 = vld [vmem:[#allocation5 + $0x1368] sm:$0xff]
        %v967 = vld [vmem:[#allocation5 + $0x1370] sm:$0xff]
        %v968 = vld [vmem:[#allocation5 + $0x1378] sm:$0xff]
        %v969 = vld [vmem:[#allocation5 + $0x1380] sm:$0xff]
        %v970 = vld [vmem:[#allocation5 + $0x1388] sm:$0xff]
        %v971 = vld [vmem:[#allocation5 + $0x1390] sm:$0xff]
        %v972 = vld [vmem:[#allocation5 + $0x1398] sm:$0xff]
        %v973 = vld [vmem:[#allocation5 + $0x13a0] sm:$0xff]
        %v974 = vld [vmem:[#allocation5 + $0x13a8] sm:$0xff]
        %v975 = vld [vmem:[#allocation5 + $0x13b0] sm:$0xff]
        %v976 = vld [vmem:[#allocation5 + $0x13b8] sm:$0xff]
        %v977 = vld [vmem:[#allocation5 + $0x13c0] sm:$0xff]
        %v978 = vld [vmem:[#allocation5 + $0x13c8] sm:$0xff]
        %v979 = vld [vmem:[#allocation5 + $0x13d0] sm:$0xff]
        %v980 = vld [vmem:[#allocation5 + $0x13d8] sm:$0xff]
        %v981 = vld [vmem:[#allocation5 + $0x13e0] sm:$0xff]
        %v982 = vld [vmem:[#allocation5 + $0x13e8] sm:$0xff]
        %v983 = vld [vmem:[#allocation5 + $0x13f0] sm:$0xff]
        %v984 = vld [vmem:[#allocation5 + $0x13f8] sm:$0xff]
        %v985 = vld [vmem:[#allocation5 + $0x1400] sm:$0xff]
        %v986 = vld [vmem:[#allocation5 + $0x1408] sm:$0xff]
        %v987 = vld [vmem:[#allocation5 + $0x1410] sm:$0xff]
        %v988 = vld [vmem:[#allocation5 + $0x1418] sm:$0xff]
        %v989 = vld [vmem:[#allocation5 + $0x1420] sm:$0xff]
        %v990 = vld [vmem:[#allocation5 + $0x1428] sm:$0xff]
        %v991 = vld [vmem:[#allocation5 + $0x1430] sm:$0xff]
        %v992 = vld [vmem:[#allocation5 + $0x1438] sm:$0xff]
        %v993 = vld [vmem:[#allocation5 + $0x1440] sm:$0xff]
        %v994 = vld [vmem:[#allocation5 + $0x1448] sm:$0xff]
        %v995 = vld [vmem:[#allocation5 + $0x1450] sm:$0xff]
        %v996 = vld [vmem:[#allocation5 + $0x1458] sm:$0xff]
        %v997 = vld [vmem:[#allocation5 + $0x1460] sm:$0xff]
        %v998 = vld [vmem:[#allocation5 + $0x1468] sm:$0xff]
        %v999 = vld [vmem:[#allocation5 + $0x1470] sm:$0xff]
        %v1000 = vld [vmem:[#allocation5 + $0x1478] sm:$0xff]
        %v1001 = vld [vmem:[#allocation5 + $0x1480] sm:$0xff]
        %v1002 = vld [vmem:[#allocation5 + $0x1488] sm:$0xff]
        %v1003 = vld [vmem:[#allocation5 + $0x1490] sm:$0xff]
        %v1004 = vld [vmem:[#allocation5 + $0x1498] sm:$0xff]
        %v1005 = vld [vmem:[#allocation5 + $0x14a0] sm:$0xff]
        %v1006 = vld [vmem:[#allocation5 + $0x14a8] sm:$0xff]
        %v1007 = vld [vmem:[#allocation5 + $0x14b0] sm:$0xff]
        %v1008 = vld [vmem:[#allocation5 + $0x14b8] sm:$0xff]
        %v1009 = vld [vmem:[#allocation5 + $0x14c0] sm:$0xff]
        %v1010 = vld [vmem:[#allocation5 + $0x14c8] sm:$0xff]
        %v1011 = vld [vmem:[#allocation5 + $0x14d0] sm:$0xff]
        %v1012 = vld [vmem:[#allocation5 + $0x14d8] sm:$0xff]
        %v1013 = vld [vmem:[#allocation5 + $0x14e0] sm:$0xff]
        %v1014 = vld [vmem:[#allocation5 + $0x14e8] sm:$0xff]
        %v1015 = vld [vmem:[#allocation5 + $0x14f0] sm:$0xff]
        %v1016 = vld [vmem:[#allocation5 + $0x14f8] sm:$0xff]
        %v1017 = vld [vmem:[#allocation5 + $0x1500] sm:$0xff]
        %v1018 = vld [vmem:[#allocation5 + $0x1508] sm:$0xff]
        %v1019 = vld [vmem:[#allocation5 + $0x1510] sm:$0xff]
        %v1020 = vld [vmem:[#allocation5 + $0x1518] sm:$0xff]
        %v1021 = vld [vmem:[#allocation5 + $0x1520] sm:$0xff]
        %v1022 = vld [vmem:[#allocation5 + $0x1528] sm:$0xff]
        %v1023 = vld [vmem:[#allocation5 + $0x1530] sm:$0xff]
        %v1024 = vld [vmem:[#allocation5 + $0x1538] sm:$0xff]
        %v1025 = vld [vmem:[#allocation5 + $0x1540] sm:$0xff]
        %v1026 = vld [vmem:[#allocation5 + $0x1548] sm:$0xff]
        %v1027 = vld [vmem:[#allocation5 + $0x1550] sm:$0xff]
        %v1028 = vld [vmem:[#allocation5 + $0x1558] sm:$0xff]
        %v1029 = vld [vmem:[#allocation5 + $0x1560] sm:$0xff]
        %v1030 = vld [vmem:[#allocation5 + $0x1568] sm:$0xff]
        %v1031 = vld [vmem:[#allocation5 + $0x1570] sm:$0xff]
        %v1032 = vld [vmem:[#allocation5 + $0x1578] sm:$0xff]
        %v1033 = vld [vmem:[#allocation5 + $0x1580] sm:$0xff]
        %v1034 = vld [vmem:[#allocation5 + $0x1588] sm:$0xff]
        %v1035 = vld [vmem:[#allocation5 + $0x1590] sm:$0xff]
        %v1036 = vld [vmem:[#allocation5 + $0x1598] sm:$0xff]
        %v1037 = vld [vmem:[#allocation5 + $0x15a0] sm:$0xff]
        %v1038 = vld [vmem:[#allocation5 + $0x15a8] sm:$0xff]
        %v1039 = vld [vmem:[#allocation5 + $0x15b0] sm:$0xff]
        %v1040 = vld [vmem:[#allocation5 + $0x15b8] sm:$0xff]
        %v1041 = vld [vmem:[#allocation5 + $0x15c0] sm:$0xff]
        %v1042 = vld [vmem:[#allocation5 + $0x15c8] sm:$0xff]
        %v1043 = vld [vmem:[#allocation5 + $0x15d0] sm:$0xff]
        %v1044 = vld [vmem:[#allocation5 + $0x15d8] sm:$0xff]
        %v1045 = vld [vmem:[#allocation5 + $0x15e0] sm:$0xff]
        %v1046 = vld [vmem:[#allocation5 + $0x15e8] sm:$0xff]
        %v1047 = vld [vmem:[#allocation5 + $0x15f0] sm:$0xff]
        %v1048 = vld [vmem:[#allocation5 + $0x15f8] sm:$0xff]
        %v1049 = vld [vmem:[#allocation5 + $0x1600] sm:$0xff]
        %v1050 = vld [vmem:[#allocation5 + $0x1608] sm:$0xff]
        %v1051 = vld [vmem:[#allocation5 + $0x1610] sm:$0xff]
        %v1052 = vld [vmem:[#allocation5 + $0x1618] sm:$0xff]
        %v1053 = vld [vmem:[#allocation5 + $0x1620] sm:$0xff]
        %v1054 = vld [vmem:[#allocation5 + $0x1628] sm:$0xff]
        %v1055 = vld [vmem:[#allocation5 + $0x1630] sm:$0xff]
        %v1056 = vld [vmem:[#allocation5 + $0x1638] sm:$0xff]
        %v1057 = vld [vmem:[#allocation5 + $0x1640] sm:$0xff]
        %v1058 = vld [vmem:[#allocation5 + $0x1648] sm:$0xff]
        %v1059 = vld [vmem:[#allocation5 + $0x1650] sm:$0xff]
        %v1060 = vld [vmem:[#allocation5 + $0x1658] sm:$0xff]
        %v1061 = vld [vmem:[#allocation5 + $0x1660] sm:$0xff]
        %v1062 = vld [vmem:[#allocation5 + $0x1668] sm:$0xff]
        %v1063 = vld [vmem:[#allocation5 + $0x1670] sm:$0xff]
        %v1064 = vld [vmem:[#allocation5 + $0x1678] sm:$0xff]
        %v1065 = vld [vmem:[#allocation5 + $0x1680] sm:$0xff]
        %v1066 = vld [vmem:[#allocation5 + $0x1688] sm:$0xff]
        %v1067 = vld [vmem:[#allocation5 + $0x1690] sm:$0xff]
        %v1068 = vld [vmem:[#allocation5 + $0x1698] sm:$0xff]
        %v1069 = vld [vmem:[#allocation5 + $0x16a0] sm:$0xff]
        %v1070 = vld [vmem:[#allocation5 + $0x16a8] sm:$0xff]
        %v1071 = vld [vmem:[#allocation5 + $0x16b0] sm:$0xff]
        %v1072 = vld [vmem:[#allocation5 + $0x16b8] sm:$0xff]
        %v1073 = vld [vmem:[#allocation5 + $0x16c0] sm:$0xff]
        %v1074 = vld [vmem:[#allocation5 + $0x16c8] sm:$0xff]
        %v1075 = vld [vmem:[#allocation5 + $0x16d0] sm:$0xff]
        %v1076 = vld [vmem:[#allocation5 + $0x16d8] sm:$0xff]
        %v1077 = vld [vmem:[#allocation5 + $0x16e0] sm:$0xff]
        %v1078 = vld [vmem:[#allocation5 + $0x16e8] sm:$0xff]
        %v1079 = vld [vmem:[#allocation5 + $0x16f0] sm:$0xff]
        %v1080 = vld [vmem:[#allocation5 + $0x16f8] sm:$0xff]
        %v1081 = vld [vmem:[#allocation5 + $0x1700] sm:$0xff]
        %v1082 = vld [vmem:[#allocation5 + $0x1708] sm:$0xff]
        %v1083 = vld [vmem:[#allocation5 + $0x1710] sm:$0xff]
        %v1084 = vld [vmem:[#allocation5 + $0x1718] sm:$0xff]
        %v1085 = vld [vmem:[#allocation5 + $0x1720] sm:$0xff]
        %v1086 = vld [vmem:[#allocation5 + $0x1728] sm:$0xff]
        %v1087 = vld [vmem:[#allocation5 + $0x1730] sm:$0xff]
        %v1088 = vld [vmem:[#allocation5 + $0x1738] sm:$0xff]
        %v1089 = vld [vmem:[#allocation5 + $0x1740] sm:$0xff]
        %v1090 = vld [vmem:[#allocation5 + $0x1748] sm:$0xff]
        %v1091 = vld [vmem:[#allocation5 + $0x1750] sm:$0xff]
        %v1092 = vld [vmem:[#allocation5 + $0x1758] sm:$0xff]
        %v1093 = vld [vmem:[#allocation5 + $0x1760] sm:$0xff]
        %v1094 = vld [vmem:[#allocation5 + $0x1768] sm:$0xff]
        %v1095 = vld [vmem:[#allocation5 + $0x1770] sm:$0xff]
        %v1096 = vld [vmem:[#allocation5 + $0x1778] sm:$0xff]
        %v1097 = vld [vmem:[#allocation5 + $0x1780] sm:$0xff]
        %v1098 = vld [vmem:[#allocation5 + $0x1788] sm:$0xff]
        %v1099 = vld [vmem:[#allocation5 + $0x1790] sm:$0xff]
        %v1100 = vld [vmem:[#allocation5 + $0x1798] sm:$0xff]
        %v1101 = vld [vmem:[#allocation5 + $0x17a0] sm:$0xff]
        %v1102 = vld [vmem:[#allocation5 + $0x17a8] sm:$0xff]
        %v1103 = vld [vmem:[#allocation5 + $0x17b0] sm:$0xff]
        %v1104 = vld [vmem:[#allocation5 + $0x17b8] sm:$0xff]
        %v1105 = vld [vmem:[#allocation5 + $0x17c0] sm:$0xff]
        %v1106 = vld [vmem:[#allocation5 + $0x17c8] sm:$0xff]
        %v1107 = vld [vmem:[#allocation5 + $0x17d0] sm:$0xff]
        %v1108 = vld [vmem:[#allocation5 + $0x17d8] sm:$0xff]
        %v1109 = vld [vmem:[#allocation5 + $0x17e0] sm:$0xff]
        %v1110 = vld [vmem:[#allocation5 + $0x17e8] sm:$0xff]
        %v1111 = vld [vmem:[#allocation5 + $0x17f0] sm:$0xff]
        %v1112 = vld [vmem:[#allocation5 + $0x17f8] sm:$0xff]
        %v1113 = vld [vmem:[#allocation5 + $0x1800] sm:$0xff]
        %v1114 = vld [vmem:[#allocation5 + $0x1808] sm:$0xff]
        %v1115 = vld [vmem:[#allocation5 + $0x1810] sm:$0xff]
        %v1116 = vld [vmem:[#allocation5 + $0x1818] sm:$0xff]
        %v1117 = vld [vmem:[#allocation5 + $0x1820] sm:$0xff]
        %v1118 = vld [vmem:[#allocation5 + $0x1828] sm:$0xff]
        %v1119 = vld [vmem:[#allocation5 + $0x1830] sm:$0xff]
        %v1120 = vld [vmem:[#allocation5 + $0x1838] sm:$0xff]
        %v1121 = vld [vmem:[#allocation5 + $0x1840] sm:$0xff]
        %v1122 = vld [vmem:[#allocation5 + $0x1848] sm:$0xff]
        %v1123 = vld [vmem:[#allocation5 + $0x1850] sm:$0xff]
        %v1124 = vld [vmem:[#allocation5 + $0x1858] sm:$0xff]
        %v1125 = vld [vmem:[#allocation5 + $0x1860] sm:$0xff]
        %v1126 = vld [vmem:[#allocation5 + $0x1868] sm:$0xff]
        %v1127 = vld [vmem:[#allocation5 + $0x1870] sm:$0xff]
        %v1128 = vld [vmem:[#allocation5 + $0x1878] sm:$0xff]
        %v1129 = vld [vmem:[#allocation5 + $0x1880] sm:$0xff]
        %v1130 = vld [vmem:[#allocation5 + $0x1888] sm:$0xff]
        %v1131 = vld [vmem:[#allocation5 + $0x1890] sm:$0xff]
        %v1132 = vld [vmem:[#allocation5 + $0x1898] sm:$0xff]
        %v1133 = vld [vmem:[#allocation5 + $0x18a0] sm:$0xff]
        %v1134 = vld [vmem:[#allocation5 + $0x18a8] sm:$0xff]
        %v1135 = vld [vmem:[#allocation5 + $0x18b0] sm:$0xff]
        %v1136 = vld [vmem:[#allocation5 + $0x18b8] sm:$0xff]
        %v1137 = vld [vmem:[#allocation5 + $0x18c0] sm:$0xff]
        %v1138 = vld [vmem:[#allocation5 + $0x18c8] sm:$0xff]
        %v1139 = vld [vmem:[#allocation5 + $0x18d0] sm:$0xff]
        %v1140 = vld [vmem:[#allocation5 + $0x18d8] sm:$0xff]
        %v1141 = vld [vmem:[#allocation5 + $0x18e0] sm:$0xff]
        %v1142 = vld [vmem:[#allocation5 + $0x18e8] sm:$0xff]
        %v1143 = vld [vmem:[#allocation5 + $0x18f0] sm:$0xff]
        %v1144 = vld [vmem:[#allocation5 + $0x18f8] sm:$0xff]
        %v1145 = vld [vmem:[#allocation5 + $0x1900] sm:$0xff]
        %v1146 = vld [vmem:[#allocation5 + $0x1908] sm:$0xff]
        %v1147 = vld [vmem:[#allocation5 + $0x1910] sm:$0xff]
        %v1148 = vld [vmem:[#allocation5 + $0x1918] sm:$0xff]
        %v1149 = vld [vmem:[#allocation5 + $0x1920] sm:$0xff]
        %v1150 = vld [vmem:[#allocation5 + $0x1928] sm:$0xff]
        %v1151 = vld [vmem:[#allocation5 + $0x1930] sm:$0xff]
        %v1152 = vld [vmem:[#allocation5 + $0x1938] sm:$0xff]
        %v1153 = vld [vmem:[#allocation5 + $0x1940] sm:$0xff]
        %v1154 = vld [vmem:[#allocation5 + $0x1948] sm:$0xff]
        %v1155 = vld [vmem:[#allocation5 + $0x1950] sm:$0xff]
        %v1156 = vld [vmem:[#allocation5 + $0x1958] sm:$0xff]
        %v1157 = vld [vmem:[#allocation5 + $0x1960] sm:$0xff]
        %v1158 = vld [vmem:[#allocation5 + $0x1968] sm:$0xff]
        %v1159 = vld [vmem:[#allocation5 + $0x1970] sm:$0xff]
        %v1160 = vld [vmem:[#allocation5 + $0x1978] sm:$0xff]
        %v1161 = vld [vmem:[#allocation5 + $0x1980] sm:$0xff]
        %v1162 = vld [vmem:[#allocation5 + $0x1988] sm:$0xff]
        %v1163 = vld [vmem:[#allocation5 + $0x1990] sm:$0xff]
        %v1164 = vld [vmem:[#allocation5 + $0x1998] sm:$0xff]
        %v1165 = vld [vmem:[#allocation5 + $0x19a0] sm:$0xff]
        %v1166 = vld [vmem:[#allocation5 + $0x19a8] sm:$0xff]
        %v1167 = vld [vmem:[#allocation5 + $0x19b0] sm:$0xff]
        %v1168 = vld [vmem:[#allocation5 + $0x19b8] sm:$0xff]
        %v1169 = vld [vmem:[#allocation5 + $0x19c0] sm:$0xff]
        %v1170 = vld [vmem:[#allocation5 + $0x19c8] sm:$0xff]
        %v1171 = vld [vmem:[#allocation5 + $0x19d0] sm:$0xff]
        %v1172 = vld [vmem:[#allocation5 + $0x19d8] sm:$0xff]
        %v1173 = vld [vmem:[#allocation5 + $0x19e0] sm:$0xff]
        %v1174 = vld [vmem:[#allocation5 + $0x19e8] sm:$0xff]
        %v1175 = vld [vmem:[#allocation5 + $0x19f0] sm:$0xff]
        %v1176 = vld [vmem:[#allocation5 + $0x19f8] sm:$0xff]
        %v1177 = vld [vmem:[#allocation5 + $0x1a00] sm:$0xff]
        %v1178 = vld [vmem:[#allocation5 + $0x1a08] sm:$0xff]
        %v1179 = vld [vmem:[#allocation5 + $0x1a10] sm:$0xff]
        %v1180 = vld [vmem:[#allocation5 + $0x1a18] sm:$0xff]
        %v1181 = vld [vmem:[#allocation5 + $0x1a20] sm:$0xff]
        %v1182 = vld [vmem:[#allocation5 + $0x1a28] sm:$0xff]
        %v1183 = vld [vmem:[#allocation5 + $0x1a30] sm:$0xff]
        %v1184 = vld [vmem:[#allocation5 + $0x1a38] sm:$0xff]
        %v1185 = vld [vmem:[#allocation5 + $0x1a40] sm:$0xff]
        %v1186 = vld [vmem:[#allocation5 + $0x1a48] sm:$0xff]
        %v1187 = vld [vmem:[#allocation5 + $0x1a50] sm:$0xff]
        %v1188 = vld [vmem:[#allocation5 + $0x1a58] sm:$0xff]
        %v1189 = vld [vmem:[#allocation5 + $0x1a60] sm:$0xff]
        %v1190 = vld [vmem:[#allocation5 + $0x1a68] sm:$0xff]
        %v1191 = vld [vmem:[#allocation5 + $0x1a70] sm:$0xff]
        %v1192 = vld [vmem:[#allocation5 + $0x1a78] sm:$0xff]
        %v1193 = vld [vmem:[#allocation5 + $0x1a80] sm:$0xff]
        %v1194 = vld [vmem:[#allocation5 + $0x1a88] sm:$0xff]
        %v1195 = vld [vmem:[#allocation5 + $0x1a90] sm:$0xff]
        %v1196 = vld [vmem:[#allocation5 + $0x1a98] sm:$0xff]
        %v1197 = vld [vmem:[#allocation5 + $0x1aa0] sm:$0xff]
        %v1198 = vld [vmem:[#allocation5 + $0x1aa8] sm:$0xff]
        %v1199 = vld [vmem:[#allocation5 + $0x1ab0] sm:$0xff]
        %v1200 = vld [vmem:[#allocation5 + $0x1ab8] sm:$0xff]
        %v1201 = vld [vmem:[#allocation5 + $0x1ac0] sm:$0xff]
        %v1202 = vld [vmem:[#allocation5 + $0x1ac8] sm:$0xff]
        %v1203 = vld [vmem:[#allocation5 + $0x1ad0] sm:$0xff]
        %v1204 = vld [vmem:[#allocation5 + $0x1ad8] sm:$0xff]
        %v1205 = vld [vmem:[#allocation5 + $0x1ae0] sm:$0xff]
        %v1206 = vld [vmem:[#allocation5 + $0x1ae8] sm:$0xff]
        %v1207 = vld [vmem:[#allocation5 + $0x1af0] sm:$0xff]
        %v1208 = vld [vmem:[#allocation5 + $0x1af8] sm:$0xff]
        %v1209 = vld [vmem:[#allocation5 + $0x1b00] sm:$0xff]
        %v1210 = vld [vmem:[#allocation5 + $0x1b08] sm:$0xff]
        %v1211 = vld [vmem:[#allocation5 + $0x1b10] sm:$0xff]
        %v1212 = vld [vmem:[#allocation5 + $0x1b18] sm:$0xff]
        %v1213 = vld [vmem:[#allocation5 + $0x1b20] sm:$0xff]
        %v1214 = vld [vmem:[#allocation5 + $0x1b28] sm:$0xff]
        %v1215 = vld [vmem:[#allocation5 + $0x1b30] sm:$0xff]
        %v1216 = vld [vmem:[#allocation5 + $0x1b38] sm:$0xff]
        %v1217 = vld [vmem:[#allocation5 + $0x1b40] sm:$0xff]
        %v1218 = vld [vmem:[#allocation5 + $0x1b48] sm:$0xff]
        %v1219 = vld [vmem:[#allocation5 + $0x1b50] sm:$0xff]
        %v1220 = vld [vmem:[#allocation5 + $0x1b58] sm:$0xff]
        %v1221 = vld [vmem:[#allocation5 + $0x1b60] sm:$0xff]
        %v1222 = vld [vmem:[#allocation5 + $0x1b68] sm:$0xff]
        %v1223 = vld [vmem:[#allocation5 + $0x1b70] sm:$0xff]
        %v1224 = vld [vmem:[#allocation5 + $0x1b78] sm:$0xff]
        %v1225 = vld [vmem:[#allocation5 + $0x1b80] sm:$0xff]
        %v1226 = vld [vmem:[#allocation5 + $0x1b88] sm:$0xff]
        %v1227 = vld [vmem:[#allocation5 + $0x1b90] sm:$0xff]
        %v1228 = vld [vmem:[#allocation5 + $0x1b98] sm:$0xff]
        %v1229 = vld [vmem:[#allocation5 + $0x1ba0] sm:$0xff]
        %v1230 = vld [vmem:[#allocation5 + $0x1ba8] sm:$0xff]
        %v1231 = vld [vmem:[#allocation5 + $0x1bb0] sm:$0xff]
        %v1232 = vld [vmem:[#allocation5 + $0x1bb8] sm:$0xff]
        %v1233 = vld [vmem:[#allocation5 + $0x1bc0] sm:$0xff]
        %v1234 = vld [vmem:[#allocation5 + $0x1bc8] sm:$0xff]
        %v1235 = vld [vmem:[#allocation5 + $0x1bd0] sm:$0xff]
        %v1236 = vld [vmem:[#allocation5 + $0x1bd8] sm:$0xff]
        %v1237 = vld [vmem:[#allocation5 + $0x1be0] sm:$0xff]
        %v1238 = vld [vmem:[#allocation5 + $0x1be8] sm:$0xff]
        %v1239 = vld [vmem:[#allocation5 + $0x1bf0] sm:$0xff]
        %v1240 = vld [vmem:[#allocation5 + $0x1bf8] sm:$0xff]
        %v1241 = vld [vmem:[#allocation5 + $0x1c00] sm:$0xff]
        %v1242 = vld [vmem:[#allocation5 + $0x1c08] sm:$0xff]
        %v1243 = vld [vmem:[#allocation5 + $0x1c10] sm:$0xff]
        %v1244 = vld [vmem:[#allocation5 + $0x1c18] sm:$0xff]
        %v1245 = vld [vmem:[#allocation5 + $0x1c20] sm:$0xff]
        %v1246 = vld [vmem:[#allocation5 + $0x1c28] sm:$0xff]
        %v1247 = vld [vmem:[#allocation5 + $0x1c30] sm:$0xff]
        %v1248 = vld [vmem:[#allocation5 + $0x1c38] sm:$0xff]
        %v1249 = vld [vmem:[#allocation5 + $0x1c40] sm:$0xff]
        %v1250 = vld [vmem:[#allocation5 + $0x1c48] sm:$0xff]
        %v1251 = vld [vmem:[#allocation5 + $0x1c50] sm:$0xff]
        %v1252 = vld [vmem:[#allocation5 + $0x1c58] sm:$0xff]
        %v1253 = vld [vmem:[#allocation5 + $0x1c60] sm:$0xff]
        %v1254 = vld [vmem:[#allocation5 + $0x1c68] sm:$0xff]
        %v1255 = vld [vmem:[#allocation5 + $0x1c70] sm:$0xff]
        %v1256 = vld [vmem:[#allocation5 + $0x1c78] sm:$0xff]
        %v1257 = vld [vmem:[#allocation5 + $0x1c80] sm:$0xff]
        %v1258 = vld [vmem:[#allocation5 + $0x1c88] sm:$0xff]
        %v1259 = vld [vmem:[#allocation5 + $0x1c90] sm:$0xff]
        %v1260 = vld [vmem:[#allocation5 + $0x1c98] sm:$0xff]
        %v1261 = vld [vmem:[#allocation5 + $0x1ca0] sm:$0xff]
        %v1262 = vld [vmem:[#allocation5 + $0x1ca8] sm:$0xff]
        %v1263 = vld [vmem:[#allocation5 + $0x1cb0] sm:$0xff]
        %v1264 = vld [vmem:[#allocation5 + $0x1cb8] sm:$0xff]
        %v1265 = vld [vmem:[#allocation5 + $0x1cc0] sm:$0xff]
        %v1266 = vld [vmem:[#allocation5 + $0x1cc8] sm:$0xff]
        %v1267 = vld [vmem:[#allocation5 + $0x1cd0] sm:$0xff]
        %v1268 = vld [vmem:[#allocation5 + $0x1cd8] sm:$0xff]
        %v1269 = vld [vmem:[#allocation5 + $0x1ce0] sm:$0xff]
        %v1270 = vld [vmem:[#allocation5 + $0x1ce8] sm:$0xff]
        %v1271 = vld [vmem:[#allocation5 + $0x1cf0] sm:$0xff]
        %v1272 = vld [vmem:[#allocation5 + $0x1cf8] sm:$0xff]
        %v1273 = vld [vmem:[#allocation5 + $0x1d00] sm:$0xff]
        %v1274 = vld [vmem:[#allocation5 + $0x1d08] sm:$0xff]
        %v1275 = vld [vmem:[#allocation5 + $0x1d10] sm:$0xff]
        %v1276 = vld [vmem:[#allocation5 + $0x1d18] sm:$0xff]
        %v1277 = vld [vmem:[#allocation5 + $0x1d20] sm:$0xff]
        %v1278 = vld [vmem:[#allocation5 + $0x1d28] sm:$0xff]
        %v1279 = vld [vmem:[#allocation5 + $0x1d30] sm:$0xff]
        %v1280 = vld [vmem:[#allocation5 + $0x1d38] sm:$0xff]
        %v1281 = vld [vmem:[#allocation5 + $0x1d40] sm:$0xff]
        %v1282 = vld [vmem:[#allocation5 + $0x1d48] sm:$0xff]
        %v1283 = vld [vmem:[#allocation5 + $0x1d50] sm:$0xff]
        %v1284 = vld [vmem:[#allocation5 + $0x1d58] sm:$0xff]
        %v1285 = vld [vmem:[#allocation5 + $0x1d60] sm:$0xff]
        %v1286 = vld [vmem:[#allocation5 + $0x1d68] sm:$0xff]
        %v1287 = vld [vmem:[#allocation5 + $0x1d70] sm:$0xff]
        %v1288 = vld [vmem:[#allocation5 + $0x1d78] sm:$0xff]
        %v1289 = vld [vmem:[#allocation5 + $0x1d80] sm:$0xff]
        %v1290 = vld [vmem:[#allocation5 + $0x1d88] sm:$0xff]
        %v1291 = vld [vmem:[#allocation5 + $0x1d90] sm:$0xff]
        %v1292 = vld [vmem:[#allocation5 + $0x1d98] sm:$0xff]
        %v1293 = vld [vmem:[#allocation5 + $0x1da0] sm:$0xff]
        %v1294 = vld [vmem:[#allocation5 + $0x1da8] sm:$0xff]
        %v1295 = vld [vmem:[#allocation5 + $0x1db0] sm:$0xff]
        %v1296 = vld [vmem:[#allocation5 + $0x1db8] sm:$0xff]
        %v1297 = vld [vmem:[#allocation5 + $0x1dc0] sm:$0xff]
        %v1298 = vld [vmem:[#allocation5 + $0x1dc8] sm:$0xff]
        %v1299 = vld [vmem:[#allocation5 + $0x1dd0] sm:$0xff]
        %v1300 = vld [vmem:[#allocation5 + $0x1dd8] sm:$0xff]
        %v1301 = vld [vmem:[#allocation5 + $0x1de0] sm:$0xff]
        %v1302 = vld [vmem:[#allocation5 + $0x1de8] sm:$0xff]
        %v1303 = vld [vmem:[#allocation5 + $0x1df0] sm:$0xff]
        %v1304 = vld [vmem:[#allocation5 + $0x1df8] sm:$0xff]
        %v1305 = vld [vmem:[#allocation5 + $0x1e00] sm:$0xff]
        %v1306 = vld [vmem:[#allocation5 + $0x1e08] sm:$0xff]
        %v1307 = vld [vmem:[#allocation5 + $0x1e10] sm:$0xff]
        %v1308 = vld [vmem:[#allocation5 + $0x1e18] sm:$0xff]
        %v1309 = vld [vmem:[#allocation5 + $0x1e20] sm:$0xff]
        %v1310 = vld [vmem:[#allocation5 + $0x1e28] sm:$0xff]
        %v1311 = vld [vmem:[#allocation5 + $0x1e30] sm:$0xff]
        %v1312 = vld [vmem:[#allocation5 + $0x1e38] sm:$0xff]
        %v1313 = vld [vmem:[#allocation5 + $0x1e40] sm:$0xff]
        %v1314 = vld [vmem:[#allocation5 + $0x1e48] sm:$0xff]
        %v1315 = vld [vmem:[#allocation5 + $0x1e50] sm:$0xff]
        %v1316 = vld [vmem:[#allocation5 + $0x1e58] sm:$0xff]
        %v1317 = vld [vmem:[#allocation5 + $0x1e60] sm:$0xff]
        %v1318 = vld [vmem:[#allocation5 + $0x1e68] sm:$0xff]
        %v1319 = vld [vmem:[#allocation5 + $0x1e70] sm:$0xff]
        %v1320 = vld [vmem:[#allocation5 + $0x1e78] sm:$0xff]
        %v1321 = vld [vmem:[#allocation5 + $0x1e80] sm:$0xff]
        %v1322 = vld [vmem:[#allocation5 + $0x1e88] sm:$0xff]
        %v1323 = vld [vmem:[#allocation5 + $0x1e90] sm:$0xff]
        %v1324 = vld [vmem:[#allocation5 + $0x1e98] sm:$0xff]
        %v1325 = vld [vmem:[#allocation5 + $0x1ea0] sm:$0xff]
        %v1326 = vld [vmem:[#allocation5 + $0x1ea8] sm:$0xff]
        %v1327 = vld [vmem:[#allocation5 + $0x1eb0] sm:$0xff]
        %v1328 = vld [vmem:[#allocation5 + $0x1eb8] sm:$0xff]
        %v1329 = vld [vmem:[#allocation5 + $0x1ec0] sm:$0xff]
        %v1330 = vld [vmem:[#allocation5 + $0x1ec8] sm:$0xff]
        %v1331 = vld [vmem:[#allocation5 + $0x1ed0] sm:$0xff]
        %v1332 = vld [vmem:[#allocation5 + $0x1ed8] sm:$0xff]
        %v1333 = vld [vmem:[#allocation5 + $0x1ee0] sm:$0xff]
        %v1334 = vld [vmem:[#allocation5 + $0x1ee8] sm:$0xff]
        %v1335 = vld [vmem:[#allocation5 + $0x1ef0] sm:$0xff]
        %v1336 = vld [vmem:[#allocation5 + $0x1ef8] sm:$0xff]
        %v1337 = vld [vmem:[#allocation5 + $0x1f00] sm:$0xff]
        %v1338 = vld [vmem:[#allocation5 + $0x1f08] sm:$0xff]
        %v1339 = vld [vmem:[#allocation5 + $0x1f10] sm:$0xff]
        %v1340 = vld [vmem:[#allocation5 + $0x1f18] sm:$0xff]
        %v1341 = vld [vmem:[#allocation5 + $0x1f20] sm:$0xff]
        %v1342 = vld [vmem:[#allocation5 + $0x1f28] sm:$0xff]
        %v1343 = vld [vmem:[#allocation5 + $0x1f30] sm:$0xff]
        %v1344 = vld [vmem:[#allocation5 + $0x1f38] sm:$0xff]
        %v1345 = vld [vmem:[#allocation5 + $0x1f40] sm:$0xff]
        %v1346 = vld [vmem:[#allocation5 + $0x1f48] sm:$0xff]
        %v1347 = vld [vmem:[#allocation5 + $0x1f50] sm:$0xff]
        %v1348 = vld [vmem:[#allocation5 + $0x1f58] sm:$0xff]
        %v1349 = vld [vmem:[#allocation5 + $0x1f60] sm:$0xff]
        %v1350 = vld [vmem:[#allocation5 + $0x1f68] sm:$0xff]
        %v1351 = vld [vmem:[#allocation5 + $0x1f70] sm:$0xff]
        %v1352 = vld [vmem:[#allocation5 + $0x1f78] sm:$0xff]
        %v1353 = vld [vmem:[#allocation5 + $0x1f80] sm:$0xff]
        %v1354 = vld [vmem:[#allocation5 + $0x1f88] sm:$0xff]
        %v1355 = vld [vmem:[#allocation5 + $0x1f90] sm:$0xff]
        %v1356 = vld [vmem:[#allocation5 + $0x1f98] sm:$0xff]
        %v1357 = vld [vmem:[#allocation5 + $0x1fa0] sm:$0xff]
        %v1358 = vld [vmem:[#allocation5 + $0x1fa8] sm:$0xff]
        %v1359 = vld [vmem:[#allocation5 + $0x1fb0] sm:$0xff]
        %v1360 = vld [vmem:[#allocation5 + $0x1fb8] sm:$0xff]
        %v1361 = vld [vmem:[#allocation5 + $0x1fc0] sm:$0xff]
        %v1362 = vld [vmem:[#allocation5 + $0x1fc8] sm:$0xff]
        %v1363 = vld [vmem:[#allocation5 + $0x1fd0] sm:$0xff]
        %v1364 = vld [vmem:[#allocation5 + $0x1fd8] sm:$0xff]
        %v1365 = vld [vmem:[#allocation5 + $0x1fe0] sm:$0xff]
        %v1366 = vld [vmem:[#allocation5 + $0x1fe8] sm:$0xff]
        %v1367 = vld [vmem:[#allocation5 + $0x1ff0] sm:$0xff]
        %v1368 = vld [vmem:[#allocation5 + $0x1ff8] sm:$0xff]
        %v1369 = vld [vmem:[#allocation5 + $0x2000] sm:$0xff]
        %v1370 = vld [vmem:[#allocation5 + $0x2008] sm:$0xff]
        %v1371 = vld [vmem:[#allocation5 + $0x2010] sm:$0xff]
        %v1372 = vld [vmem:[#allocation5 + $0x2018] sm:$0xff]
        %v1373 = vld [vmem:[#allocation5 + $0x2020] sm:$0xff]
        %v1374 = vld [vmem:[#allocation5 + $0x2028] sm:$0xff]
        %v1375 = vld [vmem:[#allocation5 + $0x2030] sm:$0xff]
        %v1376 = vld [vmem:[#allocation5 + $0x2038] sm:$0xff]
        %v1377 = vld [vmem:[#allocation5 + $0x2040] sm:$0xff]
        %v1378 = vld [vmem:[#allocation5 + $0x2048] sm:$0xff]
        %v1379 = vld [vmem:[#allocation5 + $0x2050] sm:$0xff]
        %v1380 = vld [vmem:[#allocation5 + $0x2058] sm:$0xff]
        %v1381 = vld [vmem:[#allocation5 + $0x2060] sm:$0xff]
        %v1382 = vld [vmem:[#allocation5 + $0x2068] sm:$0xff]
        %v1383 = vld [vmem:[#allocation5 + $0x2070] sm:$0xff]
        %v1384 = vld [vmem:[#allocation5 + $0x2078] sm:$0xff]
        %v1385 = vld [vmem:[#allocation5 + $0x2080] sm:$0xff]
        %v1386 = vld [vmem:[#allocation5 + $0x2088] sm:$0xff]
        %v1387 = vld [vmem:[#allocation5 + $0x2090] sm:$0xff]
        %v1388 = vld [vmem:[#allocation5 + $0x2098] sm:$0xff]
        %v1389 = vld [vmem:[#allocation5 + $0x20a0] sm:$0xff]
        %v1390 = vld [vmem:[#allocation5 + $0x20a8] sm:$0xff]
        %v1391 = vld [vmem:[#allocation5 + $0x20b0] sm:$0xff]
        %v1392 = vld [vmem:[#allocation5 + $0x20b8] sm:$0xff]
        %v1393 = vld [vmem:[#allocation5 + $0x20c0] sm:$0xff]
        %v1394 = vld [vmem:[#allocation5 + $0x20c8] sm:$0xff]
        %v1395 = vld [vmem:[#allocation5 + $0x20d0] sm:$0xff]
        %v1396 = vld [vmem:[#allocation5 + $0x20d8] sm:$0xff]
        %v1397 = vld [vmem:[#allocation5 + $0x20e0] sm:$0xff]
        %v1398 = vld [vmem:[#allocation5 + $0x20e8] sm:$0xff]
        %v1399 = vld [vmem:[#allocation5 + $0x20f0] sm:$0xff]
        %v1400 = vld [vmem:[#allocation5 + $0x20f8] sm:$0xff]
        %v1401 = vld [vmem:[#allocation5 + $0x2100] sm:$0xff]
        %v1402 = vld [vmem:[#allocation5 + $0x2108] sm:$0xff]
        %v1403 = vld [vmem:[#allocation5 + $0x2110] sm:$0xff]
        %v1404 = vld [vmem:[#allocation5 + $0x2118] sm:$0xff]
        %v1405 = vld [vmem:[#allocation5 + $0x2120] sm:$0xff]
        %v1406 = vld [vmem:[#allocation5 + $0x2128] sm:$0xff]
        %v1407 = vld [vmem:[#allocation5 + $0x2130] sm:$0xff]
        %v1408 = vld [vmem:[#allocation5 + $0x2138] sm:$0xff]
        %v1409 = vld [vmem:[#allocation5 + $0x2140] sm:$0xff]
        %v1410 = vld [vmem:[#allocation5 + $0x2148] sm:$0xff]
        %v1411 = vld [vmem:[#allocation5 + $0x2150] sm:$0xff]
        %v1412 = vld [vmem:[#allocation5 + $0x2158] sm:$0xff]
        %v1413 = vld [vmem:[#allocation5 + $0x2160] sm:$0xff]
        %v1414 = vld [vmem:[#allocation5 + $0x2168] sm:$0xff]
        %v1415 = vld [vmem:[#allocation5 + $0x2170] sm:$0xff]
        %v1416 = vld [vmem:[#allocation5 + $0x2178] sm:$0xff]
        %v1417 = vld [vmem:[#allocation5 + $0x2180] sm:$0xff]
        %v1418 = vld [vmem:[#allocation5 + $0x2188] sm:$0xff]
        %v1419 = vld [vmem:[#allocation5 + $0x2190] sm:$0xff]
        %v1420 = vld [vmem:[#allocation5 + $0x2198] sm:$0xff]
        %v1421 = vld [vmem:[#allocation5 + $0x21a0] sm:$0xff]
        %v1422 = vld [vmem:[#allocation5 + $0x21a8] sm:$0xff]
        %v1423 = vld [vmem:[#allocation5 + $0x21b0] sm:$0xff]
        %v1424 = vld [vmem:[#allocation5 + $0x21b8] sm:$0xff]
        %v1425 = vld [vmem:[#allocation5 + $0x21c0] sm:$0xff]
        %v1426 = vld [vmem:[#allocation5 + $0x21c8] sm:$0xff]
        %v1427 = vld [vmem:[#allocation5 + $0x21d0] sm:$0xff]
        %v1428 = vld [vmem:[#allocation5 + $0x21d8] sm:$0xff]
        %v1429 = vld [vmem:[#allocation5 + $0x21e0] sm:$0xff]
        %v1430 = vld [vmem:[#allocation5 + $0x21e8] sm:$0xff]
        %v1431 = vld [vmem:[#allocation5 + $0x21f0] sm:$0xff]
        %v1432 = vld [vmem:[#allocation5 + $0x21f8] sm:$0xff]
        %v1433 = vld [vmem:[#allocation5 + $0x2200] sm:$0xff]
        %v1434 = vld [vmem:[#allocation5 + $0x2208] sm:$0xff]
        %v1435 = vld [vmem:[#allocation5 + $0x2210] sm:$0xff]
        %v1436 = vld [vmem:[#allocation5 + $0x2218] sm:$0xff]
        %v1437 = vld [vmem:[#allocation5 + $0x2220] sm:$0xff]
        %v1438 = vld [vmem:[#allocation5 + $0x2228] sm:$0xff]
        %v1439 = vld [vmem:[#allocation5 + $0x2230] sm:$0xff]
        %v1440 = vld [vmem:[#allocation5 + $0x2238] sm:$0xff]
        %v1441 = vld [vmem:[#allocation5 + $0x2240] sm:$0xff]
        %v1442 = vld [vmem:[#allocation5 + $0x2248] sm:$0xff]
        %v1443 = vld [vmem:[#allocation5 + $0x2250] sm:$0xff]
        %v1444 = vld [vmem:[#allocation5 + $0x2258] sm:$0xff]
        %v1445 = vld [vmem:[#allocation5 + $0x2260] sm:$0xff]
        %v1446 = vld [vmem:[#allocation5 + $0x2268] sm:$0xff]
        %v1447 = vld [vmem:[#allocation5 + $0x2270] sm:$0xff]
        %v1448 = vld [vmem:[#allocation5 + $0x2278] sm:$0xff]
        %v1449 = vld [vmem:[#allocation5 + $0x2280] sm:$0xff]
        %v1450 = vld [vmem:[#allocation5 + $0x2288] sm:$0xff]
        %v1451 = vld [vmem:[#allocation5 + $0x2290] sm:$0xff]
        %v1452 = vld [vmem:[#allocation5 + $0x2298] sm:$0xff]
        %v1453 = vld [vmem:[#allocation5 + $0x22a0] sm:$0xff]
        %v1454 = vld [vmem:[#allocation5 + $0x22a8] sm:$0xff]
        %v1455 = vld [vmem:[#allocation5 + $0x22b0] sm:$0xff]
        %v1456 = vld [vmem:[#allocation5 + $0x22b8] sm:$0xff]
        %v1457 = vld [vmem:[#allocation5 + $0x22c0] sm:$0xff]
        %v1458 = vld [vmem:[#allocation5 + $0x22c8] sm:$0xff]
        %v1459 = vld [vmem:[#allocation5 + $0x22d0] sm:$0xff]
        %v1460 = vld [vmem:[#allocation5 + $0x22d8] sm:$0xff]
        %v1461 = vld [vmem:[#allocation5 + $0x22e0] sm:$0xff]
        %v1462 = vld [vmem:[#allocation5 + $0x22e8] sm:$0xff]
        %v1463 = vld [vmem:[#allocation5 + $0x22f0] sm:$0xff]
        %v1464 = vld [vmem:[#allocation5 + $0x22f8] sm:$0xff]
        %v1465 = vld [vmem:[#allocation5 + $0x2300] sm:$0xff]
        %v1466 = vld [vmem:[#allocation5 + $0x2308] sm:$0xff]
        %v1467 = vld [vmem:[#allocation5 + $0x2310] sm:$0xff]
        %v1468 = vld [vmem:[#allocation5 + $0x2318] sm:$0xff]
        %v1469 = vld [vmem:[#allocation5 + $0x2320] sm:$0xff]
        %v1470 = vld [vmem:[#allocation5 + $0x2328] sm:$0xff]
        %v1471 = vld [vmem:[#allocation5 + $0x2330] sm:$0xff]
        %v1472 = vld [vmem:[#allocation5 + $0x2338] sm:$0xff]
        %v1473 = vld [vmem:[#allocation5 + $0x2340] sm:$0xff]
        %v1474 = vld [vmem:[#allocation5 + $0x2348] sm:$0xff]
        %v1475 = vld [vmem:[#allocation5 + $0x2350] sm:$0xff]
        %v1476 = vld [vmem:[#allocation5 + $0x2358] sm:$0xff]
        %v1477 = vld [vmem:[#allocation5 + $0x2360] sm:$0xff]
        %v1478 = vld [vmem:[#allocation5 + $0x2368] sm:$0xff]
        %v1479 = vld [vmem:[#allocation5 + $0x2370] sm:$0xff]
        %v1480 = vld [vmem:[#allocation5 + $0x2378] sm:$0xff]
        %v1481 = vld [vmem:[#allocation5 + $0x2380] sm:$0xff]
        %v1482 = vld [vmem:[#allocation5 + $0x2388] sm:$0xff]
        %v1483 = vld [vmem:[#allocation5 + $0x2390] sm:$0xff]
        %v1484 = vld [vmem:[#allocation5 + $0x2398] sm:$0xff]
        %v1485 = vld [vmem:[#allocation5 + $0x23a0] sm:$0xff]
        %v1486 = vld [vmem:[#allocation5 + $0x23a8] sm:$0xff]
        %v1487 = vld [vmem:[#allocation5 + $0x23b0] sm:$0xff]
        %v1488 = vld [vmem:[#allocation5 + $0x23b8] sm:$0xff]
        %v1489 = vld [vmem:[#allocation5 + $0x23c0] sm:$0xff]
        %v1490 = vld [vmem:[#allocation5 + $0x23c8] sm:$0xff]
        %v1491 = vld [vmem:[#allocation5 + $0x23d0] sm:$0xff]
        %v1492 = vld [vmem:[#allocation5 + $0x23d8] sm:$0xff]
        %v1493 = vld [vmem:[#allocation5 + $0x23e0] sm:$0xff]
        %v1494 = vld [vmem:[#allocation5 + $0x23e8] sm:$0xff]
        %v1495 = vld [vmem:[#allocation5 + $0x23f0] sm:$0xff]
        %v1496 = vld [vmem:[#allocation5 + $0x23f8] sm:$0xff]
        %v1497 = vld [vmem:[#allocation5 + $0x2400] sm:$0xff]
        %v1498 = vld [vmem:[#allocation5 + $0x2408] sm:$0xff]
        %v1499 = vld [vmem:[#allocation5 + $0x2410] sm:$0xff]
        %v1500 = vld [vmem:[#allocation5 + $0x2418] sm:$0xff]
        %v1501 = vld [vmem:[#allocation5 + $0x2420] sm:$0xff]
        %v1502 = vld [vmem:[#allocation5 + $0x2428] sm:$0xff]
        %v1503 = vld [vmem:[#allocation5 + $0x2430] sm:$0xff]
        %v1504 = vld [vmem:[#allocation5 + $0x2438] sm:$0xff]
        %v1505 = vld [vmem:[#allocation5 + $0x2440] sm:$0xff]
        %v1506 = vld [vmem:[#allocation5 + $0x2448] sm:$0xff]
        %v1507 = vld [vmem:[#allocation5 + $0x2450] sm:$0xff]
        %v1508 = vld [vmem:[#allocation5 + $0x2458] sm:$0xff]
        %v1509 = vld [vmem:[#allocation5 + $0x2460] sm:$0xff]
        %v1510 = vld [vmem:[#allocation5 + $0x2468] sm:$0xff]
        %v1511 = vld [vmem:[#allocation5 + $0x2470] sm:$0xff]
        %v1512 = vld [vmem:[#allocation5 + $0x2478] sm:$0xff]
        %v1513 = vld [vmem:[#allocation5 + $0x2480] sm:$0xff]
        %v1514 = vld [vmem:[#allocation5 + $0x2488] sm:$0xff]
        %v1515 = vld [vmem:[#allocation5 + $0x2490] sm:$0xff]
        %v1516 = vld [vmem:[#allocation5 + $0x2498] sm:$0xff]
        %v1517 = vld [vmem:[#allocation5 + $0x24a0] sm:$0xff]
        %v1518 = vld [vmem:[#allocation5 + $0x24a8] sm:$0xff]
        %v1519 = vld [vmem:[#allocation5 + $0x24b0] sm:$0xff]
        %v1520 = vld [vmem:[#allocation5 + $0x24b8] sm:$0xff]
        %v1521 = vld [vmem:[#allocation5 + $0x24c0] sm:$0xff]
        %v1522 = vld [vmem:[#allocation5 + $0x24c8] sm:$0xff]
        %v1523 = vld [vmem:[#allocation5 + $0x24d0] sm:$0xff]
        %v1524 = vld [vmem:[#allocation5 + $0x24d8] sm:$0xff]
        %v1525 = vld [vmem:[#allocation5 + $0x24e0] sm:$0xff]
        %v1526 = vld [vmem:[#allocation5 + $0x24e8] sm:$0xff]
        %v1527 = vld [vmem:[#allocation5 + $0x24f0] sm:$0xff]
        %v1528 = vld [vmem:[#allocation5 + $0x24f8] sm:$0xff]
        %v1529 = vld [vmem:[#allocation5 + $0x2500] sm:$0xff]
        %v1530 = vld [vmem:[#allocation5 + $0x2508] sm:$0xff]
        %v1531 = vld [vmem:[#allocation5 + $0x2510] sm:$0xff]
        %v1532 = vld [vmem:[#allocation5 + $0x2518] sm:$0xff]
        %v1533 = vld [vmem:[#allocation5 + $0x2520] sm:$0xff]
        %v1534 = vld [vmem:[#allocation5 + $0x2528] sm:$0xff]
        %v1535 = vld [vmem:[#allocation5 + $0x2530] sm:$0xff]
        %v1536 = vld [vmem:[#allocation5 + $0x2538] sm:$0xff]
        %v1537 = vld [vmem:[#allocation5 + $0x2540] sm:$0xff]
        %v1538 = vld [vmem:[#allocation5 + $0x2548] sm:$0xff]
        %v1539 = vld [vmem:[#allocation5 + $0x2550] sm:$0xff]
        %v1540 = vld [vmem:[#allocation5 + $0x2558] sm:$0xff]
        %v1541 = vld [vmem:[#allocation5 + $0x2560] sm:$0xff]
        %v1542 = vld [vmem:[#allocation5 + $0x2568] sm:$0xff]
        %v1543 = vld [vmem:[#allocation5 + $0x2570] sm:$0xff]
        %v1544 = vld [vmem:[#allocation5 + $0x2578] sm:$0xff]
        %v1545 = vld [vmem:[#allocation5 + $0x2580] sm:$0xff]
        %v1546 = vld [vmem:[#allocation5 + $0x2588] sm:$0xff]
        %v1547 = vld [vmem:[#allocation5 + $0x2590] sm:$0xff]
        %v1548 = vld [vmem:[#allocation5 + $0x2598] sm:$0xff]
        %v1549 = vld [vmem:[#allocation5 + $0x25a0] sm:$0xff]
        %v1550 = vld [vmem:[#allocation5 + $0x25a8] sm:$0xff]
        %v1551 = vld [vmem:[#allocation5 + $0x25b0] sm:$0xff]
        %v1552 = vld [vmem:[#allocation5 + $0x25b8] sm:$0xff]
        %v1553 = vld [vmem:[#allocation5 + $0x25c0] sm:$0xff]
        %v1554 = vld [vmem:[#allocation5 + $0x25c8] sm:$0xff]
        %v1555 = vld [vmem:[#allocation5 + $0x25d0] sm:$0xff]
        %v1556 = vld [vmem:[#allocation5 + $0x25d8] sm:$0xff]
        %v1557 = vld [vmem:[#allocation5 + $0x25e0] sm:$0xff]
        %v1558 = vld [vmem:[#allocation5 + $0x25e8] sm:$0xff]
        %v1559 = vld [vmem:[#allocation5 + $0x25f0] sm:$0xff]
        %v1560 = vld [vmem:[#allocation5 + $0x25f8] sm:$0xff]
        %v1561 = vld [vmem:[#allocation5 + $0x2600] sm:$0xff]
        %v1562 = vld [vmem:[#allocation5 + $0x2608] sm:$0xff]
        %v1563 = vld [vmem:[#allocation5 + $0x2610] sm:$0xff]
        %v1564 = vld [vmem:[#allocation5 + $0x2618] sm:$0xff]
        %v1565 = vld [vmem:[#allocation5 + $0x2620] sm:$0xff]
        %v1566 = vld [vmem:[#allocation5 + $0x2628] sm:$0xff]
        %v1567 = vld [vmem:[#allocation5 + $0x2630] sm:$0xff]
        %v1568 = vld [vmem:[#allocation5 + $0x2638] sm:$0xff]
        %v1569 = vld [vmem:[#allocation5 + $0x2640] sm:$0xff]
        %v1570 = vld [vmem:[#allocation5 + $0x2648] sm:$0xff]
        %v1571 = vld [vmem:[#allocation5 + $0x2650] sm:$0xff]
        %v1572 = vld [vmem:[#allocation5 + $0x2658] sm:$0xff]
        %v1573 = vld [vmem:[#allocation5 + $0x2660] sm:$0xff]
        %v1574 = vld [vmem:[#allocation5 + $0x2668] sm:$0xff]
        %v1575 = vld [vmem:[#allocation5 + $0x2670] sm:$0xff]
        %v1576 = vld [vmem:[#allocation5 + $0x2678] sm:$0xff]
        %v1577 = vld [vmem:[#allocation5 + $0x2680] sm:$0xff]
        %v1578 = vld [vmem:[#allocation5 + $0x2688] sm:$0xff]
        %v1579 = vld [vmem:[#allocation5 + $0x2690] sm:$0xff]
        %v1580 = vld [vmem:[#allocation5 + $0x2698] sm:$0xff]
        %v1581 = vld [vmem:[#allocation5 + $0x26a0] sm:$0xff]
        %v1582 = vld [vmem:[#allocation5 + $0x26a8] sm:$0xff]
        %v1583 = vld [vmem:[#allocation5 + $0x26b0] sm:$0xff]
        %v1584 = vld [vmem:[#allocation5 + $0x26b8] sm:$0xff]
        %v1585 = vld [vmem:[#allocation5 + $0x26c0] sm:$0xff]
        %v1586 = vld [vmem:[#allocation5 + $0x26c8] sm:$0xff]
        %v1587 = vld [vmem:[#allocation5 + $0x26d0] sm:$0xff]
        %v1588 = vld [vmem:[#allocation5 + $0x26d8] sm:$0xff]
        %v1589 = vld [vmem:[#allocation5 + $0x26e0] sm:$0xff]
        %v1590 = vld [vmem:[#allocation5 + $0x26e8] sm:$0xff]
        %v1591 = vld [vmem:[#allocation5 + $0x26f0] sm:$0xff]
        %v1592 = vld [vmem:[#allocation5 + $0x26f8] sm:$0xff]
        %v1593 = vld [vmem:[#allocation5 + $0x2700] sm:$0xff]
        %v1594 = vld [vmem:[#allocation5 + $0x2708] sm:$0xff]
        %v1595 = vld [vmem:[#allocation5 + $0x2710] sm:$0xff]
        %v1596 = vld [vmem:[#allocation5 + $0x2718] sm:$0xff]
        %v1597 = vld [vmem:[#allocation5 + $0x2720] sm:$0xff]
        %v1598 = vld [vmem:[#allocation5 + $0x2728] sm:$0xff]
        %v1599 = vld [vmem:[#allocation5 + $0x2730] sm:$0xff]
        %v1600 = vld [vmem:[#allocation5 + $0x2738] sm:$0xff]
        %v1601 = vld [vmem:[#allocation5 + $0x2740] sm:$0xff]
        %v1602 = vld [vmem:[#allocation5 + $0x2748] sm:$0xff]
        %v1603 = vld [vmem:[#allocation5 + $0x2750] sm:$0xff]
        %v1604 = vld [vmem:[#allocation5 + $0x2758] sm:$0xff]
        %v1605 = vld [vmem:[#allocation5 + $0x2760] sm:$0xff]
        %v1606 = vld [vmem:[#allocation5 + $0x2768] sm:$0xff]
        %v1607 = vld [vmem:[#allocation5 + $0x2770] sm:$0xff]
        %v1608 = vld [vmem:[#allocation5 + $0x2778] sm:$0xff]
        %v1609 = vld [vmem:[#allocation5 + $0x2780] sm:$0xff]
        %v1610 = vld [vmem:[#allocation5 + $0x2788] sm:$0xff]
        %v1611 = vld [vmem:[#allocation5 + $0x2790] sm:$0xff]
        %v1612 = vld [vmem:[#allocation5 + $0x2798] sm:$0xff]
        %v1613 = vld [vmem:[#allocation5 + $0x27a0] sm:$0xff]
        %v1614 = vld [vmem:[#allocation5 + $0x27a8] sm:$0xff]
        %v1615 = vld [vmem:[#allocation5 + $0x27b0] sm:$0xff]
        %v1616 = vld [vmem:[#allocation5 + $0x27b8] sm:$0xff]
        %v1617 = vld [vmem:[#allocation5 + $0x27c0] sm:$0xff]
        %v1618 = vld [vmem:[#allocation5 + $0x27c8] sm:$0xff]
        %v1619 = vld [vmem:[#allocation5 + $0x27d0] sm:$0xff]
        %v1620 = vld [vmem:[#allocation5 + $0x27d8] sm:$0xff]
        %v1621 = vld [vmem:[#allocation5 + $0x27e0] sm:$0xff]
        %v1622 = vld [vmem:[#allocation5 + $0x27e8] sm:$0xff]
        %v1623 = vld [vmem:[#allocation5 + $0x27f0] sm:$0xff]
        %v1624 = vld [vmem:[#allocation5 + $0x27f8] sm:$0xff]
        %1625 = vmatpush.msra.mxu0 %v495
        %1626 = vmatpush.msra.mxu0 %v485
        %1627 = vmatpush.msra.mxu0 %v475
        %1628 = vmatpush.msra.mxu0 %v465
        %1629 = vmatpush.msra.mxu0 %v455
        %1630 = vmatpush.msra.mxu0 %v445
        %1631 = vmatpush.msra.mxu0 %v435
        %1632 = vmatpush.msra.mxu0 %v425
        %1633 = vmatpush.msra.mxu0 %v415
        %1634 = vmatpush.msra.mxu0 %v405
        %1635 = vmatpush.msra.mxu0 %v395
        %1636 = vmatpush.msra.mxu0 %v385
        %1637 = vmatpush.msra.mxu0 %v375
        %1638 = vmatpush.msra.mxu0 %v365
        %1639 = vmatpush.msra.mxu0 %v355
        %1640 = vmatpush.msra.mxu0 %v345
        %1641 = vmatmul.f32.gmra.mxu0 %v329
        %v1642 = vpop.f32.mrf.mxu0
        %v1643 = vadd.f32 0.0, %v1642
        %1644 = vmatmul.f32.gmra.mxu0 %v337
        %v1645 = vpop.f32.mrf.mxu0
        %v1646 = vadd.f32 0.0, %v1645
        %1647 = vdwg.mxu0
        %1648 = vmatpush.msra.mxu0 %v655
        %1649 = vmatpush.msra.mxu0 %v645
        %1650 = vmatpush.msra.mxu0 %v635
        %1651 = vmatpush.msra.mxu0 %v625
        %1652 = vmatpush.msra.mxu0 %v615
        %1653 = vmatpush.msra.mxu0 %v605
        %1654 = vmatpush.msra.mxu0 %v595
        %1655 = vmatpush.msra.mxu0 %v585
        %1656 = vmatpush.msra.mxu0 %v575
        %1657 = vmatpush.msra.mxu0 %v565
        %1658 = vmatpush.msra.mxu0 %v555
        %1659 = vmatpush.msra.mxu0 %v545
        %1660 = vmatpush.msra.mxu0 %v535
        %1661 = vmatpush.msra.mxu0 %v525
        %1662 = vmatpush.msra.mxu0 %v515
        %1663 = vmatpush.msra.mxu0 %v505
        %1664 = vmatmul.f32.gmra.mxu0 %v330
        %v1665 = vpop.f32.mrf.mxu0
        %v1666 = vadd.f32 %v1643, %v1665
        %1667 = vmatmul.f32.gmra.mxu0 %v338
        %v1668 = vpop.f32.mrf.mxu0
        %v1669 = vadd.f32 %v1646, %v1668
        %1670 = vdwg.mxu0
        %1671 = vmatpush.msra.mxu0 %v815
        %1672 = vmatpush.msra.mxu0 %v805
        %1673 = vmatpush.msra.mxu0 %v795
        %1674 = vmatpush.msra.mxu0 %v785
        %1675 = vmatpush.msra.mxu0 %v775
        %1676 = vmatpush.msra.mxu0 %v765
        %1677 = vmatpush.msra.mxu0 %v755
        %1678 = vmatpush.msra.mxu0 %v745
        %1679 = vmatpush.msra.mxu0 %v735
        %1680 = vmatpush.msra.mxu0 %v725
        %1681 = vmatpush.msra.mxu0 %v715
        %1682 = vmatpush.msra.mxu0 %v705
        %1683 = vmatpush.msra.mxu0 %v695
        %1684 = vmatpush.msra.mxu0 %v685
        %1685 = vmatpush.msra.mxu0 %v675
        %1686 = vmatpush.msra.mxu0 %v665
        %1687 = vmatmul.f32.gmra.mxu0 %v331
        %v1688 = vpop.f32.mrf.mxu0
        %v1689 = vadd.f32 %v1666, %v1688
        %1690 = vmatmul.f32.gmra.mxu0 %v339
        %v1691 = vpop.f32.mrf.mxu0
        %v1692 = vadd.f32 %v1669, %v1691
        %1693 = vdwg.mxu0
        %1694 = vmatpush.msra.mxu0 %v975
        %1695 = vmatpush.msra.mxu0 %v965
        %1696 = vmatpush.msra.mxu0 %v955
        %1697 = vmatpush.msra.mxu0 %v945
        %1698 = vmatpush.msra.mxu0 %v935
        %1699 = vmatpush.msra.mxu0 %v925
        %1700 = vmatpush.msra.mxu0 %v915
        %1701 = vmatpush.msra.mxu0 %v905
        %1702 = vmatpush.msra.mxu0 %v895
        %1703 = vmatpush.msra.mxu0 %v885
        %1704 = vmatpush.msra.mxu0 %v875
        %1705 = vmatpush.msra.mxu0 %v865
        %1706 = vmatpush.msra.mxu0 %v855
        %1707 = vmatpush.msra.mxu0 %v845
        %1708 = vmatpush.msra.mxu0 %v835
        %1709 = vmatpush.msra.mxu0 %v825
        %1710 = vmatmul.f32.gmra.mxu0 %v332
        %v1711 = vpop.f32.mrf.mxu0
        %v1712 = vadd.f32 %v1689, %v1711
        %1713 = vmatmul.f32.gmra.mxu0 %v340
        %v1714 = vpop.f32.mrf.mxu0
        %v1715 = vadd.f32 %v1692, %v1714
        %1716 = vdwg.mxu0
        %1717 = vmatpush.msra.mxu0 %v1135
        %1718 = vmatpush.msra.mxu0 %v1125
        %1719 = vmatpush.msra.mxu0 %v1115
        %1720 = vmatpush.msra.mxu0 %v1105
        %1721 = vmatpush.msra.mxu0 %v1095
        %1722 = vmatpush.msra.mxu0 %v1085
        %1723 = vmatpush.msra.mxu0 %v1075
        %1724 = vmatpush.msra.mxu0 %v1065
        %1725 = vmatpush.msra.mxu0 %v1055
        %1726 = vmatpush.msra.mxu0 %v1045
        %1727 = vmatpush.msra.mxu0 %v1035
        %1728 = vmatpush.msra.mxu0 %v1025
        %1729 = vmatpush.msra.mxu0 %v1015
        %1730 = vmatpush.msra.mxu0 %v1005
        %1731 = vmatpush.msra.mxu0 %v995
        %1732 = vmatpush.msra.mxu0 %v985
        %1733 = vmatmul.f32.gmra.mxu0 %v333
        %v1734 = vpop.f32.mrf.mxu0
        %v1735 = vadd.f32 %v1712, %v1734
        %1736 = vmatmul.f32.gmra.mxu0 %v341
        %v1737 = vpop.f32.mrf.mxu0
        %v1738 = vadd.f32 %v1715, %v1737
        %1739 = vdwg.mxu0
        %1740 = vmatpush.msra.mxu0 %v1295
        %1741 = vmatpush.msra.mxu0 %v1285
        %1742 = vmatpush.msra.mxu0 %v1275
        %1743 = vmatpush.msra.mxu0 %v1265
        %1744 = vmatpush.msra.mxu0 %v1255
        %1745 = vmatpush.msra.mxu0 %v1245
        %1746 = vmatpush.msra.mxu0 %v1235
        %1747 = vmatpush.msra.mxu0 %v1225
        %1748 = vmatpush.msra.mxu0 %v1215
        %1749 = vmatpush.msra.mxu0 %v1205
        %1750 = vmatpush.msra.mxu0 %v1195
        %1751 = vmatpush.msra.mxu0 %v1185
        %1752 = vmatpush.msra.mxu0 %v1175
        %1753 = vmatpush.msra.mxu0 %v1165
        %1754 = vmatpush.msra.mxu0 %v1155
        %1755 = vmatpush.msra.mxu0 %v1145
        %1756 = vmatmul.f32.gmra.mxu0 %v334
        %v1757 = vpop.f32.mrf.mxu0
        %v1758 = vadd.f32 %v1735, %v1757
        %1759 = vmatmul.f32.gmra.mxu0 %v342
        %v1760 = vpop.f32.mrf.mxu0
        %v1761 = vadd.f32 %v1738, %v1760
        %1762 = vdwg.mxu0
        %1763 = vmatpush.msra.mxu0 %v1455
        %1764 = vmatpush.msra.mxu0 %v1445
        %1765 = vmatpush.msra.mxu0 %v1435
        %1766 = vmatpush.msra.mxu0 %v1425
        %1767 = vmatpush.msra.mxu0 %v1415
        %1768 = vmatpush.msra.mxu0 %v1405
        %1769 = vmatpush.msra.mxu0 %v1395
        %1770 = vmatpush.msra.mxu0 %v1385
        %1771 = vmatpush.msra.mxu0 %v1375
        %1772 = vmatpush.msra.mxu0 %v1365
        %1773 = vmatpush.msra.mxu0 %v1355
        %1774 = vmatpush.msra.mxu0 %v1345
        %1775 = vmatpush.msra.mxu0 %v1335
        %1776 = vmatpush.msra.mxu0 %v1325
        %1777 = vmatpush.msra.mxu0 %v1315
        %1778 = vmatpush.msra.mxu0 %v1305
        %1779 = vmatmul.f32.gmra.mxu0 %v335
        %v1780 = vpop.f32.mrf.mxu0
        %v1781 = vadd.f32 %v1758, %v1780
        %1782 = vmatmul.f32.gmra.mxu0 %v343
        %v1783 = vpop.f32.mrf.mxu0
        %v1784 = vadd.f32 %v1761, %v1783
        %1785 = vdwg.mxu0
        %1786 = vmatpush.msra.mxu0 %v1615
        %1787 = vmatpush.msra.mxu0 %v1605
        %1788 = vmatpush.msra.mxu0 %v1595
        %1789 = vmatpush.msra.mxu0 %v1585
        %1790 = vmatpush.msra.mxu0 %v1575
        %1791 = vmatpush.msra.mxu0 %v1565
        %1792 = vmatpush.msra.mxu0 %v1555
        %1793 = vmatpush.msra.mxu0 %v1545
        %1794 = vmatpush.msra.mxu0 %v1535
        %1795 = vmatpush.msra.mxu0 %v1525
        %1796 = vmatpush.msra.mxu0 %v1515
        %1797 = vmatpush.msra.mxu0 %v1505
        %1798 = vmatpush.msra.mxu0 %v1495
        %1799 = vmatpush.msra.mxu0 %v1485
        %1800 = vmatpush.msra.mxu0 %v1475
        %1801 = vmatpush.msra.mxu0 %v1465
        %1802 = vmatmul.f32.gmra.mxu0 %v336
        %v1803 = vpop.f32.mrf.mxu0
        %v1804 = vadd.f32 %v1781, %v1803
        %1805 = vmatmul.f32.gmra.mxu0 %v344
        %v1806 = vpop.f32.mrf.mxu0
        %v1807 = vadd.f32 %v1784, %v1806
        %1808 = vdwg.mxu0
        %1809 = vmatpush.msra.mxu0 %v496
        %1810 = vmatpush.msra.mxu0 %v486
        %1811 = vmatpush.msra.mxu0 %v476
        %1812 = vmatpush.msra.mxu0 %v466
        %1813 = vmatpush.msra.mxu0 %v456
        %1814 = vmatpush.msra.mxu0 %v446
        %1815 = vmatpush.msra.mxu0 %v436
        %1816 = vmatpush.msra.mxu0 %v426
        %1817 = vmatpush.msra.mxu0 %v416
        %1818 = vmatpush.msra.mxu0 %v406
        %1819 = vmatpush.msra.mxu0 %v396
        %1820 = vmatpush.msra.mxu0 %v386
        %1821 = vmatpush.msra.mxu0 %v376
        %1822 = vmatpush.msra.mxu0 %v366
        %1823 = vmatpush.msra.mxu0 %v356
        %1824 = vmatpush.msra.mxu0 %v346
        %1825 = vmatmul.f32.gmra.mxu0 %v329
        %v1826 = vpop.f32.mrf.mxu0
        %v1827 = vadd.f32 0.0, %v1826
        %1828 = vmatmul.f32.gmra.mxu0 %v337
        %v1829 = vpop.f32.mrf.mxu0
        %v1830 = vadd.f32 0.0, %v1829
        %1831 = vdwg.mxu0
        %1832 = vmatpush.msra.mxu0 %v656
        %1833 = vmatpush.msra.mxu0 %v646
        %1834 = vmatpush.msra.mxu0 %v636
        %1835 = vmatpush.msra.mxu0 %v626
        %1836 = vmatpush.msra.mxu0 %v616
        %1837 = vmatpush.msra.mxu0 %v606
        %1838 = vmatpush.msra.mxu0 %v596
        %1839 = vmatpush.msra.mxu0 %v586
        %1840 = vmatpush.msra.mxu0 %v576
        %1841 = vmatpush.msra.mxu0 %v566
        %1842 = vmatpush.msra.mxu0 %v556
        %1843 = vmatpush.msra.mxu0 %v546
        %1844 = vmatpush.msra.mxu0 %v536
        %1845 = vmatpush.msra.mxu0 %v526
        %1846 = vmatpush.msra.mxu0 %v516
        %1847 = vmatpush.msra.mxu0 %v506
        %1848 = vmatmul.f32.gmra.mxu0 %v330
        %v1849 = vpop.f32.mrf.mxu0
        %v1850 = vadd.f32 %v1827, %v1849
        %1851 = vmatmul.f32.gmra.mxu0 %v338
        %v1852 = vpop.f32.mrf.mxu0
        %v1853 = vadd.f32 %v1830, %v1852
        %1854 = vdwg.mxu0
        %1855 = vmatpush.msra.mxu0 %v816
        %1856 = vmatpush.msra.mxu0 %v806
        %1857 = vmatpush.msra.mxu0 %v796
        %1858 = vmatpush.msra.mxu0 %v786
        %1859 = vmatpush.msra.mxu0 %v776
        %1860 = vmatpush.msra.mxu0 %v766
        %1861 = vmatpush.msra.mxu0 %v756
        %1862 = vmatpush.msra.mxu0 %v746
        %1863 = vmatpush.msra.mxu0 %v736
        %1864 = vmatpush.msra.mxu0 %v726
        %1865 = vmatpush.msra.mxu0 %v716
        %1866 = vmatpush.msra.mxu0 %v706
        %1867 = vmatpush.msra.mxu0 %v696
        %1868 = vmatpush.msra.mxu0 %v686
        %1869 = vmatpush.msra.mxu0 %v676
        %1870 = vmatpush.msra.mxu0 %v666
        %1871 = vmatmul.f32.gmra.mxu0 %v331
        %v1872 = vpop.f32.mrf.mxu0
        %v1873 = vadd.f32 %v1850, %v1872
        %1874 = vmatmul.f32.gmra.mxu0 %v339
        %v1875 = vpop.f32.mrf.mxu0
        %v1876 = vadd.f32 %v1853, %v1875
        %1877 = vdwg.mxu0
        %1878 = vmatpush.msra.mxu0 %v976
        %1879 = vmatpush.msra.mxu0 %v966
        %1880 = vmatpush.msra.mxu0 %v956
        %1881 = vmatpush.msra.mxu0 %v946
        %1882 = vmatpush.msra.mxu0 %v936
        %1883 = vmatpush.msra.mxu0 %v926
        %1884 = vmatpush.msra.mxu0 %v916
        %1885 = vmatpush.msra.mxu0 %v906
        %1886 = vmatpush.msra.mxu0 %v896
        %1887 = vmatpush.msra.mxu0 %v886
        %1888 = vmatpush.msra.mxu0 %v876
        %1889 = vmatpush.msra.mxu0 %v866
        %1890 = vmatpush.msra.mxu0 %v856
        %1891 = vmatpush.msra.mxu0 %v846
        %1892 = vmatpush.msra.mxu0 %v836
        %1893 = vmatpush.msra.mxu0 %v826
        %1894 = vmatmul.f32.gmra.mxu0 %v332
        %v1895 = vpop.f32.mrf.mxu0
        %v1896 = vadd.f32 %v1873, %v1895
        %1897 = vmatmul.f32.gmra.mxu0 %v340
        %v1898 = vpop.f32.mrf.mxu0
        %v1899 = vadd.f32 %v1876, %v1898
        %1900 = vdwg.mxu0
        %1901 = vmatpush.msra.mxu0 %v1136
        %1902 = vmatpush.msra.mxu0 %v1126
        %1903 = vmatpush.msra.mxu0 %v1116
        %1904 = vmatpush.msra.mxu0 %v1106
        %1905 = vmatpush.msra.mxu0 %v1096
        %1906 = vmatpush.msra.mxu0 %v1086
        %1907 = vmatpush.msra.mxu0 %v1076
        %1908 = vmatpush.msra.mxu0 %v1066
        %1909 = vmatpush.msra.mxu0 %v1056
        %1910 = vmatpush.msra.mxu0 %v1046
        %1911 = vmatpush.msra.mxu0 %v1036
        %1912 = vmatpush.msra.mxu0 %v1026
        %1913 = vmatpush.msra.mxu0 %v1016
        %1914 = vmatpush.msra.mxu0 %v1006
        %1915 = vmatpush.msra.mxu0 %v996
        %1916 = vmatpush.msra.mxu0 %v986
        %1917 = vmatmul.f32.gmra.mxu0 %v333
        %v1918 = vpop.f32.mrf.mxu0
        %v1919 = vadd.f32 %v1896, %v1918
        %1920 = vmatmul.f32.gmra.mxu0 %v341
        %v1921 = vpop.f32.mrf.mxu0
        %v1922 = vadd.f32 %v1899, %v1921
        %1923 = vdwg.mxu0
        %1924 = vmatpush.msra.mxu0 %v1296
        %1925 = vmatpush.msra.mxu0 %v1286
        %1926 = vmatpush.msra.mxu0 %v1276
        %1927 = vmatpush.msra.mxu0 %v1266
        %1928 = vmatpush.msra.mxu0 %v1256
        %1929 = vmatpush.msra.mxu0 %v1246
        %1930 = vmatpush.msra.mxu0 %v1236
        %1931 = vmatpush.msra.mxu0 %v1226
        %1932 = vmatpush.msra.mxu0 %v1216
        %1933 = vmatpush.msra.mxu0 %v1206
        %1934 = vmatpush.msra.mxu0 %v1196
        %1935 = vmatpush.msra.mxu0 %v1186
        %1936 = vmatpush.msra.mxu0 %v1176
        %1937 = vmatpush.msra.mxu0 %v1166
        %1938 = vmatpush.msra.mxu0 %v1156
        %1939 = vmatpush.msra.mxu0 %v1146
        %1940 = vmatmul.f32.gmra.mxu0 %v334
        %v1941 = vpop.f32.mrf.mxu0
        %v1942 = vadd.f32 %v1919, %v1941
        %1943 = vmatmul.f32.gmra.mxu0 %v342
        %v1944 = vpop.f32.mrf.mxu0
        %v1945 = vadd.f32 %v1922, %v1944
        %1946 = vdwg.mxu0
        %1947 = vmatpush.msra.mxu0 %v1456
        %1948 = vmatpush.msra.mxu0 %v1446
        %1949 = vmatpush.msra.mxu0 %v1436
        %1950 = vmatpush.msra.mxu0 %v1426
        %1951 = vmatpush.msra.mxu0 %v1416
        %1952 = vmatpush.msra.mxu0 %v1406
        %1953 = vmatpush.msra.mxu0 %v1396
        %1954 = vmatpush.msra.mxu0 %v1386
        %1955 = vmatpush.msra.mxu0 %v1376
        %1956 = vmatpush.msra.mxu0 %v1366
        %1957 = vmatpush.msra.mxu0 %v1356
        %1958 = vmatpush.msra.mxu0 %v1346
        %1959 = vmatpush.msra.mxu0 %v1336
        %1960 = vmatpush.msra.mxu0 %v1326
        %1961 = vmatpush.msra.mxu0 %v1316
        %1962 = vmatpush.msra.mxu0 %v1306
        %1963 = vmatmul.f32.gmra.mxu0 %v335
        %v1964 = vpop.f32.mrf.mxu0
        %v1965 = vadd.f32 %v1942, %v1964
        %1966 = vmatmul.f32.gmra.mxu0 %v343
        %v1967 = vpop.f32.mrf.mxu0
        %v1968 = vadd.f32 %v1945, %v1967
        %1969 = vdwg.mxu0
        %1970 = vmatpush.msra.mxu0 %v1616
        %1971 = vmatpush.msra.mxu0 %v1606
        %1972 = vmatpush.msra.mxu0 %v1596
        %1973 = vmatpush.msra.mxu0 %v1586
        %1974 = vmatpush.msra.mxu0 %v1576
        %1975 = vmatpush.msra.mxu0 %v1566
        %1976 = vmatpush.msra.mxu0 %v1556
        %1977 = vmatpush.msra.mxu0 %v1546
        %1978 = vmatpush.msra.mxu0 %v1536
        %1979 = vmatpush.msra.mxu0 %v1526
        %1980 = vmatpush.msra.mxu0 %v1516
        %1981 = vmatpush.msra.mxu0 %v1506
        %1982 = vmatpush.msra.mxu0 %v1496
        %1983 = vmatpush.msra.mxu0 %v1486
        %1984 = vmatpush.msra.mxu0 %v1476
        %1985 = vmatpush.msra.mxu0 %v1466
        %1986 = vmatmul.f32.gmra.mxu0 %v336
        %v1987 = vpop.f32.mrf.mxu0
        %v1988 = vadd.f32 %v1965, %v1987
        %1989 = vmatmul.f32.gmra.mxu0 %v344
        %v1990 = vpop.f32.mrf.mxu0
        %v1991 = vadd.f32 %v1968, %v1990
        %1992 = vdwg.mxu0
        %1993 = vmatpush.msra.mxu0 %v497
        %1994 = vmatpush.msra.mxu0 %v487
        %1995 = vmatpush.msra.mxu0 %v477
        %1996 = vmatpush.msra.mxu0 %v467
        %1997 = vmatpush.msra.mxu0 %v457
        %1998 = vmatpush.msra.mxu0 %v447
        %1999 = vmatpush.msra.mxu0 %v437
        %2000 = vmatpush.msra.mxu0 %v427
        %2001 = vmatpush.msra.mxu0 %v417
        %2002 = vmatpush.msra.mxu0 %v407
        %2003 = vmatpush.msra.mxu0 %v397
        %2004 = vmatpush.msra.mxu0 %v387
        %2005 = vmatpush.msra.mxu0 %v377
        %2006 = vmatpush.msra.mxu0 %v367
        %2007 = vmatpush.msra.mxu0 %v357
        %2008 = vmatpush.msra.mxu0 %v347
        %2009 = vmatmul.f32.gmra.mxu0 %v329
        %v2010 = vpop.f32.mrf.mxu0
        %v2011 = vadd.f32 0.0, %v2010
        %2012 = vmatmul.f32.gmra.mxu0 %v337
        %v2013 = vpop.f32.mrf.mxu0
        %v2014 = vadd.f32 0.0, %v2013
        %2015 = vdwg.mxu0
        %2016 = vmatpush.msra.mxu0 %v657
        %2017 = vmatpush.msra.mxu0 %v647
        %2018 = vmatpush.msra.mxu0 %v637
        %2019 = vmatpush.msra.mxu0 %v627
        %2020 = vmatpush.msra.mxu0 %v617
        %2021 = vmatpush.msra.mxu0 %v607
        %2022 = vmatpush.msra.mxu0 %v597
        %2023 = vmatpush.msra.mxu0 %v587
        %2024 = vmatpush.msra.mxu0 %v577
        %2025 = vmatpush.msra.mxu0 %v567
        %2026 = vmatpush.msra.mxu0 %v557
        %2027 = vmatpush.msra.mxu0 %v547
        %2028 = vmatpush.msra.mxu0 %v537
        %2029 = vmatpush.msra.mxu0 %v527
        %2030 = vmatpush.msra.mxu0 %v517
        %2031 = vmatpush.msra.mxu0 %v507
        %2032 = vmatmul.f32.gmra.mxu0 %v330
        %v2033 = vpop.f32.mrf.mxu0
        %v2034 = vadd.f32 %v2011, %v2033
        %2035 = vmatmul.f32.gmra.mxu0 %v338
        %v2036 = vpop.f32.mrf.mxu0
        %v2037 = vadd.f32 %v2014, %v2036
        %2038 = vdwg.mxu0
        %2039 = vmatpush.msra.mxu0 %v817
        %2040 = vmatpush.msra.mxu0 %v807
        %2041 = vmatpush.msra.mxu0 %v797
        %2042 = vmatpush.msra.mxu0 %v787
        %2043 = vmatpush.msra.mxu0 %v777
        %2044 = vmatpush.msra.mxu0 %v767
        %2045 = vmatpush.msra.mxu0 %v757
        %2046 = vmatpush.msra.mxu0 %v747
        %2047 = vmatpush.msra.mxu0 %v737
        %2048 = vmatpush.msra.mxu0 %v727
        %2049 = vmatpush.msra.mxu0 %v717
        %2050 = vmatpush.msra.mxu0 %v707
        %2051 = vmatpush.msra.mxu0 %v697
        %2052 = vmatpush.msra.mxu0 %v687
        %2053 = vmatpush.msra.mxu0 %v677
        %2054 = vmatpush.msra.mxu0 %v667
        %2055 = vmatmul.f32.gmra.mxu0 %v331
        %v2056 = vpop.f32.mrf.mxu0
        %v2057 = vadd.f32 %v2034, %v2056
        %2058 = vmatmul.f32.gmra.mxu0 %v339
        %v2059 = vpop.f32.mrf.mxu0
        %v2060 = vadd.f32 %v2037, %v2059
        %2061 = vdwg.mxu0
        %2062 = vmatpush.msra.mxu0 %v977
        %2063 = vmatpush.msra.mxu0 %v967
        %2064 = vmatpush.msra.mxu0 %v957
        %2065 = vmatpush.msra.mxu0 %v947
        %2066 = vmatpush.msra.mxu0 %v937
        %2067 = vmatpush.msra.mxu0 %v927
        %2068 = vmatpush.msra.mxu0 %v917
        %2069 = vmatpush.msra.mxu0 %v907
        %2070 = vmatpush.msra.mxu0 %v897
        %2071 = vmatpush.msra.mxu0 %v887
        %2072 = vmatpush.msra.mxu0 %v877
        %2073 = vmatpush.msra.mxu0 %v867
        %2074 = vmatpush.msra.mxu0 %v857
        %2075 = vmatpush.msra.mxu0 %v847
        %2076 = vmatpush.msra.mxu0 %v837
        %2077 = vmatpush.msra.mxu0 %v827
        %2078 = vmatmul.f32.gmra.mxu0 %v332
        %v2079 = vpop.f32.mrf.mxu0
        %v2080 = vadd.f32 %v2057, %v2079
        %2081 = vmatmul.f32.gmra.mxu0 %v340
        %v2082 = vpop.f32.mrf.mxu0
        %v2083 = vadd.f32 %v2060, %v2082
        %2084 = vdwg.mxu0
        %2085 = vmatpush.msra.mxu0 %v1137
        %2086 = vmatpush.msra.mxu0 %v1127
        %2087 = vmatpush.msra.mxu0 %v1117
        %2088 = vmatpush.msra.mxu0 %v1107
        %2089 = vmatpush.msra.mxu0 %v1097
        %2090 = vmatpush.msra.mxu0 %v1087
        %2091 = vmatpush.msra.mxu0 %v1077
        %2092 = vmatpush.msra.mxu0 %v1067
        %2093 = vmatpush.msra.mxu0 %v1057
        %2094 = vmatpush.msra.mxu0 %v1047
        %2095 = vmatpush.msra.mxu0 %v1037
        %2096 = vmatpush.msra.mxu0 %v1027
        %2097 = vmatpush.msra.mxu0 %v1017
        %2098 = vmatpush.msra.mxu0 %v1007
        %2099 = vmatpush.msra.mxu0 %v997
        %2100 = vmatpush.msra.mxu0 %v987
        %2101 = vmatmul.f32.gmra.mxu0 %v333
        %v2102 = vpop.f32.mrf.mxu0
        %v2103 = vadd.f32 %v2080, %v2102
        %2104 = vmatmul.f32.gmra.mxu0 %v341
        %v2105 = vpop.f32.mrf.mxu0
        %v2106 = vadd.f32 %v2083, %v2105
        %2107 = vdwg.mxu0
        %2108 = vmatpush.msra.mxu0 %v1297
        %2109 = vmatpush.msra.mxu0 %v1287
        %2110 = vmatpush.msra.mxu0 %v1277
        %2111 = vmatpush.msra.mxu0 %v1267
        %2112 = vmatpush.msra.mxu0 %v1257
        %2113 = vmatpush.msra.mxu0 %v1247
        %2114 = vmatpush.msra.mxu0 %v1237
        %2115 = vmatpush.msra.mxu0 %v1227
        %2116 = vmatpush.msra.mxu0 %v1217
        %2117 = vmatpush.msra.mxu0 %v1207
        %2118 = vmatpush.msra.mxu0 %v1197
        %2119 = vmatpush.msra.mxu0 %v1187
        %2120 = vmatpush.msra.mxu0 %v1177
        %2121 = vmatpush.msra.mxu0 %v1167
        %2122 = vmatpush.msra.mxu0 %v1157
        %2123 = vmatpush.msra.mxu0 %v1147
        %2124 = vmatmul.f32.gmra.mxu0 %v334
        %v2125 = vpop.f32.mrf.mxu0
        %v2126 = vadd.f32 %v2103, %v2125
        %2127 = vmatmul.f32.gmra.mxu0 %v342
        %v2128 = vpop.f32.mrf.mxu0
        %v2129 = vadd.f32 %v2106, %v2128
        %2130 = vdwg.mxu0
        %2131 = vmatpush.msra.mxu0 %v1457
        %2132 = vmatpush.msra.mxu0 %v1447
        %2133 = vmatpush.msra.mxu0 %v1437
        %2134 = vmatpush.msra.mxu0 %v1427
        %2135 = vmatpush.msra.mxu0 %v1417
        %2136 = vmatpush.msra.mxu0 %v1407
        %2137 = vmatpush.msra.mxu0 %v1397
        %2138 = vmatpush.msra.mxu0 %v1387
        %2139 = vmatpush.msra.mxu0 %v1377
        %2140 = vmatpush.msra.mxu0 %v1367
        %2141 = vmatpush.msra.mxu0 %v1357
        %2142 = vmatpush.msra.mxu0 %v1347
        %2143 = vmatpush.msra.mxu0 %v1337
        %2144 = vmatpush.msra.mxu0 %v1327
        %2145 = vmatpush.msra.mxu0 %v1317
        %2146 = vmatpush.msra.mxu0 %v1307
        %2147 = vmatmul.f32.gmra.mxu0 %v335
        %v2148 = vpop.f32.mrf.mxu0
        %v2149 = vadd.f32 %v2126, %v2148
        %2150 = vmatmul.f32.gmra.mxu0 %v343
        %v2151 = vpop.f32.mrf.mxu0
        %v2152 = vadd.f32 %v2129, %v2151
        %2153 = vdwg.mxu0
        %2154 = vmatpush.msra.mxu0 %v1617
        %2155 = vmatpush.msra.mxu0 %v1607
        %2156 = vmatpush.msra.mxu0 %v1597
        %2157 = vmatpush.msra.mxu0 %v1587
        %2158 = vmatpush.msra.mxu0 %v1577
        %2159 = vmatpush.msra.mxu0 %v1567
        %2160 = vmatpush.msra.mxu0 %v1557
        %2161 = vmatpush.msra.mxu0 %v1547
        %2162 = vmatpush.msra.mxu0 %v1537
        %2163 = vmatpush.msra.mxu0 %v1527
        %2164 = vmatpush.msra.mxu0 %v1517
        %2165 = vmatpush.msra.mxu0 %v1507
        %2166 = vmatpush.msra.mxu0 %v1497
        %2167 = vmatpush.msra.mxu0 %v1487
        %2168 = vmatpush.msra.mxu0 %v1477
        %2169 = vmatpush.msra.mxu0 %v1467
        %2170 = vmatmul.f32.gmra.mxu0 %v336
        %v2171 = vpop.f32.mrf.mxu0
        %v2172 = vadd.f32 %v2149, %v2171
        %2173 = vmatmul.f32.gmra.mxu0 %v344
        %v2174 = vpop.f32.mrf.mxu0
        %v2175 = vadd.f32 %v2152, %v2174
        %2176 = vdwg.mxu0
        %2177 = vmatpush.msra.mxu0 %v498
        %2178 = vmatpush.msra.mxu0 %v488
        %2179 = vmatpush.msra.mxu0 %v478
        %2180 = vmatpush.msra.mxu0 %v468
        %2181 = vmatpush.msra.mxu0 %v458
        %2182 = vmatpush.msra.mxu0 %v448
        %2183 = vmatpush.msra.mxu0 %v438
        %2184 = vmatpush.msra.mxu0 %v428
        %2185 = vmatpush.msra.mxu0 %v418
        %2186 = vmatpush.msra.mxu0 %v408
        %2187 = vmatpush.msra.mxu0 %v398
        %2188 = vmatpush.msra.mxu0 %v388
        %2189 = vmatpush.msra.mxu0 %v378
        %2190 = vmatpush.msra.mxu0 %v368
        %2191 = vmatpush.msra.mxu0 %v358
        %2192 = vmatpush.msra.mxu0 %v348
        %2193 = vmatmul.f32.gmra.mxu0 %v329
        %v2194 = vpop.f32.mrf.mxu0
        %v2195 = vadd.f32 0.0, %v2194
        %2196 = vmatmul.f32.gmra.mxu0 %v337
        %v2197 = vpop.f32.mrf.mxu0
        %v2198 = vadd.f32 0.0, %v2197
        %2199 = vdwg.mxu0
        %2200 = vmatpush.msra.mxu0 %v658
        %2201 = vmatpush.msra.mxu0 %v648
        %2202 = vmatpush.msra.mxu0 %v638
        %2203 = vmatpush.msra.mxu0 %v628
        %2204 = vmatpush.msra.mxu0 %v618
        %2205 = vmatpush.msra.mxu0 %v608
        %2206 = vmatpush.msra.mxu0 %v598
        %2207 = vmatpush.msra.mxu0 %v588
        %2208 = vmatpush.msra.mxu0 %v578
        %2209 = vmatpush.msra.mxu0 %v568
        %2210 = vmatpush.msra.mxu0 %v558
        %2211 = vmatpush.msra.mxu0 %v548
        %2212 = vmatpush.msra.mxu0 %v538
        %2213 = vmatpush.msra.mxu0 %v528
        %2214 = vmatpush.msra.mxu0 %v518
        %2215 = vmatpush.msra.mxu0 %v508
        %2216 = vmatmul.f32.gmra.mxu0 %v330
        %v2217 = vpop.f32.mrf.mxu0
        %v2218 = vadd.f32 %v2195, %v2217
        %2219 = vmatmul.f32.gmra.mxu0 %v338
        %v2220 = vpop.f32.mrf.mxu0
        %v2221 = vadd.f32 %v2198, %v2220
        %2222 = vdwg.mxu0
        %2223 = vmatpush.msra.mxu0 %v818
        %2224 = vmatpush.msra.mxu0 %v808
        %2225 = vmatpush.msra.mxu0 %v798
        %2226 = vmatpush.msra.mxu0 %v788
        %2227 = vmatpush.msra.mxu0 %v778
        %2228 = vmatpush.msra.mxu0 %v768
        %2229 = vmatpush.msra.mxu0 %v758
        %2230 = vmatpush.msra.mxu0 %v748
        %2231 = vmatpush.msra.mxu0 %v738
        %2232 = vmatpush.msra.mxu0 %v728
        %2233 = vmatpush.msra.mxu0 %v718
        %2234 = vmatpush.msra.mxu0 %v708
        %2235 = vmatpush.msra.mxu0 %v698
        %2236 = vmatpush.msra.mxu0 %v688
        %2237 = vmatpush.msra.mxu0 %v678
        %2238 = vmatpush.msra.mxu0 %v668
        %2239 = vmatmul.f32.gmra.mxu0 %v331
        %v2240 = vpop.f32.mrf.mxu0
        %v2241 = vadd.f32 %v2218, %v2240
        %2242 = vmatmul.f32.gmra.mxu0 %v339
        %v2243 = vpop.f32.mrf.mxu0
        %v2244 = vadd.f32 %v2221, %v2243
        %2245 = vdwg.mxu0
        %2246 = vmatpush.msra.mxu0 %v978
        %2247 = vmatpush.msra.mxu0 %v968
        %2248 = vmatpush.msra.mxu0 %v958
        %2249 = vmatpush.msra.mxu0 %v948
        %2250 = vmatpush.msra.mxu0 %v938
        %2251 = vmatpush.msra.mxu0 %v928
        %2252 = vmatpush.msra.mxu0 %v918
        %2253 = vmatpush.msra.mxu0 %v908
        %2254 = vmatpush.msra.mxu0 %v898
        %2255 = vmatpush.msra.mxu0 %v888
        %2256 = vmatpush.msra.mxu0 %v878
        %2257 = vmatpush.msra.mxu0 %v868
        %2258 = vmatpush.msra.mxu0 %v858
        %2259 = vmatpush.msra.mxu0 %v848
        %2260 = vmatpush.msra.mxu0 %v838
        %2261 = vmatpush.msra.mxu0 %v828
        %2262 = vmatmul.f32.gmra.mxu0 %v332
        %v2263 = vpop.f32.mrf.mxu0
        %v2264 = vadd.f32 %v2241, %v2263
        %2265 = vmatmul.f32.gmra.mxu0 %v340
        %v2266 = vpop.f32.mrf.mxu0
        %v2267 = vadd.f32 %v2244, %v2266
        %2268 = vdwg.mxu0
        %2269 = vmatpush.msra.mxu0 %v1138
        %2270 = vmatpush.msra.mxu0 %v1128
        %2271 = vmatpush.msra.mxu0 %v1118
        %2272 = vmatpush.msra.mxu0 %v1108
        %2273 = vmatpush.msra.mxu0 %v1098
        %2274 = vmatpush.msra.mxu0 %v1088
        %2275 = vmatpush.msra.mxu0 %v1078
        %2276 = vmatpush.msra.mxu0 %v1068
        %2277 = vmatpush.msra.mxu0 %v1058
        %2278 = vmatpush.msra.mxu0 %v1048
        %2279 = vmatpush.msra.mxu0 %v1038
        %2280 = vmatpush.msra.mxu0 %v1028
        %2281 = vmatpush.msra.mxu0 %v1018
        %2282 = vmatpush.msra.mxu0 %v1008
        %2283 = vmatpush.msra.mxu0 %v998
        %2284 = vmatpush.msra.mxu0 %v988
        %2285 = vmatmul.f32.gmra.mxu0 %v333
        %v2286 = vpop.f32.mrf.mxu0
        %v2287 = vadd.f32 %v2264, %v2286
        %2288 = vmatmul.f32.gmra.mxu0 %v341
        %v2289 = vpop.f32.mrf.mxu0
        %v2290 = vadd.f32 %v2267, %v2289
        %2291 = vdwg.mxu0
        %2292 = vmatpush.msra.mxu0 %v1298
        %2293 = vmatpush.msra.mxu0 %v1288
        %2294 = vmatpush.msra.mxu0 %v1278
        %2295 = vmatpush.msra.mxu0 %v1268
        %2296 = vmatpush.msra.mxu0 %v1258
        %2297 = vmatpush.msra.mxu0 %v1248
        %2298 = vmatpush.msra.mxu0 %v1238
        %2299 = vmatpush.msra.mxu0 %v1228
        %2300 = vmatpush.msra.mxu0 %v1218
        %2301 = vmatpush.msra.mxu0 %v1208
        %2302 = vmatpush.msra.mxu0 %v1198
        %2303 = vmatpush.msra.mxu0 %v1188
        %2304 = vmatpush.msra.mxu0 %v1178
        %2305 = vmatpush.msra.mxu0 %v1168
        %2306 = vmatpush.msra.mxu0 %v1158
        %2307 = vmatpush.msra.mxu0 %v1148
        %2308 = vmatmul.f32.gmra.mxu0 %v334
        %v2309 = vpop.f32.mrf.mxu0
        %v2310 = vadd.f32 %v2287, %v2309
        %2311 = vmatmul.f32.gmra.mxu0 %v342
        %v2312 = vpop.f32.mrf.mxu0
        %v2313 = vadd.f32 %v2290, %v2312
        %2314 = vdwg.mxu0
        %2315 = vmatpush.msra.mxu0 %v1458
        %2316 = vmatpush.msra.mxu0 %v1448
        %2317 = vmatpush.msra.mxu0 %v1438
        %2318 = vmatpush.msra.mxu0 %v1428
        %2319 = vmatpush.msra.mxu0 %v1418
        %2320 = vmatpush.msra.mxu0 %v1408
        %2321 = vmatpush.msra.mxu0 %v1398
        %2322 = vmatpush.msra.mxu0 %v1388
        %2323 = vmatpush.msra.mxu0 %v1378
        %2324 = vmatpush.msra.mxu0 %v1368
        %2325 = vmatpush.msra.mxu0 %v1358
        %2326 = vmatpush.msra.mxu0 %v1348
        %2327 = vmatpush.msra.mxu0 %v1338
        %2328 = vmatpush.msra.mxu0 %v1328
        %2329 = vmatpush.msra.mxu0 %v1318
        %2330 = vmatpush.msra.mxu0 %v1308
        %2331 = vmatmul.f32.gmra.mxu0 %v335
        %v2332 = vpop.f32.mrf.mxu0
        %v2333 = vadd.f32 %v2310, %v2332
        %2334 = vmatmul.f32.gmra.mxu0 %v343
        %v2335 = vpop.f32.mrf.mxu0
        %v2336 = vadd.f32 %v2313, %v2335
        %2337 = vdwg.mxu0
        %2338 = vmatpush.msra.mxu0 %v1618
        %2339 = vmatpush.msra.mxu0 %v1608
        %2340 = vmatpush.msra.mxu0 %v1598
        %2341 = vmatpush.msra.mxu0 %v1588
        %2342 = vmatpush.msra.mxu0 %v1578
        %2343 = vmatpush.msra.mxu0 %v1568
        %2344 = vmatpush.msra.mxu0 %v1558
        %2345 = vmatpush.msra.mxu0 %v1548
        %2346 = vmatpush.msra.mxu0 %v1538
        %2347 = vmatpush.msra.mxu0 %v1528
        %2348 = vmatpush.msra.mxu0 %v1518
        %2349 = vmatpush.msra.mxu0 %v1508
        %2350 = vmatpush.msra.mxu0 %v1498
        %2351 = vmatpush.msra.mxu0 %v1488
        %2352 = vmatpush.msra.mxu0 %v1478
        %2353 = vmatpush.msra.mxu0 %v1468
        %2354 = vmatmul.f32.gmra.mxu0 %v336
        %v2355 = vpop.f32.mrf.mxu0
        %v2356 = vadd.f32 %v2333, %v2355
        %2357 = vmatmul.f32.gmra.mxu0 %v344
        %v2358 = vpop.f32.mrf.mxu0
        %v2359 = vadd.f32 %v2336, %v2358
        %2360 = vdwg.mxu0
        %2361 = vmatpush.msra.mxu0 %v499
        %2362 = vmatpush.msra.mxu0 %v489
        %2363 = vmatpush.msra.mxu0 %v479
        %2364 = vmatpush.msra.mxu0 %v469
        %2365 = vmatpush.msra.mxu0 %v459
        %2366 = vmatpush.msra.mxu0 %v449
        %2367 = vmatpush.msra.mxu0 %v439
        %2368 = vmatpush.msra.mxu0 %v429
        %2369 = vmatpush.msra.mxu0 %v419
        %2370 = vmatpush.msra.mxu0 %v409
        %2371 = vmatpush.msra.mxu0 %v399
        %2372 = vmatpush.msra.mxu0 %v389
        %2373 = vmatpush.msra.mxu0 %v379
        %2374 = vmatpush.msra.mxu0 %v369
        %2375 = vmatpush.msra.mxu0 %v359
        %2376 = vmatpush.msra.mxu0 %v349
        %2377 = vmatmul.f32.gmra.mxu0 %v329
        %v2378 = vpop.f32.mrf.mxu0
        %v2379 = vadd.f32 0.0, %v2378
        %2380 = vmatmul.f32.gmra.mxu0 %v337
        %v2381 = vpop.f32.mrf.mxu0
        %v2382 = vadd.f32 0.0, %v2381
        %2383 = vdwg.mxu0
        %2384 = vmatpush.msra.mxu0 %v659
        %2385 = vmatpush.msra.mxu0 %v649
        %2386 = vmatpush.msra.mxu0 %v639
        %2387 = vmatpush.msra.mxu0 %v629
        %2388 = vmatpush.msra.mxu0 %v619
        %2389 = vmatpush.msra.mxu0 %v609
        %2390 = vmatpush.msra.mxu0 %v599
        %2391 = vmatpush.msra.mxu0 %v589
        %2392 = vmatpush.msra.mxu0 %v579
        %2393 = vmatpush.msra.mxu0 %v569
        %2394 = vmatpush.msra.mxu0 %v559
        %2395 = vmatpush.msra.mxu0 %v549
        %2396 = vmatpush.msra.mxu0 %v539
        %2397 = vmatpush.msra.mxu0 %v529
        %2398 = vmatpush.msra.mxu0 %v519
        %2399 = vmatpush.msra.mxu0 %v509
        %2400 = vmatmul.f32.gmra.mxu0 %v330
        %v2401 = vpop.f32.mrf.mxu0
        %v2402 = vadd.f32 %v2379, %v2401
        %2403 = vmatmul.f32.gmra.mxu0 %v338
        %v2404 = vpop.f32.mrf.mxu0
        %v2405 = vadd.f32 %v2382, %v2404
        %2406 = vdwg.mxu0
        %2407 = vmatpush.msra.mxu0 %v819
        %2408 = vmatpush.msra.mxu0 %v809
        %2409 = vmatpush.msra.mxu0 %v799
        %2410 = vmatpush.msra.mxu0 %v789
        %2411 = vmatpush.msra.mxu0 %v779
        %2412 = vmatpush.msra.mxu0 %v769
        %2413 = vmatpush.msra.mxu0 %v759
        %2414 = vmatpush.msra.mxu0 %v749
        %2415 = vmatpush.msra.mxu0 %v739
        %2416 = vmatpush.msra.mxu0 %v729
        %2417 = vmatpush.msra.mxu0 %v719
        %2418 = vmatpush.msra.mxu0 %v709
        %2419 = vmatpush.msra.mxu0 %v699
        %2420 = vmatpush.msra.mxu0 %v689
        %2421 = vmatpush.msra.mxu0 %v679
        %2422 = vmatpush.msra.mxu0 %v669
        %2423 = vmatmul.f32.gmra.mxu0 %v331
        %v2424 = vpop.f32.mrf.mxu0
        %v2425 = vadd.f32 %v2402, %v2424
        %2426 = vmatmul.f32.gmra.mxu0 %v339
        %v2427 = vpop.f32.mrf.mxu0
        %v2428 = vadd.f32 %v2405, %v2427
        %2429 = vdwg.mxu0
        %2430 = vmatpush.msra.mxu0 %v979
        %2431 = vmatpush.msra.mxu0 %v969
        %2432 = vmatpush.msra.mxu0 %v959
        %2433 = vmatpush.msra.mxu0 %v949
        %2434 = vmatpush.msra.mxu0 %v939
        %2435 = vmatpush.msra.mxu0 %v929
        %2436 = vmatpush.msra.mxu0 %v919
        %2437 = vmatpush.msra.mxu0 %v909
        %2438 = vmatpush.msra.mxu0 %v899
        %2439 = vmatpush.msra.mxu0 %v889
        %2440 = vmatpush.msra.mxu0 %v879
        %2441 = vmatpush.msra.mxu0 %v869
        %2442 = vmatpush.msra.mxu0 %v859
        %2443 = vmatpush.msra.mxu0 %v849
        %2444 = vmatpush.msra.mxu0 %v839
        %2445 = vmatpush.msra.mxu0 %v829
        %2446 = vmatmul.f32.gmra.mxu0 %v332
        %v2447 = vpop.f32.mrf.mxu0
        %v2448 = vadd.f32 %v2425, %v2447
        %2449 = vmatmul.f32.gmra.mxu0 %v340
        %v2450 = vpop.f32.mrf.mxu0
        %v2451 = vadd.f32 %v2428, %v2450
        %2452 = vdwg.mxu0
        %2453 = vmatpush.msra.mxu0 %v1139
        %2454 = vmatpush.msra.mxu0 %v1129
        %2455 = vmatpush.msra.mxu0 %v1119
        %2456 = vmatpush.msra.mxu0 %v1109
        %2457 = vmatpush.msra.mxu0 %v1099
        %2458 = vmatpush.msra.mxu0 %v1089
        %2459 = vmatpush.msra.mxu0 %v1079
        %2460 = vmatpush.msra.mxu0 %v1069
        %2461 = vmatpush.msra.mxu0 %v1059
        %2462 = vmatpush.msra.mxu0 %v1049
        %2463 = vmatpush.msra.mxu0 %v1039
        %2464 = vmatpush.msra.mxu0 %v1029
        %2465 = vmatpush.msra.mxu0 %v1019
        %2466 = vmatpush.msra.mxu0 %v1009
        %2467 = vmatpush.msra.mxu0 %v999
        %2468 = vmatpush.msra.mxu0 %v989
        %2469 = vmatmul.f32.gmra.mxu0 %v333
        %v2470 = vpop.f32.mrf.mxu0
        %v2471 = vadd.f32 %v2448, %v2470
        %2472 = vmatmul.f32.gmra.mxu0 %v341
        %v2473 = vpop.f32.mrf.mxu0
        %v2474 = vadd.f32 %v2451, %v2473
        %2475 = vdwg.mxu0
        %2476 = vmatpush.msra.mxu0 %v1299
        %2477 = vmatpush.msra.mxu0 %v1289
        %2478 = vmatpush.msra.mxu0 %v1279
        %2479 = vmatpush.msra.mxu0 %v1269
        %2480 = vmatpush.msra.mxu0 %v1259
        %2481 = vmatpush.msra.mxu0 %v1249
        %2482 = vmatpush.msra.mxu0 %v1239
        %2483 = vmatpush.msra.mxu0 %v1229
        %2484 = vmatpush.msra.mxu0 %v1219
        %2485 = vmatpush.msra.mxu0 %v1209
        %2486 = vmatpush.msra.mxu0 %v1199
        %2487 = vmatpush.msra.mxu0 %v1189
        %2488 = vmatpush.msra.mxu0 %v1179
        %2489 = vmatpush.msra.mxu0 %v1169
        %2490 = vmatpush.msra.mxu0 %v1159
        %2491 = vmatpush.msra.mxu0 %v1149
        %2492 = vmatmul.f32.gmra.mxu0 %v334
        %v2493 = vpop.f32.mrf.mxu0
        %v2494 = vadd.f32 %v2471, %v2493
        %2495 = vmatmul.f32.gmra.mxu0 %v342
        %v2496 = vpop.f32.mrf.mxu0
        %v2497 = vadd.f32 %v2474, %v2496
        %2498 = vdwg.mxu0
        %2499 = vmatpush.msra.mxu0 %v1459
        %2500 = vmatpush.msra.mxu0 %v1449
        %2501 = vmatpush.msra.mxu0 %v1439
        %2502 = vmatpush.msra.mxu0 %v1429
        %2503 = vmatpush.msra.mxu0 %v1419
        %2504 = vmatpush.msra.mxu0 %v1409
        %2505 = vmatpush.msra.mxu0 %v1399
        %2506 = vmatpush.msra.mxu0 %v1389
        %2507 = vmatpush.msra.mxu0 %v1379
        %2508 = vmatpush.msra.mxu0 %v1369
        %2509 = vmatpush.msra.mxu0 %v1359
        %2510 = vmatpush.msra.mxu0 %v1349
        %2511 = vmatpush.msra.mxu0 %v1339
        %2512 = vmatpush.msra.mxu0 %v1329
        %2513 = vmatpush.msra.mxu0 %v1319
        %2514 = vmatpush.msra.mxu0 %v1309
        %2515 = vmatmul.f32.gmra.mxu0 %v335
        %v2516 = vpop.f32.mrf.mxu0
        %v2517 = vadd.f32 %v2494, %v2516
        %2518 = vmatmul.f32.gmra.mxu0 %v343
        %v2519 = vpop.f32.mrf.mxu0
        %v2520 = vadd.f32 %v2497, %v2519
        %2521 = vdwg.mxu0
        %2522 = vmatpush.msra.mxu0 %v1619
        %2523 = vmatpush.msra.mxu0 %v1609
        %2524 = vmatpush.msra.mxu0 %v1599
        %2525 = vmatpush.msra.mxu0 %v1589
        %2526 = vmatpush.msra.mxu0 %v1579
        %2527 = vmatpush.msra.mxu0 %v1569
        %2528 = vmatpush.msra.mxu0 %v1559
        %2529 = vmatpush.msra.mxu0 %v1549
        %2530 = vmatpush.msra.mxu0 %v1539
        %2531 = vmatpush.msra.mxu0 %v1529
        %2532 = vmatpush.msra.mxu0 %v1519
        %2533 = vmatpush.msra.mxu0 %v1509
        %2534 = vmatpush.msra.mxu0 %v1499
        %2535 = vmatpush.msra.mxu0 %v1489
        %2536 = vmatpush.msra.mxu0 %v1479
        %2537 = vmatpush.msra.mxu0 %v1469
        %2538 = vmatmul.f32.gmra.mxu0 %v336
        %v2539 = vpop.f32.mrf.mxu0
        %v2540 = vadd.f32 %v2517, %v2539
        %2541 = vmatmul.f32.gmra.mxu0 %v344
        %v2542 = vpop.f32.mrf.mxu0
        %v2543 = vadd.f32 %v2520, %v2542
        %2544 = vdwg.mxu0
        %2545 = vmatpush.msra.mxu0 %v500
        %2546 = vmatpush.msra.mxu0 %v490
        %2547 = vmatpush.msra.mxu0 %v480
        %2548 = vmatpush.msra.mxu0 %v470
        %2549 = vmatpush.msra.mxu0 %v460
        %2550 = vmatpush.msra.mxu0 %v450
        %2551 = vmatpush.msra.mxu0 %v440
        %2552 = vmatpush.msra.mxu0 %v430
        %2553 = vmatpush.msra.mxu0 %v420
        %2554 = vmatpush.msra.mxu0 %v410
        %2555 = vmatpush.msra.mxu0 %v400
        %2556 = vmatpush.msra.mxu0 %v390
        %2557 = vmatpush.msra.mxu0 %v380
        %2558 = vmatpush.msra.mxu0 %v370
        %2559 = vmatpush.msra.mxu0 %v360
        %2560 = vmatpush.msra.mxu0 %v350
        %2561 = vmatmul.f32.gmra.mxu0 %v329
        %v2562 = vpop.f32.mrf.mxu0
        %v2563 = vadd.f32 0.0, %v2562
        %2564 = vmatmul.f32.gmra.mxu0 %v337
        %v2565 = vpop.f32.mrf.mxu0
        %v2566 = vadd.f32 0.0, %v2565
        %2567 = vdwg.mxu0
        %2568 = vmatpush.msra.mxu0 %v660
        %2569 = vmatpush.msra.mxu0 %v650
        %2570 = vmatpush.msra.mxu0 %v640
        %2571 = vmatpush.msra.mxu0 %v630
        %2572 = vmatpush.msra.mxu0 %v620
        %2573 = vmatpush.msra.mxu0 %v610
        %2574 = vmatpush.msra.mxu0 %v600
        %2575 = vmatpush.msra.mxu0 %v590
        %2576 = vmatpush.msra.mxu0 %v580
        %2577 = vmatpush.msra.mxu0 %v570
        %2578 = vmatpush.msra.mxu0 %v560
        %2579 = vmatpush.msra.mxu0 %v550
        %2580 = vmatpush.msra.mxu0 %v540
        %2581 = vmatpush.msra.mxu0 %v530
        %2582 = vmatpush.msra.mxu0 %v520
        %2583 = vmatpush.msra.mxu0 %v510
        %2584 = vmatmul.f32.gmra.mxu0 %v330
        %v2585 = vpop.f32.mrf.mxu0
        %v2586 = vadd.f32 %v2563, %v2585
        %2587 = vmatmul.f32.gmra.mxu0 %v338
        %v2588 = vpop.f32.mrf.mxu0
        %v2589 = vadd.f32 %v2566, %v2588
        %2590 = vdwg.mxu0
        %2591 = vmatpush.msra.mxu0 %v820
        %2592 = vmatpush.msra.mxu0 %v810
        %2593 = vmatpush.msra.mxu0 %v800
        %2594 = vmatpush.msra.mxu0 %v790
        %2595 = vmatpush.msra.mxu0 %v780
        %2596 = vmatpush.msra.mxu0 %v770
        %2597 = vmatpush.msra.mxu0 %v760
        %2598 = vmatpush.msra.mxu0 %v750
        %2599 = vmatpush.msra.mxu0 %v740
        %2600 = vmatpush.msra.mxu0 %v730
        %2601 = vmatpush.msra.mxu0 %v720
        %2602 = vmatpush.msra.mxu0 %v710
        %2603 = vmatpush.msra.mxu0 %v700
        %2604 = vmatpush.msra.mxu0 %v690
        %2605 = vmatpush.msra.mxu0 %v680
        %2606 = vmatpush.msra.mxu0 %v670
        %2607 = vmatmul.f32.gmra.mxu0 %v331
        %v2608 = vpop.f32.mrf.mxu0
        %v2609 = vadd.f32 %v2586, %v2608
        %2610 = vmatmul.f32.gmra.mxu0 %v339
        %v2611 = vpop.f32.mrf.mxu0
        %v2612 = vadd.f32 %v2589, %v2611
        %2613 = vdwg.mxu0
        %2614 = vmatpush.msra.mxu0 %v980
        %2615 = vmatpush.msra.mxu0 %v970
        %2616 = vmatpush.msra.mxu0 %v960
        %2617 = vmatpush.msra.mxu0 %v950
        %2618 = vmatpush.msra.mxu0 %v940
        %2619 = vmatpush.msra.mxu0 %v930
        %2620 = vmatpush.msra.mxu0 %v920
        %2621 = vmatpush.msra.mxu0 %v910
        %2622 = vmatpush.msra.mxu0 %v900
        %2623 = vmatpush.msra.mxu0 %v890
        %2624 = vmatpush.msra.mxu0 %v880
        %2625 = vmatpush.msra.mxu0 %v870
        %2626 = vmatpush.msra.mxu0 %v860
        %2627 = vmatpush.msra.mxu0 %v850
        %2628 = vmatpush.msra.mxu0 %v840
        %2629 = vmatpush.msra.mxu0 %v830
        %2630 = vmatmul.f32.gmra.mxu0 %v332
        %v2631 = vpop.f32.mrf.mxu0
        %v2632 = vadd.f32 %v2609, %v2631
        %2633 = vmatmul.f32.gmra.mxu0 %v340
        %v2634 = vpop.f32.mrf.mxu0
        %v2635 = vadd.f32 %v2612, %v2634
        %2636 = vdwg.mxu0
        %2637 = vmatpush.msra.mxu0 %v1140
        %2638 = vmatpush.msra.mxu0 %v1130
        %2639 = vmatpush.msra.mxu0 %v1120
        %2640 = vmatpush.msra.mxu0 %v1110
        %2641 = vmatpush.msra.mxu0 %v1100
        %2642 = vmatpush.msra.mxu0 %v1090
        %2643 = vmatpush.msra.mxu0 %v1080
        %2644 = vmatpush.msra.mxu0 %v1070
        %2645 = vmatpush.msra.mxu0 %v1060
        %2646 = vmatpush.msra.mxu0 %v1050
        %2647 = vmatpush.msra.mxu0 %v1040
        %2648 = vmatpush.msra.mxu0 %v1030
        %2649 = vmatpush.msra.mxu0 %v1020
        %2650 = vmatpush.msra.mxu0 %v1010
        %2651 = vmatpush.msra.mxu0 %v1000
        %2652 = vmatpush.msra.mxu0 %v990
        %2653 = vmatmul.f32.gmra.mxu0 %v333
        %v2654 = vpop.f32.mrf.mxu0
        %v2655 = vadd.f32 %v2632, %v2654
        %2656 = vmatmul.f32.gmra.mxu0 %v341
        %v2657 = vpop.f32.mrf.mxu0
        %v2658 = vadd.f32 %v2635, %v2657
        %2659 = vdwg.mxu0
        %2660 = vmatpush.msra.mxu0 %v1300
        %2661 = vmatpush.msra.mxu0 %v1290
        %2662 = vmatpush.msra.mxu0 %v1280
        %2663 = vmatpush.msra.mxu0 %v1270
        %2664 = vmatpush.msra.mxu0 %v1260
        %2665 = vmatpush.msra.mxu0 %v1250
        %2666 = vmatpush.msra.mxu0 %v1240
        %2667 = vmatpush.msra.mxu0 %v1230
        %2668 = vmatpush.msra.mxu0 %v1220
        %2669 = vmatpush.msra.mxu0 %v1210
        %2670 = vmatpush.msra.mxu0 %v1200
        %2671 = vmatpush.msra.mxu0 %v1190
        %2672 = vmatpush.msra.mxu0 %v1180
        %2673 = vmatpush.msra.mxu0 %v1170
        %2674 = vmatpush.msra.mxu0 %v1160
        %2675 = vmatpush.msra.mxu0 %v1150
        %2676 = vmatmul.f32.gmra.mxu0 %v334
        %v2677 = vpop.f32.mrf.mxu0
        %v2678 = vadd.f32 %v2655, %v2677
        %2679 = vmatmul.f32.gmra.mxu0 %v342
        %v2680 = vpop.f32.mrf.mxu0
        %v2681 = vadd.f32 %v2658, %v2680
        %2682 = vdwg.mxu0
        %2683 = vmatpush.msra.mxu0 %v1460
        %2684 = vmatpush.msra.mxu0 %v1450
        %2685 = vmatpush.msra.mxu0 %v1440
        %2686 = vmatpush.msra.mxu0 %v1430
        %2687 = vmatpush.msra.mxu0 %v1420
        %2688 = vmatpush.msra.mxu0 %v1410
        %2689 = vmatpush.msra.mxu0 %v1400
        %2690 = vmatpush.msra.mxu0 %v1390
        %2691 = vmatpush.msra.mxu0 %v1380
        %2692 = vmatpush.msra.mxu0 %v1370
        %2693 = vmatpush.msra.mxu0 %v1360
        %2694 = vmatpush.msra.mxu0 %v1350
        %2695 = vmatpush.msra.mxu0 %v1340
        %2696 = vmatpush.msra.mxu0 %v1330
        %2697 = vmatpush.msra.mxu0 %v1320
        %2698 = vmatpush.msra.mxu0 %v1310
        %2699 = vmatmul.f32.gmra.mxu0 %v335
        %v2700 = vpop.f32.mrf.mxu0
        %v2701 = vadd.f32 %v2678, %v2700
        %2702 = vmatmul.f32.gmra.mxu0 %v343
        %v2703 = vpop.f32.mrf.mxu0
        %v2704 = vadd.f32 %v2681, %v2703
        %2705 = vdwg.mxu0
        %2706 = vmatpush.msra.mxu0 %v1620
        %2707 = vmatpush.msra.mxu0 %v1610
        %2708 = vmatpush.msra.mxu0 %v1600
        %2709 = vmatpush.msra.mxu0 %v1590
        %2710 = vmatpush.msra.mxu0 %v1580
        %2711 = vmatpush.msra.mxu0 %v1570
        %2712 = vmatpush.msra.mxu0 %v1560
        %2713 = vmatpush.msra.mxu0 %v1550
        %2714 = vmatpush.msra.mxu0 %v1540
        %2715 = vmatpush.msra.mxu0 %v1530
        %2716 = vmatpush.msra.mxu0 %v1520
        %2717 = vmatpush.msra.mxu0 %v1510
        %2718 = vmatpush.msra.mxu0 %v1500
        %2719 = vmatpush.msra.mxu0 %v1490
        %2720 = vmatpush.msra.mxu0 %v1480
        %2721 = vmatpush.msra.mxu0 %v1470
        %2722 = vmatmul.f32.gmra.mxu0 %v336
        %v2723 = vpop.f32.mrf.mxu0
        %v2724 = vadd.f32 %v2701, %v2723
        %2725 = vmatmul.f32.gmra.mxu0 %v344
        %v2726 = vpop.f32.mrf.mxu0
        %v2727 = vadd.f32 %v2704, %v2726
        %2728 = vdwg.mxu0
        %2729 = vmatpush.msra.mxu0 %v501
        %2730 = vmatpush.msra.mxu0 %v491
        %2731 = vmatpush.msra.mxu0 %v481
        %2732 = vmatpush.msra.mxu0 %v471
        %2733 = vmatpush.msra.mxu0 %v461
        %2734 = vmatpush.msra.mxu0 %v451
        %2735 = vmatpush.msra.mxu0 %v441
        %2736 = vmatpush.msra.mxu0 %v431
        %2737 = vmatpush.msra.mxu0 %v421
        %2738 = vmatpush.msra.mxu0 %v411
        %2739 = vmatpush.msra.mxu0 %v401
        %2740 = vmatpush.msra.mxu0 %v391
        %2741 = vmatpush.msra.mxu0 %v381
        %2742 = vmatpush.msra.mxu0 %v371
        %2743 = vmatpush.msra.mxu0 %v361
        %2744 = vmatpush.msra.mxu0 %v351
        %2745 = vmatmul.f32.gmra.mxu0 %v329
        %v2746 = vpop.f32.mrf.mxu0
        %v2747 = vadd.f32 0.0, %v2746
        %2748 = vmatmul.f32.gmra.mxu0 %v337
        %v2749 = vpop.f32.mrf.mxu0
        %v2750 = vadd.f32 0.0, %v2749
        %2751 = vdwg.mxu0
        %2752 = vmatpush.msra.mxu0 %v661
        %2753 = vmatpush.msra.mxu0 %v651
        %2754 = vmatpush.msra.mxu0 %v641
        %2755 = vmatpush.msra.mxu0 %v631
        %2756 = vmatpush.msra.mxu0 %v621
        %2757 = vmatpush.msra.mxu0 %v611
        %2758 = vmatpush.msra.mxu0 %v601
        %2759 = vmatpush.msra.mxu0 %v591
        %2760 = vmatpush.msra.mxu0 %v581
        %2761 = vmatpush.msra.mxu0 %v571
        %2762 = vmatpush.msra.mxu0 %v561
        %2763 = vmatpush.msra.mxu0 %v551
        %2764 = vmatpush.msra.mxu0 %v541
        %2765 = vmatpush.msra.mxu0 %v531
        %2766 = vmatpush.msra.mxu0 %v521
        %2767 = vmatpush.msra.mxu0 %v511
        %2768 = vmatmul.f32.gmra.mxu0 %v330
        %v2769 = vpop.f32.mrf.mxu0
        %v2770 = vadd.f32 %v2747, %v2769
        %2771 = vmatmul.f32.gmra.mxu0 %v338
        %v2772 = vpop.f32.mrf.mxu0
        %v2773 = vadd.f32 %v2750, %v2772
        %2774 = vdwg.mxu0
        %2775 = vmatpush.msra.mxu0 %v821
        %2776 = vmatpush.msra.mxu0 %v811
        %2777 = vmatpush.msra.mxu0 %v801
        %2778 = vmatpush.msra.mxu0 %v791
        %2779 = vmatpush.msra.mxu0 %v781
        %2780 = vmatpush.msra.mxu0 %v771
        %2781 = vmatpush.msra.mxu0 %v761
        %2782 = vmatpush.msra.mxu0 %v751
        %2783 = vmatpush.msra.mxu0 %v741
        %2784 = vmatpush.msra.mxu0 %v731
        %2785 = vmatpush.msra.mxu0 %v721
        %2786 = vmatpush.msra.mxu0 %v711
        %2787 = vmatpush.msra.mxu0 %v701
        %2788 = vmatpush.msra.mxu0 %v691
        %2789 = vmatpush.msra.mxu0 %v681
        %2790 = vmatpush.msra.mxu0 %v671
        %2791 = vmatmul.f32.gmra.mxu0 %v331
        %v2792 = vpop.f32.mrf.mxu0
        %v2793 = vadd.f32 %v2770, %v2792
        %2794 = vmatmul.f32.gmra.mxu0 %v339
        %v2795 = vpop.f32.mrf.mxu0
        %v2796 = vadd.f32 %v2773, %v2795
        %2797 = vdwg.mxu0
        %2798 = vmatpush.msra.mxu0 %v981
        %2799 = vmatpush.msra.mxu0 %v971
        %2800 = vmatpush.msra.mxu0 %v961
        %2801 = vmatpush.msra.mxu0 %v951
        %2802 = vmatpush.msra.mxu0 %v941
        %2803 = vmatpush.msra.mxu0 %v931
        %2804 = vmatpush.msra.mxu0 %v921
        %2805 = vmatpush.msra.mxu0 %v911
        %2806 = vmatpush.msra.mxu0 %v901
        %2807 = vmatpush.msra.mxu0 %v891
        %2808 = vmatpush.msra.mxu0 %v881
        %2809 = vmatpush.msra.mxu0 %v871
        %2810 = vmatpush.msra.mxu0 %v861
        %2811 = vmatpush.msra.mxu0 %v851
        %2812 = vmatpush.msra.mxu0 %v841
        %2813 = vmatpush.msra.mxu0 %v831
        %2814 = vmatmul.f32.gmra.mxu0 %v332
        %v2815 = vpop.f32.mrf.mxu0
        %v2816 = vadd.f32 %v2793, %v2815
        %2817 = vmatmul.f32.gmra.mxu0 %v340
        %v2818 = vpop.f32.mrf.mxu0
        %v2819 = vadd.f32 %v2796, %v2818
        %2820 = vdwg.mxu0
        %2821 = vmatpush.msra.mxu0 %v1141
        %2822 = vmatpush.msra.mxu0 %v1131
        %2823 = vmatpush.msra.mxu0 %v1121
        %2824 = vmatpush.msra.mxu0 %v1111
        %2825 = vmatpush.msra.mxu0 %v1101
        %2826 = vmatpush.msra.mxu0 %v1091
        %2827 = vmatpush.msra.mxu0 %v1081
        %2828 = vmatpush.msra.mxu0 %v1071
        %2829 = vmatpush.msra.mxu0 %v1061
        %2830 = vmatpush.msra.mxu0 %v1051
        %2831 = vmatpush.msra.mxu0 %v1041
        %2832 = vmatpush.msra.mxu0 %v1031
        %2833 = vmatpush.msra.mxu0 %v1021
        %2834 = vmatpush.msra.mxu0 %v1011
        %2835 = vmatpush.msra.mxu0 %v1001
        %2836 = vmatpush.msra.mxu0 %v991
        %2837 = vmatmul.f32.gmra.mxu0 %v333
        %v2838 = vpop.f32.mrf.mxu0
        %v2839 = vadd.f32 %v2816, %v2838
        %2840 = vmatmul.f32.gmra.mxu0 %v341
        %v2841 = vpop.f32.mrf.mxu0
        %v2842 = vadd.f32 %v2819, %v2841
        %2843 = vdwg.mxu0
        %2844 = vmatpush.msra.mxu0 %v1301
        %2845 = vmatpush.msra.mxu0 %v1291
        %2846 = vmatpush.msra.mxu0 %v1281
        %2847 = vmatpush.msra.mxu0 %v1271
        %2848 = vmatpush.msra.mxu0 %v1261
        %2849 = vmatpush.msra.mxu0 %v1251
        %2850 = vmatpush.msra.mxu0 %v1241
        %2851 = vmatpush.msra.mxu0 %v1231
        %2852 = vmatpush.msra.mxu0 %v1221
        %2853 = vmatpush.msra.mxu0 %v1211
        %2854 = vmatpush.msra.mxu0 %v1201
        %2855 = vmatpush.msra.mxu0 %v1191
        %2856 = vmatpush.msra.mxu0 %v1181
        %2857 = vmatpush.msra.mxu0 %v1171
        %2858 = vmatpush.msra.mxu0 %v1161
        %2859 = vmatpush.msra.mxu0 %v1151
        %2860 = vmatmul.f32.gmra.mxu0 %v334
        %v2861 = vpop.f32.mrf.mxu0
        %v2862 = vadd.f32 %v2839, %v2861
        %2863 = vmatmul.f32.gmra.mxu0 %v342
        %v2864 = vpop.f32.mrf.mxu0
        %v2865 = vadd.f32 %v2842, %v2864
        %2866 = vdwg.mxu0
        %2867 = vmatpush.msra.mxu0 %v1461
        %2868 = vmatpush.msra.mxu0 %v1451
        %2869 = vmatpush.msra.mxu0 %v1441
        %2870 = vmatpush.msra.mxu0 %v1431
        %2871 = vmatpush.msra.mxu0 %v1421
        %2872 = vmatpush.msra.mxu0 %v1411
        %2873 = vmatpush.msra.mxu0 %v1401
        %2874 = vmatpush.msra.mxu0 %v1391
        %2875 = vmatpush.msra.mxu0 %v1381
        %2876 = vmatpush.msra.mxu0 %v1371
        %2877 = vmatpush.msra.mxu0 %v1361
        %2878 = vmatpush.msra.mxu0 %v1351
        %2879 = vmatpush.msra.mxu0 %v1341
        %2880 = vmatpush.msra.mxu0 %v1331
        %2881 = vmatpush.msra.mxu0 %v1321
        %2882 = vmatpush.msra.mxu0 %v1311
        %2883 = vmatmul.f32.gmra.mxu0 %v335
        %v2884 = vpop.f32.mrf.mxu0
        %v2885 = vadd.f32 %v2862, %v2884
        %2886 = vmatmul.f32.gmra.mxu0 %v343
        %v2887 = vpop.f32.mrf.mxu0
        %v2888 = vadd.f32 %v2865, %v2887
        %2889 = vdwg.mxu0
        %2890 = vmatpush.msra.mxu0 %v1621
        %2891 = vmatpush.msra.mxu0 %v1611
        %2892 = vmatpush.msra.mxu0 %v1601
        %2893 = vmatpush.msra.mxu0 %v1591
        %2894 = vmatpush.msra.mxu0 %v1581
        %2895 = vmatpush.msra.mxu0 %v1571
        %2896 = vmatpush.msra.mxu0 %v1561
        %2897 = vmatpush.msra.mxu0 %v1551
        %2898 = vmatpush.msra.mxu0 %v1541
        %2899 = vmatpush.msra.mxu0 %v1531
        %2900 = vmatpush.msra.mxu0 %v1521
        %2901 = vmatpush.msra.mxu0 %v1511
        %2902 = vmatpush.msra.mxu0 %v1501
        %2903 = vmatpush.msra.mxu0 %v1491
        %2904 = vmatpush.msra.mxu0 %v1481
        %2905 = vmatpush.msra.mxu0 %v1471
        %2906 = vmatmul.f32.gmra.mxu0 %v336
        %v2907 = vpop.f32.mrf.mxu0
        %v2908 = vadd.f32 %v2885, %v2907
        %2909 = vmatmul.f32.gmra.mxu0 %v344
        %v2910 = vpop.f32.mrf.mxu0
        %v2911 = vadd.f32 %v2888, %v2910
        %2912 = vdwg.mxu0
        %2913 = vmatpush.msra.mxu0 %v502
        %2914 = vmatpush.msra.mxu0 %v492
        %2915 = vmatpush.msra.mxu0 %v482
        %2916 = vmatpush.msra.mxu0 %v472
        %2917 = vmatpush.msra.mxu0 %v462
        %2918 = vmatpush.msra.mxu0 %v452
        %2919 = vmatpush.msra.mxu0 %v442
        %2920 = vmatpush.msra.mxu0 %v432
        %2921 = vmatpush.msra.mxu0 %v422
        %2922 = vmatpush.msra.mxu0 %v412
        %2923 = vmatpush.msra.mxu0 %v402
        %2924 = vmatpush.msra.mxu0 %v392
        %2925 = vmatpush.msra.mxu0 %v382
        %2926 = vmatpush.msra.mxu0 %v372
        %2927 = vmatpush.msra.mxu0 %v362
        %2928 = vmatpush.msra.mxu0 %v352
        %2929 = vmatmul.f32.gmra.mxu0 %v329
        %v2930 = vpop.f32.mrf.mxu0
        %v2931 = vadd.f32 0.0, %v2930
        %2932 = vmatmul.f32.gmra.mxu0 %v337
        %v2933 = vpop.f32.mrf.mxu0
        %v2934 = vadd.f32 0.0, %v2933
        %2935 = vdwg.mxu0
        %2936 = vmatpush.msra.mxu0 %v662
        %2937 = vmatpush.msra.mxu0 %v652
        %2938 = vmatpush.msra.mxu0 %v642
        %2939 = vmatpush.msra.mxu0 %v632
        %2940 = vmatpush.msra.mxu0 %v622
        %2941 = vmatpush.msra.mxu0 %v612
        %2942 = vmatpush.msra.mxu0 %v602
        %2943 = vmatpush.msra.mxu0 %v592
        %2944 = vmatpush.msra.mxu0 %v582
        %2945 = vmatpush.msra.mxu0 %v572
        %2946 = vmatpush.msra.mxu0 %v562
        %2947 = vmatpush.msra.mxu0 %v552
        %2948 = vmatpush.msra.mxu0 %v542
        %2949 = vmatpush.msra.mxu0 %v532
        %2950 = vmatpush.msra.mxu0 %v522
        %2951 = vmatpush.msra.mxu0 %v512
        %2952 = vmatmul.f32.gmra.mxu0 %v330
        %v2953 = vpop.f32.mrf.mxu0
        %v2954 = vadd.f32 %v2931, %v2953
        %2955 = vmatmul.f32.gmra.mxu0 %v338
        %v2956 = vpop.f32.mrf.mxu0
        %v2957 = vadd.f32 %v2934, %v2956
        %2958 = vdwg.mxu0
        %2959 = vmatpush.msra.mxu0 %v822
        %2960 = vmatpush.msra.mxu0 %v812
        %2961 = vmatpush.msra.mxu0 %v802
        %2962 = vmatpush.msra.mxu0 %v792
        %2963 = vmatpush.msra.mxu0 %v782
        %2964 = vmatpush.msra.mxu0 %v772
        %2965 = vmatpush.msra.mxu0 %v762
        %2966 = vmatpush.msra.mxu0 %v752
        %2967 = vmatpush.msra.mxu0 %v742
        %2968 = vmatpush.msra.mxu0 %v732
        %2969 = vmatpush.msra.mxu0 %v722
        %2970 = vmatpush.msra.mxu0 %v712
        %2971 = vmatpush.msra.mxu0 %v702
        %2972 = vmatpush.msra.mxu0 %v692
        %2973 = vmatpush.msra.mxu0 %v682
        %2974 = vmatpush.msra.mxu0 %v672
        %2975 = vmatmul.f32.gmra.mxu0 %v331
        %v2976 = vpop.f32.mrf.mxu0
        %v2977 = vadd.f32 %v2954, %v2976
        %2978 = vmatmul.f32.gmra.mxu0 %v339
        %v2979 = vpop.f32.mrf.mxu0
        %v2980 = vadd.f32 %v2957, %v2979
        %2981 = vdwg.mxu0
        %2982 = vmatpush.msra.mxu0 %v982
        %2983 = vmatpush.msra.mxu0 %v972
        %2984 = vmatpush.msra.mxu0 %v962
        %2985 = vmatpush.msra.mxu0 %v952
        %2986 = vmatpush.msra.mxu0 %v942
        %2987 = vmatpush.msra.mxu0 %v932
        %2988 = vmatpush.msra.mxu0 %v922
        %2989 = vmatpush.msra.mxu0 %v912
        %2990 = vmatpush.msra.mxu0 %v902
        %2991 = vmatpush.msra.mxu0 %v892
        %2992 = vmatpush.msra.mxu0 %v882
        %2993 = vmatpush.msra.mxu0 %v872
        %2994 = vmatpush.msra.mxu0 %v862
        %2995 = vmatpush.msra.mxu0 %v852
        %2996 = vmatpush.msra.mxu0 %v842
        %2997 = vmatpush.msra.mxu0 %v832
        %2998 = vmatmul.f32.gmra.mxu0 %v332
        %v2999 = vpop.f32.mrf.mxu0
        %v3000 = vadd.f32 %v2977, %v2999
        %3001 = vmatmul.f32.gmra.mxu0 %v340
        %v3002 = vpop.f32.mrf.mxu0
        %v3003 = vadd.f32 %v2980, %v3002
        %3004 = vdwg.mxu0
        %3005 = vmatpush.msra.mxu0 %v1142
        %3006 = vmatpush.msra.mxu0 %v1132
        %3007 = vmatpush.msra.mxu0 %v1122
        %3008 = vmatpush.msra.mxu0 %v1112
        %3009 = vmatpush.msra.mxu0 %v1102
        %3010 = vmatpush.msra.mxu0 %v1092
        %3011 = vmatpush.msra.mxu0 %v1082
        %3012 = vmatpush.msra.mxu0 %v1072
        %3013 = vmatpush.msra.mxu0 %v1062
        %3014 = vmatpush.msra.mxu0 %v1052
        %3015 = vmatpush.msra.mxu0 %v1042
        %3016 = vmatpush.msra.mxu0 %v1032
        %3017 = vmatpush.msra.mxu0 %v1022
        %3018 = vmatpush.msra.mxu0 %v1012
        %3019 = vmatpush.msra.mxu0 %v1002
        %3020 = vmatpush.msra.mxu0 %v992
        %3021 = vmatmul.f32.gmra.mxu0 %v333
        %v3022 = vpop.f32.mrf.mxu0
        %v3023 = vadd.f32 %v3000, %v3022
        %3024 = vmatmul.f32.gmra.mxu0 %v341
        %v3025 = vpop.f32.mrf.mxu0
        %v3026 = vadd.f32 %v3003, %v3025
        %3027 = vdwg.mxu0
        %3028 = vmatpush.msra.mxu0 %v1302
        %3029 = vmatpush.msra.mxu0 %v1292
        %3030 = vmatpush.msra.mxu0 %v1282
        %3031 = vmatpush.msra.mxu0 %v1272
        %3032 = vmatpush.msra.mxu0 %v1262
        %3033 = vmatpush.msra.mxu0 %v1252
        %3034 = vmatpush.msra.mxu0 %v1242
        %3035 = vmatpush.msra.mxu0 %v1232
        %3036 = vmatpush.msra.mxu0 %v1222
        %3037 = vmatpush.msra.mxu0 %v1212
        %3038 = vmatpush.msra.mxu0 %v1202
        %3039 = vmatpush.msra.mxu0 %v1192
        %3040 = vmatpush.msra.mxu0 %v1182
        %3041 = vmatpush.msra.mxu0 %v1172
        %3042 = vmatpush.msra.mxu0 %v1162
        %3043 = vmatpush.msra.mxu0 %v1152
        %3044 = vmatmul.f32.gmra.mxu0 %v334
        %v3045 = vpop.f32.mrf.mxu0
        %v3046 = vadd.f32 %v3023, %v3045
        %3047 = vmatmul.f32.gmra.mxu0 %v342
        %v3048 = vpop.f32.mrf.mxu0
        %v3049 = vadd.f32 %v3026, %v3048
        %3050 = vdwg.mxu0
        %3051 = vmatpush.msra.mxu0 %v1462
        %3052 = vmatpush.msra.mxu0 %v1452
        %3053 = vmatpush.msra.mxu0 %v1442
        %3054 = vmatpush.msra.mxu0 %v1432
        %3055 = vmatpush.msra.mxu0 %v1422
        %3056 = vmatpush.msra.mxu0 %v1412
        %3057 = vmatpush.msra.mxu0 %v1402
        %3058 = vmatpush.msra.mxu0 %v1392
        %3059 = vmatpush.msra.mxu0 %v1382
        %3060 = vmatpush.msra.mxu0 %v1372
        %3061 = vmatpush.msra.mxu0 %v1362
        %3062 = vmatpush.msra.mxu0 %v1352
        %3063 = vmatpush.msra.mxu0 %v1342
        %3064 = vmatpush.msra.mxu0 %v1332
        %3065 = vmatpush.msra.mxu0 %v1322
        %3066 = vmatpush.msra.mxu0 %v1312
        %3067 = vmatmul.f32.gmra.mxu0 %v335
        %v3068 = vpop.f32.mrf.mxu0
        %v3069 = vadd.f32 %v3046, %v3068
        %3070 = vmatmul.f32.gmra.mxu0 %v343
        %v3071 = vpop.f32.mrf.mxu0
        %v3072 = vadd.f32 %v3049, %v3071
        %3073 = vdwg.mxu0
        %3074 = vmatpush.msra.mxu0 %v1622
        %3075 = vmatpush.msra.mxu0 %v1612
        %3076 = vmatpush.msra.mxu0 %v1602
        %3077 = vmatpush.msra.mxu0 %v1592
        %3078 = vmatpush.msra.mxu0 %v1582
        %3079 = vmatpush.msra.mxu0 %v1572
        %3080 = vmatpush.msra.mxu0 %v1562
        %3081 = vmatpush.msra.mxu0 %v1552
        %3082 = vmatpush.msra.mxu0 %v1542
        %3083 = vmatpush.msra.mxu0 %v1532
        %3084 = vmatpush.msra.mxu0 %v1522
        %3085 = vmatpush.msra.mxu0 %v1512
        %3086 = vmatpush.msra.mxu0 %v1502
        %3087 = vmatpush.msra.mxu0 %v1492
        %3088 = vmatpush.msra.mxu0 %v1482
        %3089 = vmatpush.msra.mxu0 %v1472
        %3090 = vmatmul.f32.gmra.mxu0 %v336
        %v3091 = vpop.f32.mrf.mxu0
        %v3092 = vadd.f32 %v3069, %v3091
        %3093 = vmatmul.f32.gmra.mxu0 %v344
        %v3094 = vpop.f32.mrf.mxu0
        %v3095 = vadd.f32 %v3072, %v3094
        %3096 = vdwg.mxu0
        %3097 = vmatpush.msra.mxu0 %v503
        %3098 = vmatpush.msra.mxu0 %v493
        %3099 = vmatpush.msra.mxu0 %v483
        %3100 = vmatpush.msra.mxu0 %v473
        %3101 = vmatpush.msra.mxu0 %v463
        %3102 = vmatpush.msra.mxu0 %v453
        %3103 = vmatpush.msra.mxu0 %v443
        %3104 = vmatpush.msra.mxu0 %v433
        %3105 = vmatpush.msra.mxu0 %v423
        %3106 = vmatpush.msra.mxu0 %v413
        %3107 = vmatpush.msra.mxu0 %v403
        %3108 = vmatpush.msra.mxu0 %v393
        %3109 = vmatpush.msra.mxu0 %v383
        %3110 = vmatpush.msra.mxu0 %v373
        %3111 = vmatpush.msra.mxu0 %v363
        %3112 = vmatpush.msra.mxu0 %v353
        %3113 = vmatmul.f32.gmra.mxu0 %v329
        %v3114 = vpop.f32.mrf.mxu0
        %v3115 = vadd.f32 0.0, %v3114
        %3116 = vmatmul.f32.gmra.mxu0 %v337
        %v3117 = vpop.f32.mrf.mxu0
        %v3118 = vadd.f32 0.0, %v3117
        %3119 = vdwg.mxu0
        %3120 = vmatpush.msra.mxu0 %v663
        %3121 = vmatpush.msra.mxu0 %v653
        %3122 = vmatpush.msra.mxu0 %v643
        %3123 = vmatpush.msra.mxu0 %v633
        %3124 = vmatpush.msra.mxu0 %v623
        %3125 = vmatpush.msra.mxu0 %v613
        %3126 = vmatpush.msra.mxu0 %v603
        %3127 = vmatpush.msra.mxu0 %v593
        %3128 = vmatpush.msra.mxu0 %v583
        %3129 = vmatpush.msra.mxu0 %v573
        %3130 = vmatpush.msra.mxu0 %v563
        %3131 = vmatpush.msra.mxu0 %v553
        %3132 = vmatpush.msra.mxu0 %v543
        %3133 = vmatpush.msra.mxu0 %v533
        %3134 = vmatpush.msra.mxu0 %v523
        %3135 = vmatpush.msra.mxu0 %v513
        %3136 = vmatmul.f32.gmra.mxu0 %v330
        %v3137 = vpop.f32.mrf.mxu0
        %v3138 = vadd.f32 %v3115, %v3137
        %3139 = vmatmul.f32.gmra.mxu0 %v338
        %v3140 = vpop.f32.mrf.mxu0
        %v3141 = vadd.f32 %v3118, %v3140
        %3142 = vdwg.mxu0
        %3143 = vmatpush.msra.mxu0 %v823
        %3144 = vmatpush.msra.mxu0 %v813
        %3145 = vmatpush.msra.mxu0 %v803
        %3146 = vmatpush.msra.mxu0 %v793
        %3147 = vmatpush.msra.mxu0 %v783
        %3148 = vmatpush.msra.mxu0 %v773
        %3149 = vmatpush.msra.mxu0 %v763
        %3150 = vmatpush.msra.mxu0 %v753
        %3151 = vmatpush.msra.mxu0 %v743
        %3152 = vmatpush.msra.mxu0 %v733
        %3153 = vmatpush.msra.mxu0 %v723
        %3154 = vmatpush.msra.mxu0 %v713
        %3155 = vmatpush.msra.mxu0 %v703
        %3156 = vmatpush.msra.mxu0 %v693
        %3157 = vmatpush.msra.mxu0 %v683
        %3158 = vmatpush.msra.mxu0 %v673
        %3159 = vmatmul.f32.gmra.mxu0 %v331
        %v3160 = vpop.f32.mrf.mxu0
        %v3161 = vadd.f32 %v3138, %v3160
        %3162 = vmatmul.f32.gmra.mxu0 %v339
        %v3163 = vpop.f32.mrf.mxu0
        %v3164 = vadd.f32 %v3141, %v3163
        %3165 = vdwg.mxu0
        %3166 = vmatpush.msra.mxu0 %v983
        %3167 = vmatpush.msra.mxu0 %v973
        %3168 = vmatpush.msra.mxu0 %v963
        %3169 = vmatpush.msra.mxu0 %v953
        %3170 = vmatpush.msra.mxu0 %v943
        %3171 = vmatpush.msra.mxu0 %v933
        %3172 = vmatpush.msra.mxu0 %v923
        %3173 = vmatpush.msra.mxu0 %v913
        %3174 = vmatpush.msra.mxu0 %v903
        %3175 = vmatpush.msra.mxu0 %v893
        %3176 = vmatpush.msra.mxu0 %v883
        %3177 = vmatpush.msra.mxu0 %v873
        %3178 = vmatpush.msra.mxu0 %v863
        %3179 = vmatpush.msra.mxu0 %v853
        %3180 = vmatpush.msra.mxu0 %v843
        %3181 = vmatpush.msra.mxu0 %v833
        %3182 = vmatmul.f32.gmra.mxu0 %v332
        %v3183 = vpop.f32.mrf.mxu0
        %v3184 = vadd.f32 %v3161, %v3183
        %3185 = vmatmul.f32.gmra.mxu0 %v340
        %v3186 = vpop.f32.mrf.mxu0
        %v3187 = vadd.f32 %v3164, %v3186
        %3188 = vdwg.mxu0
        %3189 = vmatpush.msra.mxu0 %v1143
        %3190 = vmatpush.msra.mxu0 %v1133
        %3191 = vmatpush.msra.mxu0 %v1123
        %3192 = vmatpush.msra.mxu0 %v1113
        %3193 = vmatpush.msra.mxu0 %v1103
        %3194 = vmatpush.msra.mxu0 %v1093
        %3195 = vmatpush.msra.mxu0 %v1083
        %3196 = vmatpush.msra.mxu0 %v1073
        %3197 = vmatpush.msra.mxu0 %v1063
        %3198 = vmatpush.msra.mxu0 %v1053
        %3199 = vmatpush.msra.mxu0 %v1043
        %3200 = vmatpush.msra.mxu0 %v1033
        %3201 = vmatpush.msra.mxu0 %v1023
        %3202 = vmatpush.msra.mxu0 %v1013
        %3203 = vmatpush.msra.mxu0 %v1003
        %3204 = vmatpush.msra.mxu0 %v993
        %3205 = vmatmul.f32.gmra.mxu0 %v333
        %v3206 = vpop.f32.mrf.mxu0
        %v3207 = vadd.f32 %v3184, %v3206
        %3208 = vmatmul.f32.gmra.mxu0 %v341
        %v3209 = vpop.f32.mrf.mxu0
        %v3210 = vadd.f32 %v3187, %v3209
        %3211 = vdwg.mxu0
        %3212 = vmatpush.msra.mxu0 %v1303
        %3213 = vmatpush.msra.mxu0 %v1293
        %3214 = vmatpush.msra.mxu0 %v1283
        %3215 = vmatpush.msra.mxu0 %v1273
        %3216 = vmatpush.msra.mxu0 %v1263
        %3217 = vmatpush.msra.mxu0 %v1253
        %3218 = vmatpush.msra.mxu0 %v1243
        %3219 = vmatpush.msra.mxu0 %v1233
        %3220 = vmatpush.msra.mxu0 %v1223
        %3221 = vmatpush.msra.mxu0 %v1213
        %3222 = vmatpush.msra.mxu0 %v1203
        %3223 = vmatpush.msra.mxu0 %v1193
        %3224 = vmatpush.msra.mxu0 %v1183
        %3225 = vmatpush.msra.mxu0 %v1173
        %3226 = vmatpush.msra.mxu0 %v1163
        %3227 = vmatpush.msra.mxu0 %v1153
        %3228 = vmatmul.f32.gmra.mxu0 %v334
        %v3229 = vpop.f32.mrf.mxu0
        %v3230 = vadd.f32 %v3207, %v3229
        %3231 = vmatmul.f32.gmra.mxu0 %v342
        %v3232 = vpop.f32.mrf.mxu0
        %v3233 = vadd.f32 %v3210, %v3232
        %3234 = vdwg.mxu0
        %3235 = vmatpush.msra.mxu0 %v1463
        %3236 = vmatpush.msra.mxu0 %v1453
        %3237 = vmatpush.msra.mxu0 %v1443
        %3238 = vmatpush.msra.mxu0 %v1433
        %3239 = vmatpush.msra.mxu0 %v1423
        %3240 = vmatpush.msra.mxu0 %v1413
        %3241 = vmatpush.msra.mxu0 %v1403
        %3242 = vmatpush.msra.mxu0 %v1393
        %3243 = vmatpush.msra.mxu0 %v1383
        %3244 = vmatpush.msra.mxu0 %v1373
        %3245 = vmatpush.msra.mxu0 %v1363
        %3246 = vmatpush.msra.mxu0 %v1353
        %3247 = vmatpush.msra.mxu0 %v1343
        %3248 = vmatpush.msra.mxu0 %v1333
        %3249 = vmatpush.msra.mxu0 %v1323
        %3250 = vmatpush.msra.mxu0 %v1313
        %3251 = vmatmul.f32.gmra.mxu0 %v335
        %v3252 = vpop.f32.mrf.mxu0
        %v3253 = vadd.f32 %v3230, %v3252
        %3254 = vmatmul.f32.gmra.mxu0 %v343
        %v3255 = vpop.f32.mrf.mxu0
        %v3256 = vadd.f32 %v3233, %v3255
        %3257 = vdwg.mxu0
        %3258 = vmatpush.msra.mxu0 %v1623
        %3259 = vmatpush.msra.mxu0 %v1613
        %3260 = vmatpush.msra.mxu0 %v1603
        %3261 = vmatpush.msra.mxu0 %v1593
        %3262 = vmatpush.msra.mxu0 %v1583
        %3263 = vmatpush.msra.mxu0 %v1573
        %3264 = vmatpush.msra.mxu0 %v1563
        %3265 = vmatpush.msra.mxu0 %v1553
        %3266 = vmatpush.msra.mxu0 %v1543
        %3267 = vmatpush.msra.mxu0 %v1533
        %3268 = vmatpush.msra.mxu0 %v1523
        %3269 = vmatpush.msra.mxu0 %v1513
        %3270 = vmatpush.msra.mxu0 %v1503
        %3271 = vmatpush.msra.mxu0 %v1493
        %3272 = vmatpush.msra.mxu0 %v1483
        %3273 = vmatpush.msra.mxu0 %v1473
        %3274 = vmatmul.f32.gmra.mxu0 %v336
        %v3275 = vpop.f32.mrf.mxu0
        %v3276 = vadd.f32 %v3253, %v3275
        %3277 = vmatmul.f32.gmra.mxu0 %v344
        %v3278 = vpop.f32.mrf.mxu0
        %v3279 = vadd.f32 %v3256, %v3278
        %3280 = vdwg.mxu0
        %3281 = vmatpush.msra.mxu0 %v504
        %3282 = vmatpush.msra.mxu0 %v494
        %3283 = vmatpush.msra.mxu0 %v484
        %3284 = vmatpush.msra.mxu0 %v474
        %3285 = vmatpush.msra.mxu0 %v464
        %3286 = vmatpush.msra.mxu0 %v454
        %3287 = vmatpush.msra.mxu0 %v444
        %3288 = vmatpush.msra.mxu0 %v434
        %3289 = vmatpush.msra.mxu0 %v424
        %3290 = vmatpush.msra.mxu0 %v414
        %3291 = vmatpush.msra.mxu0 %v404
        %3292 = vmatpush.msra.mxu0 %v394
        %3293 = vmatpush.msra.mxu0 %v384
        %3294 = vmatpush.msra.mxu0 %v374
        %3295 = vmatpush.msra.mxu0 %v364
        %3296 = vmatpush.msra.mxu0 %v354
        %3297 = vmatmul.f32.gmra.mxu0 %v329
        %v3298 = vpop.f32.mrf.mxu0
        %v3299 = vadd.f32 0.0, %v3298
        %3300 = vmatmul.f32.gmra.mxu0 %v337
        %v3301 = vpop.f32.mrf.mxu0
        %v3302 = vadd.f32 0.0, %v3301
        %3303 = vdwg.mxu0
        %3304 = vmatpush.msra.mxu0 %v664
        %3305 = vmatpush.msra.mxu0 %v654
        %3306 = vmatpush.msra.mxu0 %v644
        %3307 = vmatpush.msra.mxu0 %v634
        %3308 = vmatpush.msra.mxu0 %v624
        %3309 = vmatpush.msra.mxu0 %v614
        %3310 = vmatpush.msra.mxu0 %v604
        %3311 = vmatpush.msra.mxu0 %v594
        %3312 = vmatpush.msra.mxu0 %v584
        %3313 = vmatpush.msra.mxu0 %v574
        %3314 = vmatpush.msra.mxu0 %v564
        %3315 = vmatpush.msra.mxu0 %v554
        %3316 = vmatpush.msra.mxu0 %v544
        %3317 = vmatpush.msra.mxu0 %v534
        %3318 = vmatpush.msra.mxu0 %v524
        %3319 = vmatpush.msra.mxu0 %v514
        %3320 = vmatmul.f32.gmra.mxu0 %v330
        %v3321 = vpop.f32.mrf.mxu0
        %v3322 = vadd.f32 %v3299, %v3321
        %3323 = vmatmul.f32.gmra.mxu0 %v338
        %v3324 = vpop.f32.mrf.mxu0
        %v3325 = vadd.f32 %v3302, %v3324
        %3326 = vdwg.mxu0
        %3327 = vmatpush.msra.mxu0 %v824
        %3328 = vmatpush.msra.mxu0 %v814
        %3329 = vmatpush.msra.mxu0 %v804
        %3330 = vmatpush.msra.mxu0 %v794
        %3331 = vmatpush.msra.mxu0 %v784
        %3332 = vmatpush.msra.mxu0 %v774
        %3333 = vmatpush.msra.mxu0 %v764
        %3334 = vmatpush.msra.mxu0 %v754
        %3335 = vmatpush.msra.mxu0 %v744
        %3336 = vmatpush.msra.mxu0 %v734
        %3337 = vmatpush.msra.mxu0 %v724
        %3338 = vmatpush.msra.mxu0 %v714
        %3339 = vmatpush.msra.mxu0 %v704
        %3340 = vmatpush.msra.mxu0 %v694
        %3341 = vmatpush.msra.mxu0 %v684
        %3342 = vmatpush.msra.mxu0 %v674
        %3343 = vmatmul.f32.gmra.mxu0 %v331
        %v3344 = vpop.f32.mrf.mxu0
        %v3345 = vadd.f32 %v3322, %v3344
        %3346 = vmatmul.f32.gmra.mxu0 %v339
        %v3347 = vpop.f32.mrf.mxu0
        %v3348 = vadd.f32 %v3325, %v3347
        %3349 = vdwg.mxu0
        %3350 = vmatpush.msra.mxu0 %v984
        %3351 = vmatpush.msra.mxu0 %v974
        %3352 = vmatpush.msra.mxu0 %v964
        %3353 = vmatpush.msra.mxu0 %v954
        %3354 = vmatpush.msra.mxu0 %v944
        %3355 = vmatpush.msra.mxu0 %v934
        %3356 = vmatpush.msra.mxu0 %v924
        %3357 = vmatpush.msra.mxu0 %v914
        %3358 = vmatpush.msra.mxu0 %v904
        %3359 = vmatpush.msra.mxu0 %v894
        %3360 = vmatpush.msra.mxu0 %v884
        %3361 = vmatpush.msra.mxu0 %v874
        %3362 = vmatpush.msra.mxu0 %v864
        %3363 = vmatpush.msra.mxu0 %v854
        %3364 = vmatpush.msra.mxu0 %v844
        %3365 = vmatpush.msra.mxu0 %v834
        %3366 = vmatmul.f32.gmra.mxu0 %v332
        %v3367 = vpop.f32.mrf.mxu0
        %v3368 = vadd.f32 %v3345, %v3367
        %3369 = vmatmul.f32.gmra.mxu0 %v340
        %v3370 = vpop.f32.mrf.mxu0
        %v3371 = vadd.f32 %v3348, %v3370
        %3372 = vdwg.mxu0
        %3373 = vmatpush.msra.mxu0 %v1144
        %3374 = vmatpush.msra.mxu0 %v1134
        %3375 = vmatpush.msra.mxu0 %v1124
        %3376 = vmatpush.msra.mxu0 %v1114
        %3377 = vmatpush.msra.mxu0 %v1104
        %3378 = vmatpush.msra.mxu0 %v1094
        %3379 = vmatpush.msra.mxu0 %v1084
        %3380 = vmatpush.msra.mxu0 %v1074
        %3381 = vmatpush.msra.mxu0 %v1064
        %3382 = vmatpush.msra.mxu0 %v1054
        %3383 = vmatpush.msra.mxu0 %v1044
        %3384 = vmatpush.msra.mxu0 %v1034
        %3385 = vmatpush.msra.mxu0 %v1024
        %3386 = vmatpush.msra.mxu0 %v1014
        %3387 = vmatpush.msra.mxu0 %v1004
        %3388 = vmatpush.msra.mxu0 %v994
        %3389 = vmatmul.f32.gmra.mxu0 %v333
        %v3390 = vpop.f32.mrf.mxu0
        %v3391 = vadd.f32 %v3368, %v3390
        %3392 = vmatmul.f32.gmra.mxu0 %v341
        %v3393 = vpop.f32.mrf.mxu0
        %v3394 = vadd.f32 %v3371, %v3393
        %3395 = vdwg.mxu0
        %3396 = vmatpush.msra.mxu0 %v1304
        %3397 = vmatpush.msra.mxu0 %v1294
        %3398 = vmatpush.msra.mxu0 %v1284
        %3399 = vmatpush.msra.mxu0 %v1274
        %3400 = vmatpush.msra.mxu0 %v1264
        %3401 = vmatpush.msra.mxu0 %v1254
        %3402 = vmatpush.msra.mxu0 %v1244
        %3403 = vmatpush.msra.mxu0 %v1234
        %3404 = vmatpush.msra.mxu0 %v1224
        %3405 = vmatpush.msra.mxu0 %v1214
        %3406 = vmatpush.msra.mxu0 %v1204
        %3407 = vmatpush.msra.mxu0 %v1194
        %3408 = vmatpush.msra.mxu0 %v1184
        %3409 = vmatpush.msra.mxu0 %v1174
        %3410 = vmatpush.msra.mxu0 %v1164
        %3411 = vmatpush.msra.mxu0 %v1154
        %3412 = vmatmul.f32.gmra.mxu0 %v334
        %v3413 = vpop.f32.mrf.mxu0
        %v3414 = vadd.f32 %v3391, %v3413
        %3415 = vmatmul.f32.gmra.mxu0 %v342
        %v3416 = vpop.f32.mrf.mxu0
        %v3417 = vadd.f32 %v3394, %v3416
        %3418 = vdwg.mxu0
        %3419 = vmatpush.msra.mxu0 %v1464
        %3420 = vmatpush.msra.mxu0 %v1454
        %3421 = vmatpush.msra.mxu0 %v1444
        %3422 = vmatpush.msra.mxu0 %v1434
        %3423 = vmatpush.msra.mxu0 %v1424
        %3424 = vmatpush.msra.mxu0 %v1414
        %3425 = vmatpush.msra.mxu0 %v1404
        %3426 = vmatpush.msra.mxu0 %v1394
        %3427 = vmatpush.msra.mxu0 %v1384
        %3428 = vmatpush.msra.mxu0 %v1374
        %3429 = vmatpush.msra.mxu0 %v1364
        %3430 = vmatpush.msra.mxu0 %v1354
        %3431 = vmatpush.msra.mxu0 %v1344
        %3432 = vmatpush.msra.mxu0 %v1334
        %3433 = vmatpush.msra.mxu0 %v1324
        %3434 = vmatpush.msra.mxu0 %v1314
        %3435 = vmatmul.f32.gmra.mxu0 %v335
        %v3436 = vpop.f32.mrf.mxu0
        %v3437 = vadd.f32 %v3414, %v3436
        %3438 = vmatmul.f32.gmra.mxu0 %v343
        %v3439 = vpop.f32.mrf.mxu0
        %v3440 = vadd.f32 %v3417, %v3439
        %3441 = vdwg.mxu0
        %3442 = vmatpush.msra.mxu0 %v1624
        %3443 = vmatpush.msra.mxu0 %v1614
        %3444 = vmatpush.msra.mxu0 %v1604
        %3445 = vmatpush.msra.mxu0 %v1594
        %3446 = vmatpush.msra.mxu0 %v1584
        %3447 = vmatpush.msra.mxu0 %v1574
        %3448 = vmatpush.msra.mxu0 %v1564
        %3449 = vmatpush.msra.mxu0 %v1554
        %3450 = vmatpush.msra.mxu0 %v1544
        %3451 = vmatpush.msra.mxu0 %v1534
        %3452 = vmatpush.msra.mxu0 %v1524
        %3453 = vmatpush.msra.mxu0 %v1514
        %3454 = vmatpush.msra.mxu0 %v1504
        %3455 = vmatpush.msra.mxu0 %v1494
        %3456 = vmatpush.msra.mxu0 %v1484
        %3457 = vmatpush.msra.mxu0 %v1474
        %3458 = vmatmul.f32.gmra.mxu0 %v336
        %v3459 = vpop.f32.mrf.mxu0
        %v3460 = vadd.f32 %v3437, %v3459
        %3461 = vmatmul.f32.gmra.mxu0 %v344
        %v3462 = vpop.f32.mrf.mxu0
        %v3463 = vadd.f32 %v3440, %v3462
        %3464 = vdwg.mxu0
        %v3465 = vmul.f32 %v1804, %v1804
        %v3466 = vmul.f32 %v1988, %v1988
        %v3467 = vmul.f32 %v2172, %v2172
        %v3468 = vmul.f32 %v2356, %v2356
        %v3469 = vmul.f32 %v2540, %v2540
        %v3470 = vmul.f32 %v1807, %v1807
        %v3471 = vmul.f32 %v1991, %v1991
        %v3472 = vmul.f32 %v2175, %v2175
        %v3473 = vmul.f32 %v2359, %v2359
        %v3474 = vmul.f32 %v2543, %v2543
        %v3475 = vmul.f32 %v2724, %v2724
        %v3476 = vmul.f32 %v2908, %v2908
        %v3477 = vmul.f32 %v3092, %v3092
        %v3478 = vmul.f32 %v3276, %v3276
        %v3479 = vmul.f32 %v3460, %v3460
        %v3480 = vmul.f32 %v2727, %v2727
        %v3481 = vmul.f32 %v2911, %v2911
        %v3482 = vmul.f32 %v3095, %v3095
        %v3483 = vmul.f32 %v3279, %v3279
        %v3484 = vmul.f32 %v3463, %v3463
        %v3485 = vadd.f32 %v3465, %v3475
        %v3486 = vadd.f32 %v3466, %v3476
        %v3487 = vadd.f32 %v3467, %v3477
        %v3488 = vadd.f32 %v3468, %v3478
        %v3489 = vadd.f32 %v3469, %v3479
        %v3490 = vadd.f32 %v3470, %v3480
        %v3491 = vadd.f32 %v3471, %v3481
        %v3492 = vadd.f32 %v3472, %v3482
        %v3493 = vadd.f32 %v3473, %v3483
        %v3494 = vadd.f32 %v3474, %v3484
        %v3495 = vld [vmem:[#allocation7] sm:$0xff]
        %v3496 = vld [vmem:[#allocation7 + $0x8] sm:$0xff]
        %v3497 = vld [vmem:[#allocation7 + $0x10] sm:$0xff]
        %v3498 = vld [vmem:[#allocation7 + $0x18] sm:$0xff]
        %v3499 = vld [vmem:[#allocation7 + $0x20] sm:$0xff]
        %v3500 = vld [vmem:[#allocation7 + $0x28] sm:$0xff]
        %v3501 = vld [vmem:[#allocation7 + $0x30] sm:$0xff]
        %v3502 = vld [vmem:[#allocation7 + $0x38] sm:$0xff]
        %v3503 = vld [vmem:[#allocation7 + $0x40] sm:$0xff]
        %v3504 = vld [vmem:[#allocation7 + $0x48] sm:$0xff]
        %v3505 = vld [vmem:[#allocation7 + $0x50] sm:$0xff]
        %v3506 = vld [vmem:[#allocation7 + $0x58] sm:$0xff]
        %v3507 = vld [vmem:[#allocation7 + $0x60] sm:$0xff]
        %v3508 = vld [vmem:[#allocation7 + $0x68] sm:$0xff]
        %v3509 = vld [vmem:[#allocation7 + $0x70] sm:$0xff]
        %v3510 = vld [vmem:[#allocation7 + $0x78] sm:$0xff]
        %v3511 = vld [vmem:[#allocation7 + $0x80] sm:$0xff]
        %v3512 = vld [vmem:[#allocation7 + $0x88] sm:$0xff]
        %v3513 = vld [vmem:[#allocation7 + $0x90] sm:$0xff]
        %v3514 = vld [vmem:[#allocation7 + $0x98] sm:$0xff]
        %v3515 = vld [vmem:[#allocation7 + $0xa0] sm:$0xff]
        %v3516 = vld [vmem:[#allocation7 + $0xa8] sm:$0xff]
        %v3517 = vld [vmem:[#allocation7 + $0xb0] sm:$0xff]
        %v3518 = vld [vmem:[#allocation7 + $0xb8] sm:$0xff]
        %v3519 = vld [vmem:[#allocation7 + $0xc0] sm:$0xff]
        %v3520 = vld [vmem:[#allocation7 + $0xc8] sm:$0xff]
        %v3521 = vld [vmem:[#allocation7 + $0xd0] sm:$0xff]
        %v3522 = vld [vmem:[#allocation7 + $0xd8] sm:$0xff]
        %v3523 = vld [vmem:[#allocation7 + $0xe0] sm:$0xff]
        %v3524 = vld [vmem:[#allocation7 + $0xe8] sm:$0xff]
        %v3525 = vld [vmem:[#allocation7 + $0xf0] sm:$0xff]
        %v3526 = vld [vmem:[#allocation7 + $0xf8] sm:$0xff]
        %v3527 = vld [vmem:[#allocation7 + $0x100] sm:$0xff]
        %v3528 = vld [vmem:[#allocation7 + $0x108] sm:$0xff]
        %v3529 = vld [vmem:[#allocation7 + $0x110] sm:$0xff]
        %v3530 = vld [vmem:[#allocation7 + $0x118] sm:$0xff]
        %v3531 = vld [vmem:[#allocation7 + $0x120] sm:$0xff]
        %v3532 = vld [vmem:[#allocation7 + $0x128] sm:$0xff]
        %v3533 = vld [vmem:[#allocation7 + $0x130] sm:$0xff]
        %v3534 = vld [vmem:[#allocation7 + $0x138] sm:$0xff]
        %v3535 = vld [vmem:[#allocation7 + $0x140] sm:$0xff]
        %v3536 = vld [vmem:[#allocation7 + $0x148] sm:$0xff]
        %v3537 = vld [vmem:[#allocation7 + $0x150] sm:$0xff]
        %v3538 = vld [vmem:[#allocation7 + $0x158] sm:$0xff]
        %v3539 = vld [vmem:[#allocation7 + $0x160] sm:$0xff]
        %v3540 = vld [vmem:[#allocation7 + $0x168] sm:$0xff]
        %v3541 = vld [vmem:[#allocation7 + $0x170] sm:$0xff]
        %v3542 = vld [vmem:[#allocation7 + $0x178] sm:$0xff]
        %v3543 = vld [vmem:[#allocation7 + $0x180] sm:$0xff]
        %v3544 = vld [vmem:[#allocation7 + $0x188] sm:$0xff]
        %v3545 = vld [vmem:[#allocation7 + $0x190] sm:$0xff]
        %v3546 = vld [vmem:[#allocation7 + $0x198] sm:$0xff]
        %v3547 = vld [vmem:[#allocation7 + $0x1a0] sm:$0xff]
        %v3548 = vld [vmem:[#allocation7 + $0x1a8] sm:$0xff]
        %v3549 = vld [vmem:[#allocation7 + $0x1b0] sm:$0xff]
        %v3550 = vld [vmem:[#allocation7 + $0x1b8] sm:$0xff]
        %v3551 = vld [vmem:[#allocation7 + $0x1c0] sm:$0xff]
        %v3552 = vld [vmem:[#allocation7 + $0x1c8] sm:$0xff]
        %v3553 = vld [vmem:[#allocation7 + $0x1d0] sm:$0xff]
        %v3554 = vld [vmem:[#allocation7 + $0x1d8] sm:$0xff]
        %v3555 = vld [vmem:[#allocation7 + $0x1e0] sm:$0xff]
        %v3556 = vld [vmem:[#allocation7 + $0x1e8] sm:$0xff]
        %v3557 = vld [vmem:[#allocation7 + $0x1f0] sm:$0xff]
        %v3558 = vld [vmem:[#allocation7 + $0x1f8] sm:$0xff]
        %v3559 = vld [vmem:[#allocation7 + $0x200] sm:$0xff]
        %v3560 = vld [vmem:[#allocation7 + $0x208] sm:$0xff]
        %v3561 = vld [vmem:[#allocation7 + $0x210] sm:$0xff]
        %v3562 = vld [vmem:[#allocation7 + $0x218] sm:$0xff]
        %v3563 = vld [vmem:[#allocation7 + $0x220] sm:$0xff]
        %v3564 = vld [vmem:[#allocation7 + $0x228] sm:$0xff]
        %v3565 = vld [vmem:[#allocation7 + $0x230] sm:$0xff]
        %v3566 = vld [vmem:[#allocation7 + $0x238] sm:$0xff]
        %v3567 = vld [vmem:[#allocation7 + $0x240] sm:$0xff]
        %v3568 = vld [vmem:[#allocation7 + $0x248] sm:$0xff]
        %v3569 = vld [vmem:[#allocation7 + $0x250] sm:$0xff]
        %v3570 = vld [vmem:[#allocation7 + $0x258] sm:$0xff]
        %v3571 = vld [vmem:[#allocation7 + $0x260] sm:$0xff]
        %v3572 = vld [vmem:[#allocation7 + $0x268] sm:$0xff]
        %v3573 = vld [vmem:[#allocation7 + $0x270] sm:$0xff]
        %v3574 = vld [vmem:[#allocation7 + $0x278] sm:$0xff]
        %3575 = vmatpush.msra.mxu0 %v3510
        %3576 = vmatpush.msra.mxu0 %v3509
        %3577 = vmatpush.msra.mxu0 %v3508
        %3578 = vmatpush.msra.mxu0 %v3507
        %3579 = vmatpush.msra.mxu0 %v3506
        %3580 = vmatpush.msra.mxu0 %v3505
        %3581 = vmatpush.msra.mxu0 %v3504
        %3582 = vmatpush.msra.mxu0 %v3503
        %3583 = vmatpush.msra.mxu0 %v3502
        %3584 = vmatpush.msra.mxu0 %v3501
        %3585 = vmatpush.msra.mxu0 %v3500
        %3586 = vmatpush.msra.mxu0 %v3499
        %3587 = vmatpush.msra.mxu0 %v3498
        %3588 = vmatpush.msra.mxu0 %v3497
        %3589 = vmatpush.msra.mxu0 %v3496
        %3590 = vmatpush.msra.mxu0 %v3495
        %3591 = vmatmul.f32.gmra.mxu0 %v3485
        %v3592 = vpop.f32.mrf.mxu0
        %v3593 = vadd.f32 0.0, %v3592
        %3594 = vmatmul.f32.gmra.mxu0 %v3490
        %v3595 = vpop.f32.mrf.mxu0
        %v3596 = vadd.f32 0.0, %v3595
        %3597 = vdwg.mxu0
        %3598 = vmatpush.msra.mxu0 %v3526
        %3599 = vmatpush.msra.mxu0 %v3525
        %3600 = vmatpush.msra.mxu0 %v3524
        %3601 = vmatpush.msra.mxu0 %v3523
        %3602 = vmatpush.msra.mxu0 %v3522
        %3603 = vmatpush.msra.mxu0 %v3521
        %3604 = vmatpush.msra.mxu0 %v3520
        %3605 = vmatpush.msra.mxu0 %v3519
        %3606 = vmatpush.msra.mxu0 %v3518
        %3607 = vmatpush.msra.mxu0 %v3517
        %3608 = vmatpush.msra.mxu0 %v3516
        %3609 = vmatpush.msra.mxu0 %v3515
        %3610 = vmatpush.msra.mxu0 %v3514
        %3611 = vmatpush.msra.mxu0 %v3513
        %3612 = vmatpush.msra.mxu0 %v3512
        %3613 = vmatpush.msra.mxu0 %v3511
        %3614 = vmatmul.f32.gmra.mxu0 %v3486
        %v3615 = vpop.f32.mrf.mxu0
        %v3616 = vadd.f32 %v3593, %v3615
        %3617 = vmatmul.f32.gmra.mxu0 %v3491
        %v3618 = vpop.f32.mrf.mxu0
        %v3619 = vadd.f32 %v3596, %v3618
        %3620 = vdwg.mxu0
        %3621 = vmatpush.msra.mxu0 %v3542
        %3622 = vmatpush.msra.mxu0 %v3541
        %3623 = vmatpush.msra.mxu0 %v3540
        %3624 = vmatpush.msra.mxu0 %v3539
        %3625 = vmatpush.msra.mxu0 %v3538
        %3626 = vmatpush.msra.mxu0 %v3537
        %3627 = vmatpush.msra.mxu0 %v3536
        %3628 = vmatpush.msra.mxu0 %v3535
        %3629 = vmatpush.msra.mxu0 %v3534
        %3630 = vmatpush.msra.mxu0 %v3533
        %3631 = vmatpush.msra.mxu0 %v3532
        %3632 = vmatpush.msra.mxu0 %v3531
        %3633 = vmatpush.msra.mxu0 %v3530
        %3634 = vmatpush.msra.mxu0 %v3529
        %3635 = vmatpush.msra.mxu0 %v3528
        %3636 = vmatpush.msra.mxu0 %v3527
        %3637 = vmatmul.f32.gmra.mxu0 %v3487
        %v3638 = vpop.f32.mrf.mxu0
        %v3639 = vadd.f32 %v3616, %v3638
        %3640 = vmatmul.f32.gmra.mxu0 %v3492
        %v3641 = vpop.f32.mrf.mxu0
        %v3642 = vadd.f32 %v3619, %v3641
        %3643 = vdwg.mxu0
        %3644 = vmatpush.msra.mxu0 %v3558
        %3645 = vmatpush.msra.mxu0 %v3557
        %3646 = vmatpush.msra.mxu0 %v3556
        %3647 = vmatpush.msra.mxu0 %v3555
        %3648 = vmatpush.msra.mxu0 %v3554
        %3649 = vmatpush.msra.mxu0 %v3553
        %3650 = vmatpush.msra.mxu0 %v3552
        %3651 = vmatpush.msra.mxu0 %v3551
        %3652 = vmatpush.msra.mxu0 %v3550
        %3653 = vmatpush.msra.mxu0 %v3549
        %3654 = vmatpush.msra.mxu0 %v3548
        %3655 = vmatpush.msra.mxu0 %v3547
        %3656 = vmatpush.msra.mxu0 %v3546
        %3657 = vmatpush.msra.mxu0 %v3545
        %3658 = vmatpush.msra.mxu0 %v3544
        %3659 = vmatpush.msra.mxu0 %v3543
        %3660 = vmatmul.f32.gmra.mxu0 %v3488
        %v3661 = vpop.f32.mrf.mxu0
        %v3662 = vadd.f32 %v3639, %v3661
        %3663 = vmatmul.f32.gmra.mxu0 %v3493
        %v3664 = vpop.f32.mrf.mxu0
        %v3665 = vadd.f32 %v3642, %v3664
        %3666 = vdwg.mxu0
        %3667 = vmatpush.msra.mxu0 %v3574
        %3668 = vmatpush.msra.mxu0 %v3573
        %3669 = vmatpush.msra.mxu0 %v3572
        %3670 = vmatpush.msra.mxu0 %v3571
        %3671 = vmatpush.msra.mxu0 %v3570
        %3672 = vmatpush.msra.mxu0 %v3569
        %3673 = vmatpush.msra.mxu0 %v3568
        %3674 = vmatpush.msra.mxu0 %v3567
        %3675 = vmatpush.msra.mxu0 %v3566
        %3676 = vmatpush.msra.mxu0 %v3565
        %3677 = vmatpush.msra.mxu0 %v3564
        %3678 = vmatpush.msra.mxu0 %v3563
        %3679 = vmatpush.msra.mxu0 %v3562
        %3680 = vmatpush.msra.mxu0 %v3561
        %3681 = vmatpush.msra.mxu0 %v3560
        %3682 = vmatpush.msra.mxu0 %v3559
        %3683 = vmatmul.f32.gmra.mxu0 %v3489
        %v3684 = vpop.f32.mrf.mxu0
        %v3685 = vadd.f32 %v3662, %v3684
        %3686 = vmatmul.f32.gmra.mxu0 %v3494
        %v3687 = vpop.f32.mrf.mxu0
        %v3688 = vadd.f32 %v3665, %v3687
        %3689 = vdwg.mxu0
        %v3690 = vmax.f32 %v3685, 1e-10
        %v3691 = vmax.f32 %v3688, 1e-10
        %v3692 = vlog2.pop %v3690
        %v3693 = vmul.f32 %v3692, 0.6931472
        %v3694 = vlog2.pop %v3691
        %v3695 = vmul.f32 %v3694, 0.6931472
        %v3696 = vmul.f32 %v3693, 4.3429446
        %v3697 = vmul.f32 %v3695, 4.3429446
        %s3698 = smul.u32 %s32, 16
        %v3699 = vlaneseq
        %v3700 = vshrl.u32 %v3699, 7
        %v3701 = vadd.s32 %v3700, 8
        %v3702 = vstv %s3698
        %v3703 = vadd.s32 %v3702, %v3700
        %v3704 = vadd.s32 %v3702, %v3701
        %vm3705 = vcmp.lt.s32.totalorder %v3703, 16
        %vm3706 = vcmp.lt.s32.totalorder %v3704, 16
        %v3707 = vsel %vm3705, %v3696, 3e+38
        %v3708 = vsel %vm3706, %v3697, 3e+38
        %v3709 = vmin.f32 %v3707, %v3708
        %v3710 = vrot.slane %v3709, 4
        %v3711 = vmin.f32 %v3709, %v3710
        %v3712 = vrot.slane %v3711, 2
        %v3713 = vmin.f32 %v3711, %v3712
        %v3714 = vrot.slane %v3713, 1
        %v3715 = vmin.f32 %v3713, %v3714
        %3716 = vst [vmem:[%s313] sm:$0x1] %v3715
        %v3717 = vsel %vm3705, %v3696, -3e+38
        %v3718 = vsel %vm3706, %v3697, -3e+38
        %v3719 = vmax.f32 %v3717, %v3718
        %v3720 = vrot.slane %v3719, 4
        %v3721 = vmax.f32 %v3719, %v3720
        %v3722 = vrot.slane %v3721, 2
        %v3723 = vmax.f32 %v3721, %v3722
        %v3724 = vrot.slane %v3723, 1
        %v3725 = vmax.f32 %v3723, %v3724
        %3726 = vst [vmem:[%s319] sm:$0x1] %v3725
        %3727 = vxpose.xlu0.b32.start [1/16] %v3696, 128
        %3728 = vxpose.xlu0.b32.cont [2/16] %v3697, 128
        %3729 = vxpose.xlu0.b32.cont [3/16] 0.0, 128
        %3730 = vxpose.xlu0.b32.cont [4/16] 0.0, 128
        %3731 = vxpose.xlu0.b32.cont [5/16] 0.0, 128
        %3732 = vxpose.xlu0.b32.cont [6/16] 0.0, 128
        %3733 = vxpose.xlu0.b32.cont [7/16] 0.0, 128
        %3734 = vxpose.xlu0.b32.cont [8/16] 0.0, 128
        %3735 = vxpose.xlu0.b32.cont [9/16] 0.0, 128
        %3736 = vxpose.xlu0.b32.cont [10/16] 0.0, 128
        %3737 = vxpose.xlu0.b32.cont [11/16] 0.0, 128
        %3738 = vxpose.xlu0.b32.cont [12/16] 0.0, 128
        %3739 = vxpose.xlu0.b32.cont [13/16] 0.0, 128
        %3740 = vxpose.xlu0.b32.cont [14/16] 0.0, 128
        %3741 = vxpose.xlu0.b32.cont [15/16] 0.0, 128
        %3742 = vxpose.xlu0.b32.end [16/16] 0.0, 128
        %v3743 = vpop.trf.xlu0
        %v3744 = vpop.trf.xlu0
        %v3745 = vpop.trf.xlu0
        %v3746 = vpop.trf.xlu0
        %v3747 = vpop.trf.xlu0
        %v3748 = vpop.trf.xlu0
        %v3749 = vpop.trf.xlu0
        %v3750 = vpop.trf.xlu0
        %v3751 = vpop.trf.xlu0
        %v3752 = vpop.trf.xlu0
        %v3753 = vpop.trf.xlu0
        %v3754 = vpop.trf.xlu0
        %v3755 = vpop.trf.xlu0
        %v3756 = vpop.trf.xlu0
        %v3757 = vpop.trf.xlu0
        %v3758 = vpop.trf.xlu0
        %vm3759 = vcmask 130048
        %3760 = vst.msk [vmem:[%s328] sm:$0xff] %vm3759, %v3743
        %3761 = vst.msk [vmem:[%s328 + $0x8] sm:$0xff] %vm3759, %v3744
        %3762 = vst.msk [vmem:[%s328 + $0x10] sm:$0xff] %vm3759, %v3745
        %3763 = vst.msk [vmem:[%s328 + $0x18] sm:$0xff] %vm3759, %v3746
        %3764 = vst.msk [vmem:[%s328 + $0x20] sm:$0xff] %vm3759, %v3747
        %3765 = vst.msk [vmem:[%s328 + $0x28] sm:$0xff] %vm3759, %v3748
        %3766 = vst.msk [vmem:[%s328 + $0x30] sm:$0xff] %vm3759, %v3749
        %3767 = vst.msk [vmem:[%s328 + $0x38] sm:$0xff] %vm3759, %v3750
        %3768 = vst.msk [vmem:[%s328 + $0x40] sm:$0xff] %vm3759, %v3751
        %3769 = vst.msk [vmem:[%s328 + $0x48] sm:$0xff] %vm3759, %v3752
        %3770 = vst.msk [vmem:[%s328 + $0x50] sm:$0xff] %vm3759, %v3753
        %3771 = vst.msk [vmem:[%s328 + $0x58] sm:$0xff] %vm3759, %v3754
        %3772 = vst.msk [vmem:[%s328 + $0x60] sm:$0xff] %vm3759, %v3755
        %3773 = vst.msk [vmem:[%s328 + $0x68] sm:$0xff] %vm3759, %v3756
        %3774 = vst.msk [vmem:[%s328 + $0x70] sm:$0xff] %vm3759, %v3757
        %3775 = vst.msk [vmem:[%s328 + $0x78] sm:$0xff] %vm3759, %v3758
        %p3776 = scmp.lt.s32.totalorder %s31, 1
        %s3777 = scalar_select %p3776, %s31, 1
        %p3778 = scmp.lt.s32.totalorder %s32, 0
        %s3779 = scalar_select %p3778, %s32, 0
        %s3780 = smul.addr %s3777, 16
        %s3781 = sadd.s32 %s3779, %s3780
        %s3782 = smul.addr %s3781, 8
        %s3783 = scalar_lea.vmem %s3, %s3782
        %s3784 = sand.u32 %s147, 1
        %s3785 = scalar_lea.sflag [#allocation4], %s3784
        %s3786 = sand.u32 %s147, 1
        %s3787 = scalar_lea.vmem [#allocation8], %s3786
        %s3788 = sand.u32 %s175, 1
        %s3789 = scalar_lea.sflag [#allocation10], %s3788
        %s3790 = sand.u32 %s175, 1
        %s3791 = scalar_lea.vmem [#allocation9], %s3790
        // Predicated region
        $region45: #{tpu_custom_call.1} parent=31 // pred_check
          %p3792 = pneg %p129
        $region46: #{tpu_custom_call.1} parent=31 // pred_check_branch
          %3794 = sbr.rel (%p3792) target = $region48
        $region47: #{tpu_custom_call.1} parent=31 // pred_region
          _
        $region48: #{tpu_custom_call.1} parent=31 // pred_fallthru
          _
        // Predicated region
        $region49: #{tpu_custom_call.1} parent=31 // pred_check
          %p3795 = pneg %p157
        $region50: #{tpu_custom_call.1} parent=31 // pred_check_branch
          %3797 = sbr.rel (%p3795) target = $region52
        $region51: #{tpu_custom_call.1} parent=31 // pred_region
          %3799 = vsyncadd %s3785, 0
          %s3800 = sadd.s32 %s32, %s31
          %s3801 = scalar_lea.hbm %s4, %s3800
          %s3803 = sshll.u32 %s3787, 4
          %s3804 = int_to_ptr.vmem [resolvable:$true] %s3803
          %s3805 = sshll.u32 %s3801, 4
          %s3806 = int_to_ptr.hbm [resolvable:$true] %s3805
          %3808 = dma.vmem_to_hbm [thread:$0]  %s3804, 16, %s3806, %s3785
        $region52: #{tpu_custom_call.1} parent=31 // pred_fallthru
          _
        // Predicated region
        $region53: #{tpu_custom_call.1} parent=31 // pred_check
          %p3809 = pneg %p185
        $region54: #{tpu_custom_call.1} parent=31 // pred_check_branch
          %3811 = sbr.rel (%p3809) target = $region56
        $region55: #{tpu_custom_call.1} parent=31 // pred_region
          %3813 = vsyncadd %s3789, 0
          %s3814 = sadd.s32 %s32, %s31
          %s3815 = scalar_lea.hbm %s5, %s3814
          %s3817 = sshll.u32 %s3791, 4
          %s3818 = int_to_ptr.vmem [resolvable:$true] %s3817
          %s3819 = sshll.u32 %s3815, 4
          %s3820 = int_to_ptr.hbm [resolvable:$true] %s3819
          %3822 = dma.vmem_to_hbm [thread:$0]  %s3818, 16, %s3820, %s3789
        $region56: #{tpu_custom_call.1} parent=31 // pred_fallthru
          _
      $region32: #{tpu_custom_call.1} parent=5 // pred_fallthru
        _
      %p3823 = scmp.le.s32.totalorder 2, %s22
      // Predicated region
      $region57: #{tpu_custom_call.1} parent=5 // pred_check
        %p3824 = pneg %p3823
      $region58: #{tpu_custom_call.1} parent=5 // pred_check_branch
        %3826 = sbr.rel (%p3824) target = $region60
      $region59: #{tpu_custom_call.1} parent=5 // pred_region
        %s3827 = ssub.s32 %s22, 2
        // Predicated region
        $region61: #{tpu_custom_call.1} parent=59 // pred_check
          %p3828 = pneg %p135
        $region62: #{tpu_custom_call.1} parent=59 // pred_check_branch
          %3830 = sbr.rel (%p3828) target = $region64
        $region63: #{tpu_custom_call.1} parent=59 // pred_region
          %p3831 = scmp.lt.s32.totalorder %s33, 1
          %s3832 = scalar_select %p3831, %s33, 1
          %p3833 = scmp.lt.s32.totalorder %s34, 0
          %s3834 = scalar_select %p3833, %s34, 0
          %s3835 = smul.addr %s3832, 16
          %s3836 = sadd.s32 %s3834, %s3835
          %s3837 = smul.addr %s3836, 8
          %s3838 = scalar_lea.vmem %s3, %s3837
        $region64: #{tpu_custom_call.1} parent=59 // pred_fallthru
          _
        // Predicated region
        $region65: #{tpu_custom_call.1} parent=59 // pred_check
          %p3839 = pneg %p163
        $region66: #{tpu_custom_call.1} parent=59 // pred_check_branch
          %3841 = sbr.rel (%p3839) target = $region68
        $region67: #{tpu_custom_call.1} parent=59 // pred_region
          %s3842 = sand.u32 %s148, 1
          %s3843 = scalar_lea.sflag [#allocation4], %s3842
          %s3844 = sand.u32 %s148, 1
          %s3845 = scalar_lea.vmem [#allocation8], %s3844
          %3847 = dma.done %s3843, 16
        $region68: #{tpu_custom_call.1} parent=59 // pred_fallthru
          _
        // Predicated region
        $region69: #{tpu_custom_call.1} parent=59 // pred_check
          %p3848 = pneg %p191
        $region70: #{tpu_custom_call.1} parent=59 // pred_check_branch
          %3850 = sbr.rel (%p3848) target = $region72
        $region71: #{tpu_custom_call.1} parent=59 // pred_region
          %s3851 = sand.u32 %s176, 1
          %s3852 = scalar_lea.sflag [#allocation10], %s3851
          %s3853 = sand.u32 %s176, 1
          %s3854 = scalar_lea.vmem [#allocation9], %s3853
          %3856 = dma.done %s3852, 16
        $region72: #{tpu_custom_call.1} parent=59 // pred_fallthru
          _
      $region60: #{tpu_custom_call.1} parent=5 // pred_fallthru
        _
    $region6: #{tpu_custom_call.1} parent=1 // loop_footer
      %s26 = sadd.s32 1, %s22
    $region7: #{tpu_custom_call.1} parent=1 // loop_footer_branch
      %21 = sbr.rel target = $region3
    $region8: #{tpu_custom_call.1} parent=1 // loop_exit
      _
    %3857 = vsyncpa [#allocation3], 1
    %s3858 = scalar_lea.sflag [#allocation3], 1
    %3859 = vsyncpa %s3858, 1
    %3860 = vsyncpa [#allocation6], 1
    %3861 = vsyncpa [#allocation4], 1
    %s3862 = scalar_lea.sflag [#allocation4], 1
    %3863 = vsyncpa %s3862, 1
    %3864 = vsyncpa [#allocation10], 1
    %s3865 = scalar_lea.sflag [#allocation10], 1
    %3866 = vsyncpa %s3865, 1

</llo_original>
